<compile_context>
chip_gen: v7x
topology: tpu7x:2x2x1
jax: 0.10.0
libtpu: 0.0.40
codegen_flags: <defaults>
</compile_context>

<pallas_src>
import functools

import jax
import jax.numpy as jnp
from jax.experimental import pallas as pl
from jax.experimental.pallas import tpu as pltpu


def cardinality_block_kernel(x_ref, r_ref, bias_ref, out_ref, pad_ref, *, W, Cin):
    # x_ref:    (Nb, H, W*Cin)            f32  lane-dense input block
    # r_ref:    (3, (W+4)*Cin, W*Cout)    bf16 banded fused 3x3 weights (per ky)
    # bias_ref: (H, W*Cout)               f32  exact per-pixel bias (C-tiled)
    # out_ref:  (Nb, H, W*Cout)           lane-dense output block
    # pad_ref:  VMEM (Nb, H+2, (W+4)*Cin) bf16 zero-padded lane-dense rows
    Nb, H, _ = x_ref.shape
    _, K, WCout = r_ref.shape

    x = x_ref[...]                                         # (Nb, H, W*Cin) f32

    # Re-zero the halo every step (cheap; see header for why it is not
    # program_id-guarded — scratch is per-core under "parallel" sharding).
    pad_ref[:, 0:1, :] = jnp.zeros((Nb, 1, K), jnp.bfloat16)
    pad_ref[:, H + 1:H + 2, :] = jnp.zeros((Nb, 1, K), jnp.bfloat16)
    pad_ref[:, :, 0:2 * Cin] = jnp.zeros((Nb, H + 2, 2 * Cin), jnp.bfloat16)
    pad_ref[:, :, (W + 2) * Cin:(W + 4) * Cin] = jnp.zeros(
        (Nb, H + 2, 2 * Cin), jnp.bfloat16)

    # Interior fill: lane offset 2*Cin (= 128 for Cin = 64), width W*Cin.
    pad_ref[:, 1:H + 1, 2 * Cin:(W + 2) * Cin] = x.astype(jnp.bfloat16)

    # 3x3 conv (with the 1x1 convs and C-tile folded in) as three row-banded
    # MXU matmuls: bf16 x bf16 -> f32 accumulate.
    acc = jnp.dot(pad_ref[:, 0:H, :].reshape(Nb * H, K), r_ref[0],
                  preferred_element_type=jnp.float32)
    acc = acc + jnp.dot(pad_ref[:, 1:H + 1, :].reshape(Nb * H, K), r_ref[1],
                        preferred_element_type=jnp.float32)
    acc = acc + jnp.dot(pad_ref[:, 2:H + 2, :].reshape(Nb * H, K), r_ref[2],
                        preferred_element_type=jnp.float32)

    # Bias (broadcast over Nb) + residual + ReLU, all lane-dense f32 on the VPU.
    y = acc.reshape(Nb, H, WCout) + bias_ref[...][None, :, :] + x
    out_ref[...] = jnp.maximum(y, 0.0).astype(out_ref.dtype)


def _branch_nhwc(x, params):
    """Pure-JAX NHWC branch (conv1 -> conv2 -> conv3): reference and exact
    bias-map computation (= branch(0))."""
    w1, b1, w2, b2, w3, b3 = params
    Cs = w1.shape[1]
    h1 = jnp.einsum('nhwc,cd->nhwd', x, w1) + b1[0]
    w2_4d = w2.reshape(3, 3, Cs, Cs)                        # HWIO
    h2 = jax.lax.conv_general_dilated(
        h1, w2_4d, window_strides=(1, 1), padding='SAME',
        dimension_numbers=('NHWC', 'HWIO', 'NHWC')) + b2[0]
    h3 = jnp.einsum('nhwc,cd->nhwd', h2, w3) + b3[0]
    return h3


def _fold_branch_params(params, H, W, C):
    """Fold conv1(1x1) -> conv2(3x3, pad=1) -> conv3(1x1) AND the C-way concat
    into:
      R:    (3, (W+4)*Cin, W*Cout) bf16  row-banded fused weights (per kernel row)
      bias: (H, W*Cout)            f32   exact per-pixel bias (C-tiled branch(0))
    Exact because the branch has no BN/ReLU between the convs.
    """
    w1, b1, w2, b2, w3, b3 = params
    Cin, Cs = w1.shape
    Cout = C * 2 * Cs
    # Linear part of the branch: per-tap fused weights, then fold torch.cat
    # of C identical branches (channel tile) into the output dim.
    wf = jnp.einsum('ic,tcd,de->tie', w1, w2, w3)           # (9, Cin, 2*Cs)
    wf = jnp.tile(wf, (1, 1, C)).reshape(3, 3, Cin, Cout)   # (3, 3, Cin, Cout)

    K = (W + 4) * Cin
    R = jnp.zeros((3, K, W * Cout), jnp.float32)
    for ky in range(3):
        for w in range(W):
            for kx in range(3):
                j = w + kx + 1            # padded column index (interior at j=2)
                R = R.at[ky, j * Cin:(j + 1) * Cin,
                         w * Cout:(w + 1) * Cout].set(wf[ky, kx])

    # Exact per-pixel bias: branch(0) includes b2, b3 and the border-dependent
    # contribution of b1 through conv2's zero padding.
    zero = jnp.zeros((1, H, W, Cin), jnp.float32)
    bmap = _branch_nhwc(zero, params)[0]                    # (H, W, 2*Cs)
    bmap = jnp.tile(bmap, (1, 1, C)).reshape(H, W * Cout)   # C-tiled, lane-dense
    return R.astype(jnp.bfloat16), bmap.astype(jnp.float32)


def cardinality_block(x_nhwc, params, C, *, vmem_budget_bytes=24 * 1024 * 1024):
    """x_nhwc: (N, H, W, Cin) float32; params = (w1, b1, w2, b2, w3, b3)."""
    N, H, W, Cin = x_nhwc.shape
    w1, b1, w2, b2, w3, b3 = params
    Cs = w1.shape[1]
    Cout = C * 2 * Cs
    assert Cin == Cout, (
        "residual add without identity_downsample requires "
        "in_channels == C * 2 * (out_channels // C); stride>1 / downsample "
        "modules are not implemented")

    R, bias_ld = _fold_branch_params(params, H, W, C)
    K = (W + 4) * Cin

    # Per-step VMEM: every blocked operand counted double-buffered (Pallas
    # allocates 2 buffers even for constant index_maps), + scratch + temporaries.
    r_bytes = 3 * K * W * Cout * 2
    bias_bytes = H * W * Cout * 4

    def step_bytes(nb):
        x_blk = nb * H * W * Cin * 4
        o_blk = nb * H * W * Cout * 4
        pad = nb * (H + 2) * K * 2
        tmp = 2 * nb * H * W * Cout * 4           # f32 accumulator + epilogue
        return 2 * (x_blk + o_blk + r_bytes + bias_bytes) + pad + tmp

    # Images per grid step: largest divisor of N under the budget that still
    # leaves >= 4 grid steps (>= 2 as fallback) so the BlockSpec pipeline can
    # overlap DMA/compute and v7x's two TensorCores both get work.
    divisors = [d for d in range(1, N + 1) if N % d == 0]
    feasible = [d for d in divisors if step_bytes(d) <= vmem_budget_bytes] or [1]
    Nb = feasible[0]
    for min_steps in (min(4, N), min(2, N), 1):
        cands = [d for d in feasible if N // d >= min_steps]
        if cands:
            Nb = max(cands)
            break

    vmem_limit = max(16 * 1024 * 1024,
                     min(int(1.5 * step_bytes(Nb)) + (4 << 20), 112 * 1024 * 1024))

    # Lane-dense views (free contiguous NHWC reshapes at the boundary).
    x_ld = x_nhwc.reshape(N, H, W * Cin)

    kernel = functools.partial(cardinality_block_kernel, W=W, Cin=Cin)
    out_ld = pl.pallas_call(
        kernel,
        out_shape=jax.ShapeDtypeStruct((N, H, W * Cout), x_nhwc.dtype),
        grid_spec=pltpu.PrefetchScalarGridSpec(
            num_scalar_prefetch=0,
            grid=(N // Nb,),
            in_specs=[
                pl.BlockSpec((Nb, H, W * Cin), lambda g: (g, 0, 0)),
                pl.BlockSpec((3, K, W * Cout), lambda g: (0, 0, 0)),
                pl.BlockSpec((H, W * Cout), lambda g: (0, 0)),
            ],
            out_specs=pl.BlockSpec((Nb, H, W * Cout), lambda g: (g, 0, 0)),
            scratch_shapes=[
                pltpu.VMEM((Nb, H + 2, K), jnp.bfloat16),
            ],
        ),
        compiler_params=pltpu.CompilerParams(
            dimension_semantics=("parallel",),
            vmem_limit_bytes=vmem_limit,
        ),
    )(x_ld, R, bias_ld)
    return out_ld.reshape(N, H, W, Cout)


def ref_forward(x, params, C):
    """Pure-JAX NHWC reference matching the PyTorch forward
    (stride=1, no identity_downsample)."""
    h3 = _branch_nhwc(x, params)
    cat = jnp.tile(h3, (1, 1, 1, C))
    return jnp.maximum(cat + x, 0.0)


if __name__ == "__main__":
    # Small config consistent with the module: out_channels=32, C=4
    #  -> small_out_channels Cs = 8, branch output = 2*Cs = 16,
    #     concat channels = C*2*Cs = 64 = in_channels (needed for the residual).
    N, H, W = 2, 8, 8
    C = 4
    out_channels = 32
    Cs = out_channels // C            # 8
    Cin = C * 2 * Cs                  # 64

    key = jax.random.PRNGKey(0)
    ks = jax.random.split(key, 7)
    x = jax.random.normal(ks[0], (N, H, W, Cin), jnp.float32)
    w1 = jax.random.normal(ks[1], (Cin, Cs), jnp.float32) * 0.1
    b1 = jax.random.normal(ks[2], (1, Cs), jnp.float32) * 0.1
    w2 = jax.random.normal(ks[3], (9, Cs, Cs), jnp.float32) * 0.1
    b2 = jax.random.normal(ks[4], (1, Cs), jnp.float32) * 0.1
    w3 = jax.random.normal(ks[5], (Cs, 2 * Cs), jnp.float32) * 0.1
    b3 = jax.random.normal(ks[6], (1, 2 * Cs), jnp.float32) * 0.1
    params = (w1, b1, w2, b2, w3, b3)

    out = cardinality_block(x, params, C)
    out = jax.block_until_ready(out)

    ref = ref_forward(x, params, C)
    assert out.shape == (N, H, W, Cin)
    # bf16 MXU operands (f32 accumulate) -> slightly looser tolerance vs f32 ref.
    if not jnp.allclose(out, ref, atol=2e-2, rtol=2e-2):
        raise AssertionError("Pallas kernel output mismatch vs JAX reference")
    print("KERNEL_OK")
</pallas_src>

<mosaic_0001>
module attributes {stable_mosaic.version = 11 : i64} {
  func.func @cardinality_block_kernel(%arg0: i32, %arg1: memref<1x8x512xf32, #tpu.memory_space<vmem>>, %arg2: memref<3x768x512xbf16, #tpu.memory_space<vmem>>, %arg3: memref<8x512xf32, #tpu.memory_space<vmem>>, %arg4: memref<1x8x512xf32, #tpu.memory_space<vmem>>, %arg5: memref<1x10x768xbf16, #tpu.memory_space<vmem>>) attributes {dimension_semantics = [#tpu.dimension_semantics<parallel>], iteration_bounds = array<i64: 2>, scalar_prefetch = 0 : i64, scratch_operands = 1 : i64, tpu.core_type = #tpu.core_type<tc>, window_params = [{transform_indices = @transform_0, window_bounds = array<i64: 1, 8, 512>}, {pipeline_mode = #tpu.pipeline_mode<synchronous>, transform_indices = @transform_1, window_bounds = array<i64: 3, 768, 512>}, {pipeline_mode = #tpu.pipeline_mode<synchronous>, transform_indices = @transform_2, window_bounds = array<i64: 8, 512>}, {transform_indices = @transform_3, window_bounds = array<i64: 1, 8, 512>}]} {
    %c0 = arith.constant 0 : index
    %c0_0 = arith.constant 0 : index
    %c0_1 = arith.constant 0 : index
    %0 = vector.load %arg1[%c0, %c0_0, %c0_1] : memref<1x8x512xf32, #tpu.memory_space<vmem>>, vector<1x8x512xf32>
    %cst = arith.constant 0.000000e+00 : bf16
    %1 = vector.broadcast %cst : bf16 to vector<1x1x768xbf16>
    %c0_2 = arith.constant 0 : index
    %c0_3 = arith.constant 0 : index
    %c0_4 = arith.constant 0 : index
    %2 = vector.load %arg5[%c0_2, %c0_3, %c0_4] : memref<1x10x768xbf16, #tpu.memory_space<vmem>>, vector<1x1x768xbf16>
    tpu.vector_store %arg5[%c0_2, %c0_3, %c0_4], %1 {strides = array<i32>} : memref<1x10x768xbf16, #tpu.memory_space<vmem>>, vector<1x1x768xbf16>,
    %cst_5 = arith.constant 0.000000e+00 : bf16
    %3 = vector.broadcast %cst_5 : bf16 to vector<1x1x768xbf16>
    %c0_6 = arith.constant 0 : index
    %c9 = arith.constant 9 : index
    %c0_7 = arith.constant 0 : index
    %4 = vector.load %arg5[%c0_6, %c9, %c0_7] : memref<1x10x768xbf16, #tpu.memory_space<vmem>>, vector<1x1x768xbf16>
    tpu.vector_store %arg5[%c0_6, %c9, %c0_7], %3 {strides = array<i32>} : memref<1x10x768xbf16, #tpu.memory_space<vmem>>, vector<1x1x768xbf16>,
    %cst_8 = arith.constant 0.000000e+00 : bf16
    %5 = vector.broadcast %cst_8 : bf16 to vector<1x10x128xbf16>
    %c0_9 = arith.constant 0 : index
    %c0_10 = arith.constant 0 : index
    %c0_11 = arith.constant 0 : index
    %6 = vector.load %arg5[%c0_9, %c0_10, %c0_11] : memref<1x10x768xbf16, #tpu.memory_space<vmem>>, vector<1x10x128xbf16>
    tpu.vector_store %arg5[%c0_9, %c0_10, %c0_11], %5 {strides = array<i32>} : memref<1x10x768xbf16, #tpu.memory_space<vmem>>, vector<1x10x128xbf16>,
    %cst_12 = arith.constant 0.000000e+00 : bf16
    %7 = vector.broadcast %cst_12 : bf16 to vector<1x10x128xbf16>
    %c0_13 = arith.constant 0 : index
    %c0_14 = arith.constant 0 : index
    %c640 = arith.constant 640 : index
    %8 = vector.load %arg5[%c0_13, %c0_14, %c640] : memref<1x10x768xbf16, #tpu.memory_space<vmem>>, vector<1x10x128xbf16>
    tpu.vector_store %arg5[%c0_13, %c0_14, %c640], %7 {strides = array<i32>} : memref<1x10x768xbf16, #tpu.memory_space<vmem>>, vector<1x10x128xbf16>,
    %9 = arith.truncf %0 : vector<1x8x512xf32> to vector<1x8x512xbf16>
    %c0_15 = arith.constant 0 : index
    %c1 = arith.constant 1 : index
    %c128 = arith.constant 128 : index
    %10 = vector.load %arg5[%c0_15, %c1, %c128] : memref<1x10x768xbf16, #tpu.memory_space<vmem>>, vector<1x8x512xbf16>
    tpu.vector_store %arg5[%c0_15, %c1, %c128], %9 {strides = array<i32>} : memref<1x10x768xbf16, #tpu.memory_space<vmem>>, vector<1x8x512xbf16>,
    %c0_16 = arith.constant 0 : index
    %c0_17 = arith.constant 0 : index
    %c0_18 = arith.constant 0 : index
    %11 = vector.load %arg5[%c0_16, %c0_17, %c0_18] : memref<1x10x768xbf16, #tpu.memory_space<vmem>>, vector<1x8x768xbf16>
    %12 = vector.shape_cast %11 : vector<1x8x768xbf16> to vector<8x768xbf16>
    %c0_19 = arith.constant 0 : index
    %c0_20 = arith.constant 0 : index
    %c0_21 = arith.constant 0 : index
    %13 = vector.load %arg2[%c0_19, %c0_20, %c0_21] : memref<3x768x512xbf16, #tpu.memory_space<vmem>>, vector<1x768x512xbf16>
    %14 = vector.shape_cast %13 : vector<1x768x512xbf16> to vector<768x512xbf16>
    %cst_22 = arith.constant dense<0.000000e+00> : vector<8x512xf32>
    %15 = tpu.matmul %12, %14, %cst_22 {dimension_numbers = #tpu.dot_dimension_numbers<[1], [0], [0], [1], [0, 0, 1, 1], [], []>} : vector<8x768xbf16>, vector<768x512xbf16>, vector<8x512xf32> -> vector<8x512xf32>
    %c0_23 = arith.constant 0 : index
    %c1_24 = arith.constant 1 : index
    %c0_25 = arith.constant 0 : index
    %16 = vector.load %arg5[%c0_23, %c1_24, %c0_25] : memref<1x10x768xbf16, #tpu.memory_space<vmem>>, vector<1x8x768xbf16>
    %17 = vector.shape_cast %16 : vector<1x8x768xbf16> to vector<8x768xbf16>
    %c1_26 = arith.constant 1 : index
    %c0_27 = arith.constant 0 : index
    %c0_28 = arith.constant 0 : index
    %18 = vector.load %arg2[%c1_26, %c0_27, %c0_28] : memref<3x768x512xbf16, #tpu.memory_space<vmem>>, vector<1x768x512xbf16>
    %19 = vector.shape_cast %18 : vector<1x768x512xbf16> to vector<768x512xbf16>
    %cst_29 = arith.constant dense<0.000000e+00> : vector<8x512xf32>
    %20 = tpu.matmul %17, %19, %cst_29 {dimension_numbers = #tpu.dot_dimension_numbers<[1], [0], [0], [1], [0, 0, 1, 1], [], []>} : vector<8x768xbf16>, vector<768x512xbf16>, vector<8x512xf32> -> vector<8x512xf32>
    %21 = arith.addf %15, %20 : vector<8x512xf32>
    %c0_30 = arith.constant 0 : index
    %c2 = arith.constant 2 : index
    %c0_31 = arith.constant 0 : index
    %22 = vector.load %arg5[%c0_30, %c2, %c0_31] : memref<1x10x768xbf16, #tpu.memory_space<vmem>>, vector<1x8x768xbf16>
    %23 = vector.shape_cast %22 : vector<1x8x768xbf16> to vector<8x768xbf16>
    %c2_32 = arith.constant 2 : index
    %c0_33 = arith.constant 0 : index
    %c0_34 = arith.constant 0 : index
    %24 = vector.load %arg2[%c2_32, %c0_33, %c0_34] : memref<3x768x512xbf16, #tpu.memory_space<vmem>>, vector<1x768x512xbf16>
    %25 = vector.shape_cast %24 : vector<1x768x512xbf16> to vector<768x512xbf16>
    %cst_35 = arith.constant dense<0.000000e+00> : vector<8x512xf32>
    %26 = tpu.matmul %23, %25, %cst_35 {dimension_numbers = #tpu.dot_dimension_numbers<[1], [0], [0], [1], [0, 0, 1, 1], [], []>} : vector<8x768xbf16>, vector<768x512xbf16>, vector<8x512xf32> -> vector<8x512xf32>
    %27 = arith.addf %21, %26 : vector<8x512xf32>
    %28 = vector.shape_cast %27 : vector<8x512xf32> to vector<1x8x512xf32>
    %c0_36 = arith.constant 0 : index
    %c0_37 = arith.constant 0 : index
    %29 = vector.load %arg3[%c0_36, %c0_37] : memref<8x512xf32, #tpu.memory_space<vmem>>, vector<8x512xf32>
    %30 = vector.shape_cast %29 : vector<8x512xf32> to vector<1x8x512xf32>
    %31 = arith.addf %28, %30 : vector<1x8x512xf32>
    %32 = arith.addf %31, %0 : vector<1x8x512xf32>
    %cst_38 = arith.constant 0.000000e+00 : f32
    %33 = vector.broadcast %cst_38 : f32 to vector<1x8x512xf32>
    %34 = arith.maximumf %32, %33 : vector<1x8x512xf32>
    %c0_39 = arith.constant 0 : index
    %c0_40 = arith.constant 0 : index
    %c0_41 = arith.constant 0 : index
    %35 = vector.load %arg4[%c0_39, %c0_40, %c0_41] : memref<1x8x512xf32, #tpu.memory_space<vmem>>, vector<1x8x512xf32>
    tpu.vector_store %arg4[%c0_39, %c0_40, %c0_41], %34 {strides = array<i32>} : memref<1x8x512xf32, #tpu.memory_space<vmem>>, vector<1x8x512xf32>,
    return
  }
  func.func @transform_0(%arg0: i32) -> (i32, i32, i32) {
    %c0_i32 = arith.constant 0 : i32
    %c0_i32_0 = arith.constant 0 : i32
    %c0_i32_1 = arith.constant 0 : i32
    return %arg0, %c0_i32, %c0_i32_0 : i32, i32, i32
  }
  func.func @transform_1(%arg0: i32) -> (i32, i32, i32) {
    %c0_i32 = arith.constant 0 : i32
    %c0_i32_0 = arith.constant 0 : i32
    %c0_i32_1 = arith.constant 0 : i32
    %c0_i32_2 = arith.constant 0 : i32
    return %c0_i32, %c0_i32_0, %c0_i32_1 : i32, i32, i32
  }
  func.func @transform_2(%arg0: i32) -> (i32, i32) {
    %c0_i32 = arith.constant 0 : i32
    %c0_i32_0 = arith.constant 0 : i32
    %c0_i32_1 = arith.constant 0 : i32
    return %c0_i32, %c0_i32_0 : i32, i32
  }
  func.func @transform_3(%arg0: i32) -> (i32, i32, i32) {
    %c0_i32 = arith.constant 0 : i32
    %c0_i32_0 = arith.constant 0 : i32
    %c0_i32_1 = arith.constant 0 : i32
    return %arg0, %c0_i32, %c0_i32_0 : i32, i32, i32
  }
}

</mosaic_0001>

<llo_original>
// kernel: tpu_custom_call.1
$region0: #{tpu_custom_call.1}
  #allocation0 [shape = 'u32[]', space=smem, size = 0x4, offset = 0x4, fixed_abs, tag = 'smem constant byte address 0x4 - core index']
  #allocation1 [shape = 'u32[144,128]{1,0:T(1,128)}', space=vmem, size = 0x12000, scoped, tag = 'internal scratch']
  #allocation2 [shape = 'bf16[1,10,768]{2,1,0:T(8,128)(2,1)}', space=vmem, size = 0x6000, scoped, tag = 'scratch operand']
  %s0 = inlined_call_operand.hbm [shape: f32[2,8,512], index: 0, kind: input, shape index: {}]
  %s1 = inlined_call_operand.hbm [shape: bf16[3,768,512], index: 1, kind: input, shape index: {}]
  %s2 = inlined_call_operand.hbm [shape: f32[8,512], index: 2, kind: input, shape index: {}]
  %s3 = inlined_call_operand.hbm [shape: f32[2,8,512], index: 3, kind: output, shape index: {}]
  %s4 = sld [smem:[#allocation0]]
  $region57: #{tpu_custom_call.1} parent=0
    _
  %s6 = ssub.s32 1, %s4
  %s7 = scalar_select 0, %s6, %s4
  $region1: #{tpu_custom_call.1} parent=0
    #allocation3 [shape = 'u8[32768]{0}', space=vmem, size = 0x8000, scoped, tag = 'input window, operand 0']
    #allocation4 [shape = 's32[2]{0}', space=sflag, size = 0x8, scoped, tag = 'scoped memory for tpu_custom_call.1']
    #allocation5 [shape = 's32[2]{0}', space=sflag, size = 0x8, scoped, tag = 'scoped memory for tpu_custom_call.1']
    #allocation6 [shape = 'u8[2359296]{0}', space=vmem, size = 0x240000, scoped, tag = 'input window, operand 1, single buffered']
    #allocation7 [shape = 's32[1]{0}', space=sflag, size = 0x4, scoped, tag = 'scoped memory for tpu_custom_call.1']
    #allocation8 [shape = 'u8[16384]{0}', space=vmem, size = 0x4000, scoped, tag = 'input window, operand 2, single buffered']
    #allocation9 [shape = 'u8[32768]{0}', space=vmem, size = 0x8000, scoped, tag = 'output window, operand 0']
    %8 = vsyncpa [#allocation4], 0
    %s9 = scalar_lea.sflag [#allocation4], 1
    %10 = vsyncpa %s9, 0
    %11 = vsyncpa [#allocation7], 0
    %12 = vsyncpa [#allocation5], 0
    %s13 = scalar_lea.sflag [#allocation5], 1
    %14 = vsyncpa %s13, 0
    loop: start=0, step=1, limit=4
    $region2: #{tpu_custom_call.1} parent=1 // loop_pre_header
      _
    $region3: #{tpu_custom_call.1} parent=1 // loop_header
      %s16 = sphi 0, %s20
      %p17 = scmp.ge.s32.totalorder %s16, 4
      %s26 = sphi 0, %s28
      %s29 = sphi 0, %s26
      %s30 = sphi 0, %s29
      %s46 = sphi 0, %s30
      %s50 = sphi 0, %s50
      %s52 = sphi 0, %s50
      %s53 = sphi 0, %s52
      %s67 = sphi 0, %s53
      %s71 = sphi 0, %s71
      %s73 = sphi 0, %s71
      %s74 = sphi 0, %s73
      %s88 = sphi 0, %s74
      %s94 = sphi 0, %s96
      %s97 = sphi 0, %s94
      %s98 = sphi 0, %s97
      %s114 = sphi 0, %s98
    $region4: #{tpu_custom_call.1} parent=1 // loop_header_branch
      %19 = sbr.rel (%p17) target = $region8
    $region5: #{tpu_custom_call.1} parent=1 // loop_body
      %s21 = ssub.s32 %s16, 1
      %s22 = ssub.s32 %s16, 2
      %s23 = sadd.s32 %s16, 1
      %s24 = ssub.s32 %s16, %s23
      %p25 = scmp.eq.s32.totalorder %s24, 0
      %s27 = sadd.s32 %s26, 1
      %s28 = scalar_select %p25, %s26, %s27
      %p31 = pneg %p25
      %p32 = scmp.eq.s32.totalorder %s16, 1
      %p33 = por %p31, %p32
      %p34 = scmp.ne.s32.totalorder %s26, %s29
      %p35 = scmp.eq.s32.totalorder %s16, 0
      %p36 = por %p34, %p35
      %p37 = scmp.ne.s32.totalorder %s26, %s29
      %p38 = scmp.eq.s32.totalorder %s21, 1
      %p39 = por %p37, %p38
      %p40 = scmp.ne.s32.totalorder %s29, %s30
      %p41 = scmp.eq.s32.totalorder %s21, 0
      %p42 = por %p40, %p41
      %p43 = scmp.ne.s32.totalorder %s29, %s30
      %p44 = scmp.eq.s32.totalorder %s22, 1
      %p45 = por %p43, %p44
      %p47 = scmp.ne.s32.totalorder %s30, %s46
      %p48 = scmp.eq.s32.totalorder %s22, 0
      %p49 = por %p47, %p48
      %s51 = sadd.s32 %s50, 1
      %p54 = scmp.eq.s32.totalorder %s16, 1
      %p55 = scmp.ne.s32.totalorder %s50, %s52
      %p56 = scmp.eq.s32.totalorder %s16, 0
      %p57 = por %p55, %p56
      %p58 = scmp.ne.s32.totalorder %s50, %s52
      %p59 = scmp.eq.s32.totalorder %s21, 1
      %p60 = por %p58, %p59
      %p61 = scmp.ne.s32.totalorder %s52, %s53
      %p62 = scmp.eq.s32.totalorder %s21, 0
      %p63 = por %p61, %p62
      %p64 = scmp.ne.s32.totalorder %s52, %s53
      %p65 = scmp.eq.s32.totalorder %s22, 1
      %p66 = por %p64, %p65
      %p68 = scmp.ne.s32.totalorder %s53, %s67
      %p69 = scmp.eq.s32.totalorder %s22, 0
      %p70 = por %p68, %p69
      %s72 = sadd.s32 %s71, 1
      %p75 = scmp.eq.s32.totalorder %s16, 1
      %p76 = scmp.ne.s32.totalorder %s71, %s73
      %p77 = scmp.eq.s32.totalorder %s16, 0
      %p78 = por %p76, %p77
      %p79 = scmp.ne.s32.totalorder %s71, %s73
      %p80 = scmp.eq.s32.totalorder %s21, 1
      %p81 = por %p79, %p80
      %p82 = scmp.ne.s32.totalorder %s73, %s74
      %p83 = scmp.eq.s32.totalorder %s21, 0
      %p84 = por %p82, %p83
      %p85 = scmp.ne.s32.totalorder %s73, %s74
      %p86 = scmp.eq.s32.totalorder %s22, 1
      %p87 = por %p85, %p86
      %p89 = scmp.ne.s32.totalorder %s74, %s88
      %p90 = scmp.eq.s32.totalorder %s22, 0
      %p91 = por %p89, %p90
      %s92 = ssub.s32 %s16, %s23
      %p93 = scmp.eq.s32.totalorder %s92, 0
      %s95 = sadd.s32 %s94, 1
      %s96 = scalar_select %p93, %s94, %s95
      %p99 = pneg %p93
      %p100 = scmp.eq.s32.totalorder %s16, 1
      %p101 = por %p99, %p100
      %p102 = scmp.ne.s32.totalorder %s94, %s97
      %p103 = scmp.eq.s32.totalorder %s16, 0
      %p104 = por %p102, %p103
      %p105 = scmp.ne.s32.totalorder %s94, %s97
      %p106 = scmp.eq.s32.totalorder %s21, 1
      %p107 = por %p105, %p106
      %p108 = scmp.ne.s32.totalorder %s97, %s98
      %p109 = scmp.eq.s32.totalorder %s21, 0
      %p110 = por %p108, %p109
      %p111 = scmp.ne.s32.totalorder %s97, %s98
      %p112 = scmp.eq.s32.totalorder %s22, 1
      %p113 = por %p111, %p112
      %p115 = scmp.ne.s32.totalorder %s98, %s114
      %p116 = scmp.eq.s32.totalorder %s22, 0
      %p117 = por %p115, %p116
      %p118 = scmp.le.s32.totalorder 1, %s16
      %p119 = scmp.lt.s32.totalorder %s16, 3
      %p120 = pnand %p118, %p119
      %p121 = pneg %p120
      // Predicated region
      $region9: #{tpu_custom_call.1} parent=5 // pred_check
        _
      $region10: #{tpu_custom_call.1} parent=5 // pred_check_branch
        %123 = sbr.rel (%p120) target = $region12
      $region11: #{tpu_custom_call.1} parent=5 // pred_region
        %s124 = ssub.s32 %s16, 1
        // Predicated region
        $region13: #{tpu_custom_call.1} parent=11 // pred_check
          %p125 = pneg %p63
        $region14: #{tpu_custom_call.1} parent=11 // pred_check_branch
          %127 = sbr.rel (%p125) target = $region16
        $region15: #{tpu_custom_call.1} parent=11 // pred_region
          %s129 = ssub.s32 73728, 73728
          %130 = vsyncadd [#allocation7], %s129
          %s131 = sshll.u32 [#allocation6], 4
          %s132 = int_to_ptr.vmem [resolvable:$true] %s131
          %137 = dma.hbm_to_vmem [thread:$0]  %s1, 73728, %s132, [#allocation7], 256, 256, 16
        $region16: #{tpu_custom_call.1} parent=11 // pred_fallthru
          _
        // Predicated region
        $region17: #{tpu_custom_call.1} parent=11 // pred_check
          %p138 = pneg %p84
        $region18: #{tpu_custom_call.1} parent=11 // pred_check_branch
          %140 = sbr.rel (%p138) target = $region20
        $region19: #{tpu_custom_call.1} parent=11 // pred_region
          %s142 = ssub.s32 512, 512
          %143 = vsyncadd [#allocation7], %s142
          %s145 = sshll.u32 [#allocation8], 4
          %s146 = int_to_ptr.vmem [resolvable:$true] %s145
          %148 = dma.hbm_to_vmem [thread:$0]  %s2, 512, %s146, [#allocation7]
        $region20: #{tpu_custom_call.1} parent=11 // pred_fallthru
          _
      $region12: #{tpu_custom_call.1} parent=5 // pred_fallthru
        _
      %p149 = scmp.lt.s32.totalorder %s16, 2
      // Predicated region
      $region21: #{tpu_custom_call.1} parent=5 // pred_check
        %p150 = pneg %p149
      $region22: #{tpu_custom_call.1} parent=5 // pred_check_branch
        %152 = sbr.rel (%p150) target = $region24
      $region23: #{tpu_custom_call.1} parent=5 // pred_region
        // Predicated region
        $region25: #{tpu_custom_call.1} parent=23 // pred_check
          %p153 = pneg %p36
        $region26: #{tpu_custom_call.1} parent=23 // pred_check_branch
          %155 = sbr.rel (%p153) target = $region28
        $region27: #{tpu_custom_call.1} parent=23 // pred_region
          %s156 = sand.u32 %s26, 1
          %s157 = scalar_lea.sflag [#allocation4], %s156
          %s158 = sand.u32 %s26, 1
          %s159 = smul.addr %s158, 32
          %s160 = scalar_lea.vmem [#allocation3], %s159
          %s162 = ssub.s32 512, 512
          %163 = vsyncadd %s157, %s162
          %s164 = smul.addr %s16, 4
          %s165 = smul.addr %s164, 128
          %s166 = scalar_lea.hbm %s0, %s165
          %s168 = sshll.u32 %s160, 4
          %s169 = int_to_ptr.vmem [resolvable:$true] %s168
          %171 = dma.hbm_to_vmem [thread:$0]  %s166, 512, %s169, %s157
        $region28: #{tpu_custom_call.1} parent=23 // pred_fallthru
          _
      $region24: #{tpu_custom_call.1} parent=5 // pred_fallthru
        _
      %p172 = scmp.le.s32.totalorder 1, %s16
      %p173 = scmp.lt.s32.totalorder %s16, 3
      %p174 = pnand %p172, %p173
      %p175 = pneg %p174
      // Predicated region
      $region29: #{tpu_custom_call.1} parent=5 // pred_check
        _
      $region30: #{tpu_custom_call.1} parent=5 // pred_check_branch
        %177 = sbr.rel (%p174) target = $region32
      $region31: #{tpu_custom_call.1} parent=5 // pred_region
        %s178 = ssub.s32 %s16, 1
        %s179 = sand.u32 %s29, 1
        %s180 = scalar_lea.sflag [#allocation4], %s179
        %s181 = sand.u32 %s29, 1
        %s182 = smul.addr %s181, 32
        %s183 = scalar_lea.vmem [#allocation3], %s182
        // Predicated region
        $region33: #{tpu_custom_call.1} parent=31 // pred_check
          %p184 = pneg %p42
        $region34: #{tpu_custom_call.1} parent=31 // pred_check_branch
          %186 = sbr.rel (%p184) target = $region36
        $region35: #{tpu_custom_call.1} parent=31 // pred_region
          %187 = dma.done %s180, 512
        $region36: #{tpu_custom_call.1} parent=31 // pred_fallthru
          _
        // Predicated region
        $region37: #{tpu_custom_call.1} parent=31 // pred_check
          %p188 = pneg %p63
        $region38: #{tpu_custom_call.1} parent=31 // pred_check_branch
          %190 = sbr.rel (%p188) target = $region40
        $region39: #{tpu_custom_call.1} parent=31 // pred_region
          %191 = dma.done [#allocation7], 73728
        $region40: #{tpu_custom_call.1} parent=31 // pred_fallthru
          _
        // Predicated region
        $region41: #{tpu_custom_call.1} parent=31 // pred_check
          %p192 = pneg %p84
        $region42: #{tpu_custom_call.1} parent=31 // pred_check_branch
          %194 = sbr.rel (%p192) target = $region44
        $region43: #{tpu_custom_call.1} parent=31 // pred_region
          %195 = dma.done [#allocation7], 512
        $region44: #{tpu_custom_call.1} parent=31 // pred_fallthru
          _
        %s196 = sand.u32 %s29, 1
        %s197 = scalar_lea.sflag [#allocation4], %s196
        %s198 = sand.u32 %s29, 1
        %s199 = smul.addr %s198, 32
        %s200 = scalar_lea.vmem [#allocation3], %s199
        %p201 = pneg %p42
        %p202 = pneg %p39
        %p203 = pneg %p63
        %p204 = pneg %p60
        %p205 = pneg %p84
        %p206 = pneg %p81
        %p207 = pneg %p110
        %p208 = pneg %p107
        %s209 = sand.u32 %s97, 1
        %s210 = scalar_lea.sflag [#allocation5], %s209
        %s211 = sand.u32 %s97, 1
        %s212 = smul.addr %s211, 32
        %s213 = scalar_lea.vmem [#allocation9], %s212
        %v215 = vld [vmem:[%s183] sm:$0xff]
        %v216 = vld [vmem:[%s183 + $0x8] sm:$0xff]
        %v217 = vld [vmem:[%s183 + $0x10] sm:$0xff]
        %v218 = vld [vmem:[%s183 + $0x18] sm:$0xff]
        %vm219 = vcmask 1040384
        %vm220 = vsmask.f32 256
        %vm221 = vmand %vm219, %vm220
        %vm222 = vcmask 1044484
        %vm223 = vsmask.f32 4352
        %vm224 = vmand %vm222, %vm223
        %vm225 = vmor %vm224, %vm221
        %v226 = vld [vmem:[#allocation2] sm:$0x11]
        %v227 = vsel %vm225, 0, %v226
        %228 = vst [vmem:[#allocation2] sm:$0x11] %v227
        %v229 = vld [vmem:[#allocation2 + $0x8] sm:$0x11]
        %v230 = vsel %vm225, 0, %v229
        %231 = vst [vmem:[#allocation2 + $0x8] sm:$0x11] %v230
        %v232 = vld [vmem:[#allocation2 + $0x10] sm:$0x11]
        %v233 = vsel %vm225, 0, %v232
        %234 = vst [vmem:[#allocation2 + $0x10] sm:$0x11] %v233
        %vm235 = vsmask.f32 7938
        %vm236 = vmand %vm219, %vm235
        %vm237 = vsmask.f32 7954
        %vm238 = vmand %vm222, %vm237
        %vm239 = vmor %vm238, %vm236
        %v240 = vld [vmem:[#allocation2 + $0x18] sm:$0x11]
        %v241 = vsel %vm239, 0, %v240
        %242 = vst [vmem:[#allocation2 + $0x18] sm:$0x11] %v241
        %v243 = vld [vmem:[#allocation2 + $0x20] sm:$0x11]
        %v244 = vsel %vm239, 0, %v243
        %245 = vst [vmem:[#allocation2 + $0x20] sm:$0x11] %v244
        %v246 = vld [vmem:[#allocation2 + $0x28] sm:$0x11]
        %v247 = vsel %vm239, 0, %v246
        %248 = vst [vmem:[#allocation2 + $0x28] sm:$0x11] %v247
        %249 = vst [vmem:[#allocation2] sm:$0xf] 0
        %250 = vst [vmem:[#allocation2 + $0x18] sm:$0x1] 0
        %251 = vst [vmem:[#allocation2 + $0x14] sm:$0xf] 0
        %252 = vst [vmem:[#allocation2 + $0x2c] sm:$0x1] 0
        %v253 = vpack.c.bf16 %v215, %v215
        %v254 = vpack.c.bf16 %v216, %v216
        %v255 = vpack.c.bf16 %v217, %v217
        %v256 = vpack.c.bf16 %v218, %v218
        %v261 = vunpack.c.l.b16 %v253
        %v262 = vunpack.c.l.b16 %v254
        %v263 = vunpack.c.l.b16 %v255
        %v264 = vunpack.c.l.b16 %v256
        %v265 = vpack.c.b16 %v262, %v261
        %v266 = vpack.c.b16 %v264, %v263
        %v268 = vshrl.u32 %v265, 16
        %v270 = vrot.slane %v268, 7
        %v271 = vshll.u32 %v265, 16
        %v273 = vor.u32 %v270, %v271
        %v275 = vshrl.u32 %v266, 16
        %v277 = vrot.slane %v275, 7
        %v278 = vshll.u32 %v266, 16
        %v280 = vor.u32 %v277, %v278
        %v281 = vrot.slane %v270, 4
        %v282 = vrot.slane %v277, 4
        %vm287 = vcmask 1043456
        %vm288 = vmand %vm287, %vm235
        %vm289 = vcmask 1047556
        %vm290 = vmand %vm289, %vm237
        %vm291 = vmor %vm290, %vm288
        %v292 = vld [vmem:[#allocation2 + $0x4] sm:$0xff]
        %v293 = vsel %vm291, %v273, %v292
        %294 = vst [vmem:[#allocation2 + $0x4] sm:$0xff] %v293
        %v295 = vld [vmem:[#allocation2 + $0xc] sm:$0xff]
        %v296 = vsel %vm291, %v280, %v295
        %297 = vst [vmem:[#allocation2 + $0xc] sm:$0xff] %v296
        %v298 = vld [vmem:[#allocation2 + $0x1c] sm:$0x11]
        %v299 = vsel %vm225, %v281, %v298
        %300 = vst [vmem:[#allocation2 + $0x1c] sm:$0x11] %v299
        %v301 = vld [vmem:[#allocation2 + $0x24] sm:$0x11]
        %v302 = vsel %vm225, %v282, %v301
        %303 = vst [vmem:[#allocation2 + $0x24] sm:$0x11] %v302
        %v304 = vld [vmem:[#allocation2] sm:$0xff]
        %v305 = vld [vmem:[#allocation2 + $0x8] sm:$0xff]
        %v306 = vld [vmem:[#allocation2 + $0x10] sm:$0xff]
        %v307 = vld [vmem:[#allocation6] sm:$0xff]
        %v308 = vld [vmem:[#allocation6 + $0x8] sm:$0xff]
        %v309 = vld [vmem:[#allocation6 + $0x10] sm:$0xff]
        %v310 = vld [vmem:[#allocation6 + $0x18] sm:$0xff]
        %v311 = vld [vmem:[#allocation6 + $0x20] sm:$0xff]
        %v312 = vld [vmem:[#allocation6 + $0x28] sm:$0xff]
        %v313 = vld [vmem:[#allocation6 + $0x30] sm:$0xff]
        %v314 = vld [vmem:[#allocation6 + $0x38] sm:$0xff]
        %v315 = vld [vmem:[#allocation6 + $0x40] sm:$0xff]
        %v316 = vld [vmem:[#allocation6 + $0x48] sm:$0xff]
        %v317 = vld [vmem:[#allocation6 + $0x50] sm:$0xff]
        %v318 = vld [vmem:[#allocation6 + $0x58] sm:$0xff]
        %v319 = vld [vmem:[#allocation6 + $0x60] sm:$0xff]
        %v320 = vld [vmem:[#allocation6 + $0x68] sm:$0xff]
        %v321 = vld [vmem:[#allocation6 + $0x70] sm:$0xff]
        %v322 = vld [vmem:[#allocation6 + $0x78] sm:$0xff]
        %v323 = vld [vmem:[#allocation6 + $0x80] sm:$0xff]
        %v324 = vld [vmem:[#allocation6 + $0x88] sm:$0xff]
        %v325 = vld [vmem:[#allocation6 + $0x90] sm:$0xff]
        %v326 = vld [vmem:[#allocation6 + $0x98] sm:$0xff]
        %v327 = vld [vmem:[#allocation6 + $0xa0] sm:$0xff]
        %v328 = vld [vmem:[#allocation6 + $0xa8] sm:$0xff]
        %v329 = vld [vmem:[#allocation6 + $0xb0] sm:$0xff]
        %v330 = vld [vmem:[#allocation6 + $0xb8] sm:$0xff]
        %v331 = vld [vmem:[#allocation6 + $0xc0] sm:$0xff]
        %v332 = vld [vmem:[#allocation6 + $0xc8] sm:$0xff]
        %v333 = vld [vmem:[#allocation6 + $0xd0] sm:$0xff]
        %v334 = vld [vmem:[#allocation6 + $0xd8] sm:$0xff]
        %v335 = vld [vmem:[#allocation6 + $0xe0] sm:$0xff]
        %v336 = vld [vmem:[#allocation6 + $0xe8] sm:$0xff]
        %v337 = vld [vmem:[#allocation6 + $0xf0] sm:$0xff]
        %v338 = vld [vmem:[#allocation6 + $0xf8] sm:$0xff]
        %v339 = vld [vmem:[#allocation6 + $0x100] sm:$0xff]
        %v340 = vld [vmem:[#allocation6 + $0x108] sm:$0xff]
        %v341 = vld [vmem:[#allocation6 + $0x110] sm:$0xff]
        %v342 = vld [vmem:[#allocation6 + $0x118] sm:$0xff]
        %v343 = vld [vmem:[#allocation6 + $0x120] sm:$0xff]
        %v344 = vld [vmem:[#allocation6 + $0x128] sm:$0xff]
        %v345 = vld [vmem:[#allocation6 + $0x130] sm:$0xff]
        %v346 = vld [vmem:[#allocation6 + $0x138] sm:$0xff]
        %v347 = vld [vmem:[#allocation6 + $0x140] sm:$0xff]
        %v348 = vld [vmem:[#allocation6 + $0x148] sm:$0xff]
        %v349 = vld [vmem:[#allocation6 + $0x150] sm:$0xff]
        %v350 = vld [vmem:[#allocation6 + $0x158] sm:$0xff]
        %v351 = vld [vmem:[#allocation6 + $0x160] sm:$0xff]
        %v352 = vld [vmem:[#allocation6 + $0x168] sm:$0xff]
        %v353 = vld [vmem:[#allocation6 + $0x170] sm:$0xff]
        %v354 = vld [vmem:[#allocation6 + $0x178] sm:$0xff]
        %v355 = vld [vmem:[#allocation6 + $0x180] sm:$0xff]
        %v356 = vld [vmem:[#allocation6 + $0x188] sm:$0xff]
        %v357 = vld [vmem:[#allocation6 + $0x190] sm:$0xff]
        %v358 = vld [vmem:[#allocation6 + $0x198] sm:$0xff]
        %v359 = vld [vmem:[#allocation6 + $0x1a0] sm:$0xff]
        %v360 = vld [vmem:[#allocation6 + $0x1a8] sm:$0xff]
        %v361 = vld [vmem:[#allocation6 + $0x1b0] sm:$0xff]
        %v362 = vld [vmem:[#allocation6 + $0x1b8] sm:$0xff]
        %v363 = vld [vmem:[#allocation6 + $0x1c0] sm:$0xff]
        %v364 = vld [vmem:[#allocation6 + $0x1c8] sm:$0xff]
        %v365 = vld [vmem:[#allocation6 + $0x1d0] sm:$0xff]
        %v366 = vld [vmem:[#allocation6 + $0x1d8] sm:$0xff]
        %v367 = vld [vmem:[#allocation6 + $0x1e0] sm:$0xff]
        %v368 = vld [vmem:[#allocation6 + $0x1e8] sm:$0xff]
        %v369 = vld [vmem:[#allocation6 + $0x1f0] sm:$0xff]
        %v370 = vld [vmem:[#allocation6 + $0x1f8] sm:$0xff]
        %v371 = vld [vmem:[#allocation6 + $0x200] sm:$0xff]
        %v372 = vld [vmem:[#allocation6 + $0x208] sm:$0xff]
        %v373 = vld [vmem:[#allocation6 + $0x210] sm:$0xff]
        %v374 = vld [vmem:[#allocation6 + $0x218] sm:$0xff]
        %v375 = vld [vmem:[#allocation6 + $0x220] sm:$0xff]
        %v376 = vld [vmem:[#allocation6 + $0x228] sm:$0xff]
        %v377 = vld [vmem:[#allocation6 + $0x230] sm:$0xff]
        %v378 = vld [vmem:[#allocation6 + $0x238] sm:$0xff]
        %v379 = vld [vmem:[#allocation6 + $0x240] sm:$0xff]
        %v380 = vld [vmem:[#allocation6 + $0x248] sm:$0xff]
        %v381 = vld [vmem:[#allocation6 + $0x250] sm:$0xff]
        %v382 = vld [vmem:[#allocation6 + $0x258] sm:$0xff]
        %v383 = vld [vmem:[#allocation6 + $0x260] sm:$0xff]
        %v384 = vld [vmem:[#allocation6 + $0x268] sm:$0xff]
        %v385 = vld [vmem:[#allocation6 + $0x270] sm:$0xff]
        %v386 = vld [vmem:[#allocation6 + $0x278] sm:$0xff]
        %v387 = vld [vmem:[#allocation6 + $0x280] sm:$0xff]
        %v388 = vld [vmem:[#allocation6 + $0x288] sm:$0xff]
        %v389 = vld [vmem:[#allocation6 + $0x290] sm:$0xff]
        %v390 = vld [vmem:[#allocation6 + $0x298] sm:$0xff]
        %v391 = vld [vmem:[#allocation6 + $0x2a0] sm:$0xff]
        %v392 = vld [vmem:[#allocation6 + $0x2a8] sm:$0xff]
        %v393 = vld [vmem:[#allocation6 + $0x2b0] sm:$0xff]
        %v394 = vld [vmem:[#allocation6 + $0x2b8] sm:$0xff]
        %v395 = vld [vmem:[#allocation6 + $0x2c0] sm:$0xff]
        %v396 = vld [vmem:[#allocation6 + $0x2c8] sm:$0xff]
        %v397 = vld [vmem:[#allocation6 + $0x2d0] sm:$0xff]
        %v398 = vld [vmem:[#allocation6 + $0x2d8] sm:$0xff]
        %v399 = vld [vmem:[#allocation6 + $0x2e0] sm:$0xff]
        %v400 = vld [vmem:[#allocation6 + $0x2e8] sm:$0xff]
        %v401 = vld [vmem:[#allocation6 + $0x2f0] sm:$0xff]
        %v402 = vld [vmem:[#allocation6 + $0x2f8] sm:$0xff]
        %v403 = vld [vmem:[#allocation6 + $0x300] sm:$0xff]
        %v404 = vld [vmem:[#allocation6 + $0x308] sm:$0xff]
        %v405 = vld [vmem:[#allocation6 + $0x310] sm:$0xff]
        %v406 = vld [vmem:[#allocation6 + $0x318] sm:$0xff]
        %v407 = vld [vmem:[#allocation6 + $0x320] sm:$0xff]
        %v408 = vld [vmem:[#allocation6 + $0x328] sm:$0xff]
        %v409 = vld [vmem:[#allocation6 + $0x330] sm:$0xff]
        %v410 = vld [vmem:[#allocation6 + $0x338] sm:$0xff]
        %v411 = vld [vmem:[#allocation6 + $0x340] sm:$0xff]
        %v412 = vld [vmem:[#allocation6 + $0x348] sm:$0xff]
        %v413 = vld [vmem:[#allocation6 + $0x350] sm:$0xff]
        %v414 = vld [vmem:[#allocation6 + $0x358] sm:$0xff]
        %v415 = vld [vmem:[#allocation6 + $0x360] sm:$0xff]
        %v416 = vld [vmem:[#allocation6 + $0x368] sm:$0xff]
        %v417 = vld [vmem:[#allocation6 + $0x370] sm:$0xff]
        %v418 = vld [vmem:[#allocation6 + $0x378] sm:$0xff]
        %v419 = vld [vmem:[#allocation6 + $0x380] sm:$0xff]
        %v420 = vld [vmem:[#allocation6 + $0x388] sm:$0xff]
        %v421 = vld [vmem:[#allocation6 + $0x390] sm:$0xff]
        %v422 = vld [vmem:[#allocation6 + $0x398] sm:$0xff]
        %v423 = vld [vmem:[#allocation6 + $0x3a0] sm:$0xff]
        %v424 = vld [vmem:[#allocation6 + $0x3a8] sm:$0xff]
        %v425 = vld [vmem:[#allocation6 + $0x3b0] sm:$0xff]
        %v426 = vld [vmem:[#allocation6 + $0x3b8] sm:$0xff]
        %v427 = vld [vmem:[#allocation6 + $0x3c0] sm:$0xff]
        %v428 = vld [vmem:[#allocation6 + $0x3c8] sm:$0xff]
        %v429 = vld [vmem:[#allocation6 + $0x3d0] sm:$0xff]
        %v430 = vld [vmem:[#allocation6 + $0x3d8] sm:$0xff]
        %v431 = vld [vmem:[#allocation6 + $0x3e0] sm:$0xff]
        %v432 = vld [vmem:[#allocation6 + $0x3e8] sm:$0xff]
        %v433 = vld [vmem:[#allocation6 + $0x3f0] sm:$0xff]
        %v434 = vld [vmem:[#allocation6 + $0x3f8] sm:$0xff]
        %v435 = vld [vmem:[#allocation6 + $0x400] sm:$0xff]
        %v436 = vld [vmem:[#allocation6 + $0x408] sm:$0xff]
        %v437 = vld [vmem:[#allocation6 + $0x410] sm:$0xff]
        %v438 = vld [vmem:[#allocation6 + $0x418] sm:$0xff]
        %v439 = vld [vmem:[#allocation6 + $0x420] sm:$0xff]
        %v440 = vld [vmem:[#allocation6 + $0x428] sm:$0xff]
        %v441 = vld [vmem:[#allocation6 + $0x430] sm:$0xff]
        %v442 = vld [vmem:[#allocation6 + $0x438] sm:$0xff]
        %v443 = vld [vmem:[#allocation6 + $0x440] sm:$0xff]
        %v444 = vld [vmem:[#allocation6 + $0x448] sm:$0xff]
        %v445 = vld [vmem:[#allocation6 + $0x450] sm:$0xff]
        %v446 = vld [vmem:[#allocation6 + $0x458] sm:$0xff]
        %v447 = vld [vmem:[#allocation6 + $0x460] sm:$0xff]
        %v448 = vld [vmem:[#allocation6 + $0x468] sm:$0xff]
        %v449 = vld [vmem:[#allocation6 + $0x470] sm:$0xff]
        %v450 = vld [vmem:[#allocation6 + $0x478] sm:$0xff]
        %v451 = vld [vmem:[#allocation6 + $0x480] sm:$0xff]
        %v452 = vld [vmem:[#allocation6 + $0x488] sm:$0xff]
        %v453 = vld [vmem:[#allocation6 + $0x490] sm:$0xff]
        %v454 = vld [vmem:[#allocation6 + $0x498] sm:$0xff]
        %v455 = vld [vmem:[#allocation6 + $0x4a0] sm:$0xff]
        %v456 = vld [vmem:[#allocation6 + $0x4a8] sm:$0xff]
        %v457 = vld [vmem:[#allocation6 + $0x4b0] sm:$0xff]
        %v458 = vld [vmem:[#allocation6 + $0x4b8] sm:$0xff]
        %v459 = vld [vmem:[#allocation6 + $0x4c0] sm:$0xff]
        %v460 = vld [vmem:[#allocation6 + $0x4c8] sm:$0xff]
        %v461 = vld [vmem:[#allocation6 + $0x4d0] sm:$0xff]
        %v462 = vld [vmem:[#allocation6 + $0x4d8] sm:$0xff]
        %v463 = vld [vmem:[#allocation6 + $0x4e0] sm:$0xff]
        %v464 = vld [vmem:[#allocation6 + $0x4e8] sm:$0xff]
        %v465 = vld [vmem:[#allocation6 + $0x4f0] sm:$0xff]
        %v466 = vld [vmem:[#allocation6 + $0x4f8] sm:$0xff]
        %v467 = vld [vmem:[#allocation6 + $0x500] sm:$0xff]
        %v468 = vld [vmem:[#allocation6 + $0x508] sm:$0xff]
        %v469 = vld [vmem:[#allocation6 + $0x510] sm:$0xff]
        %v470 = vld [vmem:[#allocation6 + $0x518] sm:$0xff]
        %v471 = vld [vmem:[#allocation6 + $0x520] sm:$0xff]
        %v472 = vld [vmem:[#allocation6 + $0x528] sm:$0xff]
        %v473 = vld [vmem:[#allocation6 + $0x530] sm:$0xff]
        %v474 = vld [vmem:[#allocation6 + $0x538] sm:$0xff]
        %v475 = vld [vmem:[#allocation6 + $0x540] sm:$0xff]
        %v476 = vld [vmem:[#allocation6 + $0x548] sm:$0xff]
        %v477 = vld [vmem:[#allocation6 + $0x550] sm:$0xff]
        %v478 = vld [vmem:[#allocation6 + $0x558] sm:$0xff]
        %v479 = vld [vmem:[#allocation6 + $0x560] sm:$0xff]
        %v480 = vld [vmem:[#allocation6 + $0x568] sm:$0xff]
        %v481 = vld [vmem:[#allocation6 + $0x570] sm:$0xff]
        %v482 = vld [vmem:[#allocation6 + $0x578] sm:$0xff]
        %v483 = vld [vmem:[#allocation6 + $0x580] sm:$0xff]
        %v484 = vld [vmem:[#allocation6 + $0x588] sm:$0xff]
        %v485 = vld [vmem:[#allocation6 + $0x590] sm:$0xff]
        %v486 = vld [vmem:[#allocation6 + $0x598] sm:$0xff]
        %v487 = vld [vmem:[#allocation6 + $0x5a0] sm:$0xff]
        %v488 = vld [vmem:[#allocation6 + $0x5a8] sm:$0xff]
        %v489 = vld [vmem:[#allocation6 + $0x5b0] sm:$0xff]
        %v490 = vld [vmem:[#allocation6 + $0x5b8] sm:$0xff]
        %v491 = vld [vmem:[#allocation6 + $0x5c0] sm:$0xff]
        %v492 = vld [vmem:[#allocation6 + $0x5c8] sm:$0xff]
        %v493 = vld [vmem:[#allocation6 + $0x5d0] sm:$0xff]
        %v494 = vld [vmem:[#allocation6 + $0x5d8] sm:$0xff]
        %v495 = vld [vmem:[#allocation6 + $0x5e0] sm:$0xff]
        %v496 = vld [vmem:[#allocation6 + $0x5e8] sm:$0xff]
        %v497 = vld [vmem:[#allocation6 + $0x5f0] sm:$0xff]
        %v498 = vld [vmem:[#allocation6 + $0x5f8] sm:$0xff]
        %v499 = vld [vmem:[#allocation2 + $0x18] sm:$0x11]
        %v500 = vld [vmem:[#allocation2 + $0x20] sm:$0x11]
        %v501 = vld [vmem:[#allocation2 + $0x28] sm:$0x11]
        %s502 = scalar_lea.vmem [#allocation6], 1536
        %v503 = vld [vmem:[%s502] sm:$0xff]
        %v504 = vld [vmem:[%s502 + $0x8] sm:$0xff]
        %v505 = vld [vmem:[%s502 + $0x10] sm:$0xff]
        %v506 = vld [vmem:[%s502 + $0x18] sm:$0xff]
        %v507 = vld [vmem:[%s502 + $0x20] sm:$0xff]
        %v508 = vld [vmem:[%s502 + $0x28] sm:$0xff]
        %v509 = vld [vmem:[%s502 + $0x30] sm:$0xff]
        %v510 = vld [vmem:[%s502 + $0x38] sm:$0xff]
        %v511 = vld [vmem:[%s502 + $0x40] sm:$0xff]
        %v512 = vld [vmem:[%s502 + $0x48] sm:$0xff]
        %v513 = vld [vmem:[%s502 + $0x50] sm:$0xff]
        %v514 = vld [vmem:[%s502 + $0x58] sm:$0xff]
        %v515 = vld [vmem:[%s502 + $0x60] sm:$0xff]
        %v516 = vld [vmem:[%s502 + $0x68] sm:$0xff]
        %v517 = vld [vmem:[%s502 + $0x70] sm:$0xff]
        %v518 = vld [vmem:[%s502 + $0x78] sm:$0xff]
        %v519 = vld [vmem:[%s502 + $0x80] sm:$0xff]
        %v520 = vld [vmem:[%s502 + $0x88] sm:$0xff]
        %v521 = vld [vmem:[%s502 + $0x90] sm:$0xff]
        %v522 = vld [vmem:[%s502 + $0x98] sm:$0xff]
        %v523 = vld [vmem:[%s502 + $0xa0] sm:$0xff]
        %v524 = vld [vmem:[%s502 + $0xa8] sm:$0xff]
        %v525 = vld [vmem:[%s502 + $0xb0] sm:$0xff]
        %v526 = vld [vmem:[%s502 + $0xb8] sm:$0xff]
        %v527 = vld [vmem:[%s502 + $0xc0] sm:$0xff]
        %v528 = vld [vmem:[%s502 + $0xc8] sm:$0xff]
        %v529 = vld [vmem:[%s502 + $0xd0] sm:$0xff]
        %v530 = vld [vmem:[%s502 + $0xd8] sm:$0xff]
        %v531 = vld [vmem:[%s502 + $0xe0] sm:$0xff]
        %v532 = vld [vmem:[%s502 + $0xe8] sm:$0xff]
        %v533 = vld [vmem:[%s502 + $0xf0] sm:$0xff]
        %v534 = vld [vmem:[%s502 + $0xf8] sm:$0xff]
        %v535 = vld [vmem:[%s502 + $0x100] sm:$0xff]
        %v536 = vld [vmem:[%s502 + $0x108] sm:$0xff]
        %v537 = vld [vmem:[%s502 + $0x110] sm:$0xff]
        %v538 = vld [vmem:[%s502 + $0x118] sm:$0xff]
        %v539 = vld [vmem:[%s502 + $0x120] sm:$0xff]
        %v540 = vld [vmem:[%s502 + $0x128] sm:$0xff]
        %v541 = vld [vmem:[%s502 + $0x130] sm:$0xff]
        %v542 = vld [vmem:[%s502 + $0x138] sm:$0xff]
        %v543 = vld [vmem:[%s502 + $0x140] sm:$0xff]
        %v544 = vld [vmem:[%s502 + $0x148] sm:$0xff]
        %v545 = vld [vmem:[%s502 + $0x150] sm:$0xff]
        %v546 = vld [vmem:[%s502 + $0x158] sm:$0xff]
        %v547 = vld [vmem:[%s502 + $0x160] sm:$0xff]
        %v548 = vld [vmem:[%s502 + $0x168] sm:$0xff]
        %v549 = vld [vmem:[%s502 + $0x170] sm:$0xff]
        %v550 = vld [vmem:[%s502 + $0x178] sm:$0xff]
        %v551 = vld [vmem:[%s502 + $0x180] sm:$0xff]
        %v552 = vld [vmem:[%s502 + $0x188] sm:$0xff]
        %v553 = vld [vmem:[%s502 + $0x190] sm:$0xff]
        %v554 = vld [vmem:[%s502 + $0x198] sm:$0xff]
        %v555 = vld [vmem:[%s502 + $0x1a0] sm:$0xff]
        %v556 = vld [vmem:[%s502 + $0x1a8] sm:$0xff]
        %v557 = vld [vmem:[%s502 + $0x1b0] sm:$0xff]
        %v558 = vld [vmem:[%s502 + $0x1b8] sm:$0xff]
        %v559 = vld [vmem:[%s502 + $0x1c0] sm:$0xff]
        %v560 = vld [vmem:[%s502 + $0x1c8] sm:$0xff]
        %v561 = vld [vmem:[%s502 + $0x1d0] sm:$0xff]
        %v562 = vld [vmem:[%s502 + $0x1d8] sm:$0xff]
        %v563 = vld [vmem:[%s502 + $0x1e0] sm:$0xff]
        %v564 = vld [vmem:[%s502 + $0x1e8] sm:$0xff]
        %v565 = vld [vmem:[%s502 + $0x1f0] sm:$0xff]
        %v566 = vld [vmem:[%s502 + $0x1f8] sm:$0xff]
        %v567 = vld [vmem:[%s502 + $0x200] sm:$0xff]
        %v568 = vld [vmem:[%s502 + $0x208] sm:$0xff]
        %v569 = vld [vmem:[%s502 + $0x210] sm:$0xff]
        %v570 = vld [vmem:[%s502 + $0x218] sm:$0xff]
        %v571 = vld [vmem:[%s502 + $0x220] sm:$0xff]
        %v572 = vld [vmem:[%s502 + $0x228] sm:$0xff]
        %v573 = vld [vmem:[%s502 + $0x230] sm:$0xff]
        %v574 = vld [vmem:[%s502 + $0x238] sm:$0xff]
        %v575 = vld [vmem:[%s502 + $0x240] sm:$0xff]
        %v576 = vld [vmem:[%s502 + $0x248] sm:$0xff]
        %v577 = vld [vmem:[%s502 + $0x250] sm:$0xff]
        %v578 = vld [vmem:[%s502 + $0x258] sm:$0xff]
        %v579 = vld [vmem:[%s502 + $0x260] sm:$0xff]
        %v580 = vld [vmem:[%s502 + $0x268] sm:$0xff]
        %v581 = vld [vmem:[%s502 + $0x270] sm:$0xff]
        %v582 = vld [vmem:[%s502 + $0x278] sm:$0xff]
        %v583 = vld [vmem:[%s502 + $0x280] sm:$0xff]
        %v584 = vld [vmem:[%s502 + $0x288] sm:$0xff]
        %v585 = vld [vmem:[%s502 + $0x290] sm:$0xff]
        %v586 = vld [vmem:[%s502 + $0x298] sm:$0xff]
        %v587 = vld [vmem:[%s502 + $0x2a0] sm:$0xff]
        %v588 = vld [vmem:[%s502 + $0x2a8] sm:$0xff]
        %v589 = vld [vmem:[%s502 + $0x2b0] sm:$0xff]
        %v590 = vld [vmem:[%s502 + $0x2b8] sm:$0xff]
        %v591 = vld [vmem:[%s502 + $0x2c0] sm:$0xff]
        %v592 = vld [vmem:[%s502 + $0x2c8] sm:$0xff]
        %v593 = vld [vmem:[%s502 + $0x2d0] sm:$0xff]
        %v594 = vld [vmem:[%s502 + $0x2d8] sm:$0xff]
        %v595 = vld [vmem:[%s502 + $0x2e0] sm:$0xff]
        %v596 = vld [vmem:[%s502 + $0x2e8] sm:$0xff]
        %v597 = vld [vmem:[%s502 + $0x2f0] sm:$0xff]
        %v598 = vld [vmem:[%s502 + $0x2f8] sm:$0xff]
        %v599 = vld [vmem:[%s502 + $0x300] sm:$0xff]
        %v600 = vld [vmem:[%s502 + $0x308] sm:$0xff]
        %v601 = vld [vmem:[%s502 + $0x310] sm:$0xff]
        %v602 = vld [vmem:[%s502 + $0x318] sm:$0xff]
        %v603 = vld [vmem:[%s502 + $0x320] sm:$0xff]
        %v604 = vld [vmem:[%s502 + $0x328] sm:$0xff]
        %v605 = vld [vmem:[%s502 + $0x330] sm:$0xff]
        %v606 = vld [vmem:[%s502 + $0x338] sm:$0xff]
        %v607 = vld [vmem:[%s502 + $0x340] sm:$0xff]
        %v608 = vld [vmem:[%s502 + $0x348] sm:$0xff]
        %v609 = vld [vmem:[%s502 + $0x350] sm:$0xff]
        %v610 = vld [vmem:[%s502 + $0x358] sm:$0xff]
        %v611 = vld [vmem:[%s502 + $0x360] sm:$0xff]
        %v612 = vld [vmem:[%s502 + $0x368] sm:$0xff]
        %v613 = vld [vmem:[%s502 + $0x370] sm:$0xff]
        %v614 = vld [vmem:[%s502 + $0x378] sm:$0xff]
        %v615 = vld [vmem:[%s502 + $0x380] sm:$0xff]
        %v616 = vld [vmem:[%s502 + $0x388] sm:$0xff]
        %v617 = vld [vmem:[%s502 + $0x390] sm:$0xff]
        %v618 = vld [vmem:[%s502 + $0x398] sm:$0xff]
        %v619 = vld [vmem:[%s502 + $0x3a0] sm:$0xff]
        %v620 = vld [vmem:[%s502 + $0x3a8] sm:$0xff]
        %v621 = vld [vmem:[%s502 + $0x3b0] sm:$0xff]
        %v622 = vld [vmem:[%s502 + $0x3b8] sm:$0xff]
        %v623 = vld [vmem:[%s502 + $0x3c0] sm:$0xff]
        %v624 = vld [vmem:[%s502 + $0x3c8] sm:$0xff]
        %v625 = vld [vmem:[%s502 + $0x3d0] sm:$0xff]
        %v626 = vld [vmem:[%s502 + $0x3d8] sm:$0xff]
        %v627 = vld [vmem:[%s502 + $0x3e0] sm:$0xff]
        %v628 = vld [vmem:[%s502 + $0x3e8] sm:$0xff]
        %v629 = vld [vmem:[%s502 + $0x3f0] sm:$0xff]
        %v630 = vld [vmem:[%s502 + $0x3f8] sm:$0xff]
        %v631 = vld [vmem:[%s502 + $0x400] sm:$0xff]
        %v632 = vld [vmem:[%s502 + $0x408] sm:$0xff]
        %v633 = vld [vmem:[%s502 + $0x410] sm:$0xff]
        %v634 = vld [vmem:[%s502 + $0x418] sm:$0xff]
        %v635 = vld [vmem:[%s502 + $0x420] sm:$0xff]
        %v636 = vld [vmem:[%s502 + $0x428] sm:$0xff]
        %v637 = vld [vmem:[%s502 + $0x430] sm:$0xff]
        %v638 = vld [vmem:[%s502 + $0x438] sm:$0xff]
        %v639 = vld [vmem:[%s502 + $0x440] sm:$0xff]
        %v640 = vld [vmem:[%s502 + $0x448] sm:$0xff]
        %v641 = vld [vmem:[%s502 + $0x450] sm:$0xff]
        %v642 = vld [vmem:[%s502 + $0x458] sm:$0xff]
        %v643 = vld [vmem:[%s502 + $0x460] sm:$0xff]
        %v644 = vld [vmem:[%s502 + $0x468] sm:$0xff]
        %v645 = vld [vmem:[%s502 + $0x470] sm:$0xff]
        %v646 = vld [vmem:[%s502 + $0x478] sm:$0xff]
        %v647 = vld [vmem:[%s502 + $0x480] sm:$0xff]
        %v648 = vld [vmem:[%s502 + $0x488] sm:$0xff]
        %v649 = vld [vmem:[%s502 + $0x490] sm:$0xff]
        %v650 = vld [vmem:[%s502 + $0x498] sm:$0xff]
        %v651 = vld [vmem:[%s502 + $0x4a0] sm:$0xff]
        %v652 = vld [vmem:[%s502 + $0x4a8] sm:$0xff]
        %v653 = vld [vmem:[%s502 + $0x4b0] sm:$0xff]
        %v654 = vld [vmem:[%s502 + $0x4b8] sm:$0xff]
        %v655 = vld [vmem:[%s502 + $0x4c0] sm:$0xff]
        %v656 = vld [vmem:[%s502 + $0x4c8] sm:$0xff]
        %v657 = vld [vmem:[%s502 + $0x4d0] sm:$0xff]
        %v658 = vld [vmem:[%s502 + $0x4d8] sm:$0xff]
        %v659 = vld [vmem:[%s502 + $0x4e0] sm:$0xff]
        %v660 = vld [vmem:[%s502 + $0x4e8] sm:$0xff]
        %v661 = vld [vmem:[%s502 + $0x4f0] sm:$0xff]
        %v662 = vld [vmem:[%s502 + $0x4f8] sm:$0xff]
        %v663 = vld [vmem:[%s502 + $0x500] sm:$0xff]
        %v664 = vld [vmem:[%s502 + $0x508] sm:$0xff]
        %v665 = vld [vmem:[%s502 + $0x510] sm:$0xff]
        %v666 = vld [vmem:[%s502 + $0x518] sm:$0xff]
        %v667 = vld [vmem:[%s502 + $0x520] sm:$0xff]
        %v668 = vld [vmem:[%s502 + $0x528] sm:$0xff]
        %v669 = vld [vmem:[%s502 + $0x530] sm:$0xff]
        %v670 = vld [vmem:[%s502 + $0x538] sm:$0xff]
        %v671 = vld [vmem:[%s502 + $0x540] sm:$0xff]
        %v672 = vld [vmem:[%s502 + $0x548] sm:$0xff]
        %v673 = vld [vmem:[%s502 + $0x550] sm:$0xff]
        %v674 = vld [vmem:[%s502 + $0x558] sm:$0xff]
        %v675 = vld [vmem:[%s502 + $0x560] sm:$0xff]
        %v676 = vld [vmem:[%s502 + $0x568] sm:$0xff]
        %v677 = vld [vmem:[%s502 + $0x570] sm:$0xff]
        %v678 = vld [vmem:[%s502 + $0x578] sm:$0xff]
        %v679 = vld [vmem:[%s502 + $0x580] sm:$0xff]
        %v680 = vld [vmem:[%s502 + $0x588] sm:$0xff]
        %v681 = vld [vmem:[%s502 + $0x590] sm:$0xff]
        %v682 = vld [vmem:[%s502 + $0x598] sm:$0xff]
        %v683 = vld [vmem:[%s502 + $0x5a0] sm:$0xff]
        %v684 = vld [vmem:[%s502 + $0x5a8] sm:$0xff]
        %v685 = vld [vmem:[%s502 + $0x5b0] sm:$0xff]
        %v686 = vld [vmem:[%s502 + $0x5b8] sm:$0xff]
        %v687 = vld [vmem:[%s502 + $0x5c0] sm:$0xff]
        %v688 = vld [vmem:[%s502 + $0x5c8] sm:$0xff]
        %v689 = vld [vmem:[%s502 + $0x5d0] sm:$0xff]
        %v690 = vld [vmem:[%s502 + $0x5d8] sm:$0xff]
        %v691 = vld [vmem:[%s502 + $0x5e0] sm:$0xff]
        %v692 = vld [vmem:[%s502 + $0x5e8] sm:$0xff]
        %v693 = vld [vmem:[%s502 + $0x5f0] sm:$0xff]
        %v694 = vld [vmem:[%s502 + $0x5f8] sm:$0xff]
        %v701 = vunpack.c.l.b16 %v304
        %v702 = vunpack.c.h.b16 %v304
        %v703 = vunpack.c.l.b16 %v305
        %v704 = vunpack.c.h.b16 %v305
        %v705 = vunpack.c.l.b16 %v306
        %v706 = vunpack.c.h.b16 %v306
        %v707 = vunpack.c.l.b16 %v499
        %v708 = vunpack.c.h.b16 %v499
        %v709 = vunpack.c.l.b16 %v500
        %v710 = vunpack.c.h.b16 %v500
        %v711 = vunpack.c.l.b16 %v501
        %v712 = vunpack.c.h.b16 %v501
        %v713 = vpack.c.b16 %v707, %v701
        %v714 = vpack.c.b16 %v708, %v702
        %v715 = vpack.c.b16 %v709, %v703
        %v716 = vpack.c.b16 %v710, %v704
        %v717 = vpack.c.b16 %v711, %v705
        %v718 = vpack.c.b16 %v712, %v706
        %v720 = vshrl.u32 %v713, 16
        %v722 = vshll.u32 %v713, 16
        %v724 = vrot.slane %v722, 1
        %v725 = vor.u32 %v720, %v724
        %v727 = vshrl.u32 %v714, 16
        %v729 = vshll.u32 %v714, 16
        %v731 = vrot.slane %v729, 1
        %v732 = vor.u32 %v727, %v731
        %v734 = vshrl.u32 %v715, 16
        %v736 = vshll.u32 %v715, 16
        %v738 = vrot.slane %v736, 1
        %v739 = vor.u32 %v734, %v738
        %v741 = vshrl.u32 %v716, 16
        %v743 = vshll.u32 %v716, 16
        %v745 = vrot.slane %v743, 1
        %v746 = vor.u32 %v741, %v745
        %v748 = vshrl.u32 %v717, 16
        %v750 = vshll.u32 %v717, 16
        %v752 = vrot.slane %v750, 1
        %v753 = vor.u32 %v748, %v752
        %v755 = vshrl.u32 %v718, 16
        %v757 = vshll.u32 %v718, 16
        %v759 = vrot.slane %v757, 1
        %v760 = vor.u32 %v755, %v759
        %v959 = vunpack.c.l.b16 %v503
        %v960 = vunpack.c.h.b16 %v503
        %v961 = vunpack.c.l.b16 %v504
        %v962 = vunpack.c.h.b16 %v504
        %v963 = vunpack.c.l.b16 %v505
        %v964 = vunpack.c.h.b16 %v505
        %v965 = vunpack.c.l.b16 %v506
        %v966 = vunpack.c.h.b16 %v506
        %v967 = vunpack.c.l.b16 %v507
        %v968 = vunpack.c.h.b16 %v507
        %v969 = vunpack.c.l.b16 %v508
        %v970 = vunpack.c.h.b16 %v508
        %v971 = vunpack.c.l.b16 %v509
        %v972 = vunpack.c.h.b16 %v509
        %v973 = vunpack.c.l.b16 %v510
        %v974 = vunpack.c.h.b16 %v510
        %v975 = vunpack.c.l.b16 %v511
        %v976 = vunpack.c.h.b16 %v511
        %v977 = vunpack.c.l.b16 %v512
        %v978 = vunpack.c.h.b16 %v512
        %v979 = vunpack.c.l.b16 %v513
        %v980 = vunpack.c.h.b16 %v513
        %v981 = vunpack.c.l.b16 %v514
        %v982 = vunpack.c.h.b16 %v514
        %v983 = vunpack.c.l.b16 %v515
        %v984 = vunpack.c.h.b16 %v515
        %v985 = vunpack.c.l.b16 %v516
        %v986 = vunpack.c.h.b16 %v516
        %v987 = vunpack.c.l.b16 %v517
        %v988 = vunpack.c.h.b16 %v517
        %v989 = vunpack.c.l.b16 %v518
        %v990 = vunpack.c.h.b16 %v518
        %v991 = vunpack.c.l.b16 %v519
        %v992 = vunpack.c.h.b16 %v519
        %v993 = vunpack.c.l.b16 %v520
        %v994 = vunpack.c.h.b16 %v520
        %v995 = vunpack.c.l.b16 %v521
        %v996 = vunpack.c.h.b16 %v521
        %v997 = vunpack.c.l.b16 %v522
        %v998 = vunpack.c.h.b16 %v522
        %v999 = vunpack.c.l.b16 %v523
        %v1000 = vunpack.c.h.b16 %v523
        %v1001 = vunpack.c.l.b16 %v524
        %v1002 = vunpack.c.h.b16 %v524
        %v1003 = vunpack.c.l.b16 %v525
        %v1004 = vunpack.c.h.b16 %v525
        %v1005 = vunpack.c.l.b16 %v526
        %v1006 = vunpack.c.h.b16 %v526
        %v1007 = vunpack.c.l.b16 %v527
        %v1008 = vunpack.c.h.b16 %v527
        %v1009 = vunpack.c.l.b16 %v528
        %v1010 = vunpack.c.h.b16 %v528
        %v1011 = vunpack.c.l.b16 %v529
        %v1012 = vunpack.c.h.b16 %v529
        %v1013 = vunpack.c.l.b16 %v530
        %v1014 = vunpack.c.h.b16 %v530
        %v1015 = vunpack.c.l.b16 %v531
        %v1016 = vunpack.c.h.b16 %v531
        %v1017 = vunpack.c.l.b16 %v532
        %v1018 = vunpack.c.h.b16 %v532
        %v1019 = vunpack.c.l.b16 %v533
        %v1020 = vunpack.c.h.b16 %v533
        %v1021 = vunpack.c.l.b16 %v534
        %v1022 = vunpack.c.h.b16 %v534
        %v1023 = vunpack.c.l.b16 %v535
        %v1024 = vunpack.c.h.b16 %v535
        %v1025 = vunpack.c.l.b16 %v536
        %v1026 = vunpack.c.h.b16 %v536
        %v1027 = vunpack.c.l.b16 %v537
        %v1028 = vunpack.c.h.b16 %v537
        %v1029 = vunpack.c.l.b16 %v538
        %v1030 = vunpack.c.h.b16 %v538
        %v1031 = vunpack.c.l.b16 %v539
        %v1032 = vunpack.c.h.b16 %v539
        %v1033 = vunpack.c.l.b16 %v540
        %v1034 = vunpack.c.h.b16 %v540
        %v1035 = vunpack.c.l.b16 %v541
        %v1036 = vunpack.c.h.b16 %v541
        %v1037 = vunpack.c.l.b16 %v542
        %v1038 = vunpack.c.h.b16 %v542
        %v1039 = vunpack.c.l.b16 %v543
        %v1040 = vunpack.c.h.b16 %v543
        %v1041 = vunpack.c.l.b16 %v544
        %v1042 = vunpack.c.h.b16 %v544
        %v1043 = vunpack.c.l.b16 %v545
        %v1044 = vunpack.c.h.b16 %v545
        %v1045 = vunpack.c.l.b16 %v546
        %v1046 = vunpack.c.h.b16 %v546
        %v1047 = vunpack.c.l.b16 %v547
        %v1048 = vunpack.c.h.b16 %v547
        %v1049 = vunpack.c.l.b16 %v548
        %v1050 = vunpack.c.h.b16 %v548
        %v1051 = vunpack.c.l.b16 %v549
        %v1052 = vunpack.c.h.b16 %v549
        %v1053 = vunpack.c.l.b16 %v550
        %v1054 = vunpack.c.h.b16 %v550
        %v1055 = vunpack.c.l.b16 %v551
        %v1056 = vunpack.c.h.b16 %v551
        %v1057 = vunpack.c.l.b16 %v552
        %v1058 = vunpack.c.h.b16 %v552
        %v1059 = vunpack.c.l.b16 %v553
        %v1060 = vunpack.c.h.b16 %v553
        %v1061 = vunpack.c.l.b16 %v554
        %v1062 = vunpack.c.h.b16 %v554
        %v1063 = vunpack.c.l.b16 %v555
        %v1064 = vunpack.c.h.b16 %v555
        %v1065 = vunpack.c.l.b16 %v556
        %v1066 = vunpack.c.h.b16 %v556
        %v1067 = vunpack.c.l.b16 %v557
        %v1068 = vunpack.c.h.b16 %v557
        %v1069 = vunpack.c.l.b16 %v558
        %v1070 = vunpack.c.h.b16 %v558
        %v1071 = vunpack.c.l.b16 %v559
        %v1072 = vunpack.c.h.b16 %v559
        %v1073 = vunpack.c.l.b16 %v560
        %v1074 = vunpack.c.h.b16 %v560
        %v1075 = vunpack.c.l.b16 %v561
        %v1076 = vunpack.c.h.b16 %v561
        %v1077 = vunpack.c.l.b16 %v562
        %v1078 = vunpack.c.h.b16 %v562
        %v1079 = vunpack.c.l.b16 %v563
        %v1080 = vunpack.c.h.b16 %v563
        %v1081 = vunpack.c.l.b16 %v564
        %v1082 = vunpack.c.h.b16 %v564
        %v1083 = vunpack.c.l.b16 %v565
        %v1084 = vunpack.c.h.b16 %v565
        %v1085 = vunpack.c.l.b16 %v566
        %v1086 = vunpack.c.h.b16 %v566
        %v1087 = vunpack.c.l.b16 %v567
        %v1088 = vunpack.c.h.b16 %v567
        %v1089 = vunpack.c.l.b16 %v568
        %v1090 = vunpack.c.h.b16 %v568
        %v1091 = vunpack.c.l.b16 %v569
        %v1092 = vunpack.c.h.b16 %v569
        %v1093 = vunpack.c.l.b16 %v570
        %v1094 = vunpack.c.h.b16 %v570
        %v1095 = vunpack.c.l.b16 %v571
        %v1096 = vunpack.c.h.b16 %v571
        %v1097 = vunpack.c.l.b16 %v572
        %v1098 = vunpack.c.h.b16 %v572
        %v1099 = vunpack.c.l.b16 %v573
        %v1100 = vunpack.c.h.b16 %v573
        %v1101 = vunpack.c.l.b16 %v574
        %v1102 = vunpack.c.h.b16 %v574
        %v1103 = vunpack.c.l.b16 %v575
        %v1104 = vunpack.c.h.b16 %v575
        %v1105 = vunpack.c.l.b16 %v576
        %v1106 = vunpack.c.h.b16 %v576
        %v1107 = vunpack.c.l.b16 %v577
        %v1108 = vunpack.c.h.b16 %v577
        %v1109 = vunpack.c.l.b16 %v578
        %v1110 = vunpack.c.h.b16 %v578
        %v1111 = vunpack.c.l.b16 %v579
        %v1112 = vunpack.c.h.b16 %v579
        %v1113 = vunpack.c.l.b16 %v580
        %v1114 = vunpack.c.h.b16 %v580
        %v1115 = vunpack.c.l.b16 %v581
        %v1116 = vunpack.c.h.b16 %v581
        %v1117 = vunpack.c.l.b16 %v582
        %v1118 = vunpack.c.h.b16 %v582
        %v1119 = vunpack.c.l.b16 %v583
        %v1120 = vunpack.c.h.b16 %v583
        %v1121 = vunpack.c.l.b16 %v584
        %v1122 = vunpack.c.h.b16 %v584
        %v1123 = vunpack.c.l.b16 %v585
        %v1124 = vunpack.c.h.b16 %v585
        %v1125 = vunpack.c.l.b16 %v586
        %v1126 = vunpack.c.h.b16 %v586
        %v1127 = vunpack.c.l.b16 %v587
        %v1128 = vunpack.c.h.b16 %v587
        %v1129 = vunpack.c.l.b16 %v588
        %v1130 = vunpack.c.h.b16 %v588
        %v1131 = vunpack.c.l.b16 %v589
        %v1132 = vunpack.c.h.b16 %v589
        %v1133 = vunpack.c.l.b16 %v590
        %v1134 = vunpack.c.h.b16 %v590
        %v1135 = vunpack.c.l.b16 %v591
        %v1136 = vunpack.c.h.b16 %v591
        %v1137 = vunpack.c.l.b16 %v592
        %v1138 = vunpack.c.h.b16 %v592
        %v1139 = vunpack.c.l.b16 %v593
        %v1140 = vunpack.c.h.b16 %v593
        %v1141 = vunpack.c.l.b16 %v594
        %v1142 = vunpack.c.h.b16 %v594
        %v1143 = vunpack.c.l.b16 %v595
        %v1144 = vunpack.c.h.b16 %v595
        %v1145 = vunpack.c.l.b16 %v596
        %v1146 = vunpack.c.h.b16 %v596
        %v1147 = vunpack.c.l.b16 %v597
        %v1148 = vunpack.c.h.b16 %v597
        %v1149 = vunpack.c.l.b16 %v598
        %v1150 = vunpack.c.h.b16 %v598
        %v1151 = vunpack.c.l.b16 %v599
        %v1152 = vunpack.c.h.b16 %v599
        %v1153 = vunpack.c.l.b16 %v600
        %v1154 = vunpack.c.h.b16 %v600
        %v1155 = vunpack.c.l.b16 %v601
        %v1156 = vunpack.c.h.b16 %v601
        %v1157 = vunpack.c.l.b16 %v602
        %v1158 = vunpack.c.h.b16 %v602
        %v1159 = vunpack.c.l.b16 %v603
        %v1160 = vunpack.c.h.b16 %v603
        %v1161 = vunpack.c.l.b16 %v604
        %v1162 = vunpack.c.h.b16 %v604
        %v1163 = vunpack.c.l.b16 %v605
        %v1164 = vunpack.c.h.b16 %v605
        %v1165 = vunpack.c.l.b16 %v606
        %v1166 = vunpack.c.h.b16 %v606
        %v1167 = vunpack.c.l.b16 %v607
        %v1168 = vunpack.c.h.b16 %v607
        %v1169 = vunpack.c.l.b16 %v608
        %v1170 = vunpack.c.h.b16 %v608
        %v1171 = vunpack.c.l.b16 %v609
        %v1172 = vunpack.c.h.b16 %v609
        %v1173 = vunpack.c.l.b16 %v610
        %v1174 = vunpack.c.h.b16 %v610
        %v1175 = vunpack.c.l.b16 %v611
        %v1176 = vunpack.c.h.b16 %v611
        %v1177 = vunpack.c.l.b16 %v612
        %v1178 = vunpack.c.h.b16 %v612
        %v1179 = vunpack.c.l.b16 %v613
        %v1180 = vunpack.c.h.b16 %v613
        %v1181 = vunpack.c.l.b16 %v614
        %v1182 = vunpack.c.h.b16 %v614
        %v1183 = vunpack.c.l.b16 %v615
        %v1184 = vunpack.c.h.b16 %v615
        %v1185 = vunpack.c.l.b16 %v616
        %v1186 = vunpack.c.h.b16 %v616
        %v1187 = vunpack.c.l.b16 %v617
        %v1188 = vunpack.c.h.b16 %v617
        %v1189 = vunpack.c.l.b16 %v618
        %v1190 = vunpack.c.h.b16 %v618
        %v1191 = vunpack.c.l.b16 %v619
        %v1192 = vunpack.c.h.b16 %v619
        %v1193 = vunpack.c.l.b16 %v620
        %v1194 = vunpack.c.h.b16 %v620
        %v1195 = vunpack.c.l.b16 %v621
        %v1196 = vunpack.c.h.b16 %v621
        %v1197 = vunpack.c.l.b16 %v622
        %v1198 = vunpack.c.h.b16 %v622
        %v1199 = vunpack.c.l.b16 %v623
        %v1200 = vunpack.c.h.b16 %v623
        %v1201 = vunpack.c.l.b16 %v624
        %v1202 = vunpack.c.h.b16 %v624
        %v1203 = vunpack.c.l.b16 %v625
        %v1204 = vunpack.c.h.b16 %v625
        %v1205 = vunpack.c.l.b16 %v626
        %v1206 = vunpack.c.h.b16 %v626
        %v1207 = vunpack.c.l.b16 %v627
        %v1208 = vunpack.c.h.b16 %v627
        %v1209 = vunpack.c.l.b16 %v628
        %v1210 = vunpack.c.h.b16 %v628
        %v1211 = vunpack.c.l.b16 %v629
        %v1212 = vunpack.c.h.b16 %v629
        %v1213 = vunpack.c.l.b16 %v630
        %v1214 = vunpack.c.h.b16 %v630
        %v1215 = vunpack.c.l.b16 %v631
        %v1216 = vunpack.c.h.b16 %v631
        %v1217 = vunpack.c.l.b16 %v632
        %v1218 = vunpack.c.h.b16 %v632
        %v1219 = vunpack.c.l.b16 %v633
        %v1220 = vunpack.c.h.b16 %v633
        %v1221 = vunpack.c.l.b16 %v634
        %v1222 = vunpack.c.h.b16 %v634
        %v1223 = vunpack.c.l.b16 %v635
        %v1224 = vunpack.c.h.b16 %v635
        %v1225 = vunpack.c.l.b16 %v636
        %v1226 = vunpack.c.h.b16 %v636
        %v1227 = vunpack.c.l.b16 %v637
        %v1228 = vunpack.c.h.b16 %v637
        %v1229 = vunpack.c.l.b16 %v638
        %v1230 = vunpack.c.h.b16 %v638
        %v1231 = vunpack.c.l.b16 %v639
        %v1232 = vunpack.c.h.b16 %v639
        %v1233 = vunpack.c.l.b16 %v640
        %v1234 = vunpack.c.h.b16 %v640
        %v1235 = vunpack.c.l.b16 %v641
        %v1236 = vunpack.c.h.b16 %v641
        %v1237 = vunpack.c.l.b16 %v642
        %v1238 = vunpack.c.h.b16 %v642
        %v1239 = vunpack.c.l.b16 %v643
        %v1240 = vunpack.c.h.b16 %v643
        %v1241 = vunpack.c.l.b16 %v644
        %v1242 = vunpack.c.h.b16 %v644
        %v1243 = vunpack.c.l.b16 %v645
        %v1244 = vunpack.c.h.b16 %v645
        %v1245 = vunpack.c.l.b16 %v646
        %v1246 = vunpack.c.h.b16 %v646
        %v1247 = vunpack.c.l.b16 %v647
        %v1248 = vunpack.c.h.b16 %v647
        %v1249 = vunpack.c.l.b16 %v648
        %v1250 = vunpack.c.h.b16 %v648
        %v1251 = vunpack.c.l.b16 %v649
        %v1252 = vunpack.c.h.b16 %v649
        %v1253 = vunpack.c.l.b16 %v650
        %v1254 = vunpack.c.h.b16 %v650
        %v1255 = vunpack.c.l.b16 %v651
        %v1256 = vunpack.c.h.b16 %v651
        %v1257 = vunpack.c.l.b16 %v652
        %v1258 = vunpack.c.h.b16 %v652
        %v1259 = vunpack.c.l.b16 %v653
        %v1260 = vunpack.c.h.b16 %v653
        %v1261 = vunpack.c.l.b16 %v654
        %v1262 = vunpack.c.h.b16 %v654
        %v1263 = vunpack.c.l.b16 %v655
        %v1264 = vunpack.c.h.b16 %v655
        %v1265 = vunpack.c.l.b16 %v656
        %v1266 = vunpack.c.h.b16 %v656
        %v1267 = vunpack.c.l.b16 %v657
        %v1268 = vunpack.c.h.b16 %v657
        %v1269 = vunpack.c.l.b16 %v658
        %v1270 = vunpack.c.h.b16 %v658
        %v1271 = vunpack.c.l.b16 %v659
        %v1272 = vunpack.c.h.b16 %v659
        %v1273 = vunpack.c.l.b16 %v660
        %v1274 = vunpack.c.h.b16 %v660
        %v1275 = vunpack.c.l.b16 %v661
        %v1276 = vunpack.c.h.b16 %v661
        %v1277 = vunpack.c.l.b16 %v662
        %v1278 = vunpack.c.h.b16 %v662
        %v1279 = vunpack.c.l.b16 %v663
        %v1280 = vunpack.c.h.b16 %v663
        %v1281 = vunpack.c.l.b16 %v664
        %v1282 = vunpack.c.h.b16 %v664
        %v1283 = vunpack.c.l.b16 %v665
        %v1284 = vunpack.c.h.b16 %v665
        %v1285 = vunpack.c.l.b16 %v666
        %v1286 = vunpack.c.h.b16 %v666
        %v1287 = vunpack.c.l.b16 %v667
        %v1288 = vunpack.c.h.b16 %v667
        %v1289 = vunpack.c.l.b16 %v668
        %v1290 = vunpack.c.h.b16 %v668
        %v1291 = vunpack.c.l.b16 %v669
        %v1292 = vunpack.c.h.b16 %v669
        %v1293 = vunpack.c.l.b16 %v670
        %v1294 = vunpack.c.h.b16 %v670
        %v1295 = vunpack.c.l.b16 %v671
        %v1296 = vunpack.c.h.b16 %v671
        %v1297 = vunpack.c.l.b16 %v672
        %v1298 = vunpack.c.h.b16 %v672
        %v1299 = vunpack.c.l.b16 %v673
        %v1300 = vunpack.c.h.b16 %v673
        %v1301 = vunpack.c.l.b16 %v674
        %v1302 = vunpack.c.h.b16 %v674
        %v1303 = vunpack.c.l.b16 %v675
        %v1304 = vunpack.c.h.b16 %v675
        %v1305 = vunpack.c.l.b16 %v676
        %v1306 = vunpack.c.h.b16 %v676
        %v1307 = vunpack.c.l.b16 %v677
        %v1308 = vunpack.c.h.b16 %v677
        %v1309 = vunpack.c.l.b16 %v678
        %v1310 = vunpack.c.h.b16 %v678
        %v1311 = vunpack.c.l.b16 %v679
        %v1312 = vunpack.c.h.b16 %v679
        %v1313 = vunpack.c.l.b16 %v680
        %v1314 = vunpack.c.h.b16 %v680
        %v1315 = vunpack.c.l.b16 %v681
        %v1316 = vunpack.c.h.b16 %v681
        %v1317 = vunpack.c.l.b16 %v682
        %v1318 = vunpack.c.h.b16 %v682
        %v1319 = vunpack.c.l.b16 %v683
        %v1320 = vunpack.c.h.b16 %v683
        %v1321 = vunpack.c.l.b16 %v684
        %v1322 = vunpack.c.h.b16 %v684
        %v1323 = vunpack.c.l.b16 %v685
        %v1324 = vunpack.c.h.b16 %v685
        %v1325 = vunpack.c.l.b16 %v686
        %v1326 = vunpack.c.h.b16 %v686
        %v1327 = vunpack.c.l.b16 %v687
        %v1328 = vunpack.c.h.b16 %v687
        %v1329 = vunpack.c.l.b16 %v688
        %v1330 = vunpack.c.h.b16 %v688
        %v1331 = vunpack.c.l.b16 %v689
        %v1332 = vunpack.c.h.b16 %v689
        %v1333 = vunpack.c.l.b16 %v690
        %v1334 = vunpack.c.h.b16 %v690
        %v1335 = vunpack.c.l.b16 %v691
        %v1336 = vunpack.c.h.b16 %v691
        %v1337 = vunpack.c.l.b16 %v692
        %v1338 = vunpack.c.h.b16 %v692
        %v1339 = vunpack.c.l.b16 %v693
        %v1340 = vunpack.c.h.b16 %v693
        %v1341 = vunpack.c.l.b16 %v694
        %v1342 = vunpack.c.h.b16 %v694
        %v1343 = vpack.c.b16 %v963, %v959
        %v1344 = vpack.c.b16 %v964, %v960
        %v1345 = vpack.c.b16 %v965, %v961
        %v1346 = vpack.c.b16 %v966, %v962
        %v1347 = vpack.c.b16 %v971, %v967
        %v1348 = vpack.c.b16 %v972, %v968
        %v1349 = vpack.c.b16 %v973, %v969
        %v1350 = vpack.c.b16 %v974, %v970
        %v1351 = vpack.c.b16 %v979, %v975
        %v1352 = vpack.c.b16 %v980, %v976
        %v1353 = vpack.c.b16 %v981, %v977
        %v1354 = vpack.c.b16 %v982, %v978
        %v1355 = vpack.c.b16 %v987, %v983
        %v1356 = vpack.c.b16 %v988, %v984
        %v1357 = vpack.c.b16 %v989, %v985
        %v1358 = vpack.c.b16 %v990, %v986
        %v1359 = vpack.c.b16 %v995, %v991
        %v1360 = vpack.c.b16 %v996, %v992
        %v1361 = vpack.c.b16 %v997, %v993
        %v1362 = vpack.c.b16 %v998, %v994
        %v1363 = vpack.c.b16 %v1003, %v999
        %v1364 = vpack.c.b16 %v1004, %v1000
        %v1365 = vpack.c.b16 %v1005, %v1001
        %v1366 = vpack.c.b16 %v1006, %v1002
        %v1367 = vpack.c.b16 %v1011, %v1007
        %v1368 = vpack.c.b16 %v1012, %v1008
        %v1369 = vpack.c.b16 %v1013, %v1009
        %v1370 = vpack.c.b16 %v1014, %v1010
        %v1371 = vpack.c.b16 %v1019, %v1015
        %v1372 = vpack.c.b16 %v1020, %v1016
        %v1373 = vpack.c.b16 %v1021, %v1017
        %v1374 = vpack.c.b16 %v1022, %v1018
        %v1375 = vpack.c.b16 %v1027, %v1023
        %v1376 = vpack.c.b16 %v1028, %v1024
        %v1377 = vpack.c.b16 %v1029, %v1025
        %v1378 = vpack.c.b16 %v1030, %v1026
        %v1379 = vpack.c.b16 %v1035, %v1031
        %v1380 = vpack.c.b16 %v1036, %v1032
        %v1381 = vpack.c.b16 %v1037, %v1033
        %v1382 = vpack.c.b16 %v1038, %v1034
        %v1383 = vpack.c.b16 %v1043, %v1039
        %v1384 = vpack.c.b16 %v1044, %v1040
        %v1385 = vpack.c.b16 %v1045, %v1041
        %v1386 = vpack.c.b16 %v1046, %v1042
        %v1387 = vpack.c.b16 %v1051, %v1047
        %v1388 = vpack.c.b16 %v1052, %v1048
        %v1389 = vpack.c.b16 %v1053, %v1049
        %v1390 = vpack.c.b16 %v1054, %v1050
        %v1391 = vpack.c.b16 %v1059, %v1055
        %v1392 = vpack.c.b16 %v1060, %v1056
        %v1393 = vpack.c.b16 %v1061, %v1057
        %v1394 = vpack.c.b16 %v1062, %v1058
        %v1395 = vpack.c.b16 %v1067, %v1063
        %v1396 = vpack.c.b16 %v1068, %v1064
        %v1397 = vpack.c.b16 %v1069, %v1065
        %v1398 = vpack.c.b16 %v1070, %v1066
        %v1399 = vpack.c.b16 %v1075, %v1071
        %v1400 = vpack.c.b16 %v1076, %v1072
        %v1401 = vpack.c.b16 %v1077, %v1073
        %v1402 = vpack.c.b16 %v1078, %v1074
        %v1403 = vpack.c.b16 %v1083, %v1079
        %v1404 = vpack.c.b16 %v1084, %v1080
        %v1405 = vpack.c.b16 %v1085, %v1081
        %v1406 = vpack.c.b16 %v1086, %v1082
        %v1407 = vpack.c.b16 %v1091, %v1087
        %v1408 = vpack.c.b16 %v1092, %v1088
        %v1409 = vpack.c.b16 %v1093, %v1089
        %v1410 = vpack.c.b16 %v1094, %v1090
        %v1411 = vpack.c.b16 %v1099, %v1095
        %v1412 = vpack.c.b16 %v1100, %v1096
        %v1413 = vpack.c.b16 %v1101, %v1097
        %v1414 = vpack.c.b16 %v1102, %v1098
        %v1415 = vpack.c.b16 %v1107, %v1103
        %v1416 = vpack.c.b16 %v1108, %v1104
        %v1417 = vpack.c.b16 %v1109, %v1105
        %v1418 = vpack.c.b16 %v1110, %v1106
        %v1419 = vpack.c.b16 %v1115, %v1111
        %v1420 = vpack.c.b16 %v1116, %v1112
        %v1421 = vpack.c.b16 %v1117, %v1113
        %v1422 = vpack.c.b16 %v1118, %v1114
        %v1423 = vpack.c.b16 %v1123, %v1119
        %v1424 = vpack.c.b16 %v1124, %v1120
        %v1425 = vpack.c.b16 %v1125, %v1121
        %v1426 = vpack.c.b16 %v1126, %v1122
        %v1427 = vpack.c.b16 %v1131, %v1127
        %v1428 = vpack.c.b16 %v1132, %v1128
        %v1429 = vpack.c.b16 %v1133, %v1129
        %v1430 = vpack.c.b16 %v1134, %v1130
        %v1431 = vpack.c.b16 %v1139, %v1135
        %v1432 = vpack.c.b16 %v1140, %v1136
        %v1433 = vpack.c.b16 %v1141, %v1137
        %v1434 = vpack.c.b16 %v1142, %v1138
        %v1435 = vpack.c.b16 %v1147, %v1143
        %v1436 = vpack.c.b16 %v1148, %v1144
        %v1437 = vpack.c.b16 %v1149, %v1145
        %v1438 = vpack.c.b16 %v1150, %v1146
        %v1439 = vpack.c.b16 %v1155, %v1151
        %v1440 = vpack.c.b16 %v1156, %v1152
        %v1441 = vpack.c.b16 %v1157, %v1153
        %v1442 = vpack.c.b16 %v1158, %v1154
        %v1443 = vpack.c.b16 %v1163, %v1159
        %v1444 = vpack.c.b16 %v1164, %v1160
        %v1445 = vpack.c.b16 %v1165, %v1161
        %v1446 = vpack.c.b16 %v1166, %v1162
        %v1447 = vpack.c.b16 %v1171, %v1167
        %v1448 = vpack.c.b16 %v1172, %v1168
        %v1449 = vpack.c.b16 %v1173, %v1169
        %v1450 = vpack.c.b16 %v1174, %v1170
        %v1451 = vpack.c.b16 %v1179, %v1175
        %v1452 = vpack.c.b16 %v1180, %v1176
        %v1453 = vpack.c.b16 %v1181, %v1177
        %v1454 = vpack.c.b16 %v1182, %v1178
        %v1455 = vpack.c.b16 %v1187, %v1183
        %v1456 = vpack.c.b16 %v1188, %v1184
        %v1457 = vpack.c.b16 %v1189, %v1185
        %v1458 = vpack.c.b16 %v1190, %v1186
        %v1459 = vpack.c.b16 %v1195, %v1191
        %v1460 = vpack.c.b16 %v1196, %v1192
        %v1461 = vpack.c.b16 %v1197, %v1193
        %v1462 = vpack.c.b16 %v1198, %v1194
        %v1463 = vpack.c.b16 %v1203, %v1199
        %v1464 = vpack.c.b16 %v1204, %v1200
        %v1465 = vpack.c.b16 %v1205, %v1201
        %v1466 = vpack.c.b16 %v1206, %v1202
        %v1467 = vpack.c.b16 %v1211, %v1207
        %v1468 = vpack.c.b16 %v1212, %v1208
        %v1469 = vpack.c.b16 %v1213, %v1209
        %v1470 = vpack.c.b16 %v1214, %v1210
        %v1471 = vpack.c.b16 %v1219, %v1215
        %v1472 = vpack.c.b16 %v1220, %v1216
        %v1473 = vpack.c.b16 %v1221, %v1217
        %v1474 = vpack.c.b16 %v1222, %v1218
        %v1475 = vpack.c.b16 %v1227, %v1223
        %v1476 = vpack.c.b16 %v1228, %v1224
        %v1477 = vpack.c.b16 %v1229, %v1225
        %v1478 = vpack.c.b16 %v1230, %v1226
        %v1479 = vpack.c.b16 %v1235, %v1231
        %v1480 = vpack.c.b16 %v1236, %v1232
        %v1481 = vpack.c.b16 %v1237, %v1233
        %v1482 = vpack.c.b16 %v1238, %v1234
        %v1483 = vpack.c.b16 %v1243, %v1239
        %v1484 = vpack.c.b16 %v1244, %v1240
        %v1485 = vpack.c.b16 %v1245, %v1241
        %v1486 = vpack.c.b16 %v1246, %v1242
        %v1487 = vpack.c.b16 %v1251, %v1247
        %v1488 = vpack.c.b16 %v1252, %v1248
        %v1489 = vpack.c.b16 %v1253, %v1249
        %v1490 = vpack.c.b16 %v1254, %v1250
        %v1491 = vpack.c.b16 %v1259, %v1255
        %v1492 = vpack.c.b16 %v1260, %v1256
        %v1493 = vpack.c.b16 %v1261, %v1257
        %v1494 = vpack.c.b16 %v1262, %v1258
        %v1495 = vpack.c.b16 %v1267, %v1263
        %v1496 = vpack.c.b16 %v1268, %v1264
        %v1497 = vpack.c.b16 %v1269, %v1265
        %v1498 = vpack.c.b16 %v1270, %v1266
        %v1499 = vpack.c.b16 %v1275, %v1271
        %v1500 = vpack.c.b16 %v1276, %v1272
        %v1501 = vpack.c.b16 %v1277, %v1273
        %v1502 = vpack.c.b16 %v1278, %v1274
        %v1503 = vpack.c.b16 %v1283, %v1279
        %v1504 = vpack.c.b16 %v1284, %v1280
        %v1505 = vpack.c.b16 %v1285, %v1281
        %v1506 = vpack.c.b16 %v1286, %v1282
        %v1507 = vpack.c.b16 %v1291, %v1287
        %v1508 = vpack.c.b16 %v1292, %v1288
        %v1509 = vpack.c.b16 %v1293, %v1289
        %v1510 = vpack.c.b16 %v1294, %v1290
        %v1511 = vpack.c.b16 %v1299, %v1295
        %v1512 = vpack.c.b16 %v1300, %v1296
        %v1513 = vpack.c.b16 %v1301, %v1297
        %v1514 = vpack.c.b16 %v1302, %v1298
        %v1515 = vpack.c.b16 %v1307, %v1303
        %v1516 = vpack.c.b16 %v1308, %v1304
        %v1517 = vpack.c.b16 %v1309, %v1305
        %v1518 = vpack.c.b16 %v1310, %v1306
        %v1519 = vpack.c.b16 %v1315, %v1311
        %v1520 = vpack.c.b16 %v1316, %v1312
        %v1521 = vpack.c.b16 %v1317, %v1313
        %v1522 = vpack.c.b16 %v1318, %v1314
        %v1523 = vpack.c.b16 %v1323, %v1319
        %v1524 = vpack.c.b16 %v1324, %v1320
        %v1525 = vpack.c.b16 %v1325, %v1321
        %v1526 = vpack.c.b16 %v1326, %v1322
        %v1527 = vpack.c.b16 %v1331, %v1327
        %v1528 = vpack.c.b16 %v1332, %v1328
        %v1529 = vpack.c.b16 %v1333, %v1329
        %v1530 = vpack.c.b16 %v1334, %v1330
        %v1531 = vpack.c.b16 %v1339, %v1335
        %v1532 = vpack.c.b16 %v1340, %v1336
        %v1533 = vpack.c.b16 %v1341, %v1337
        %v1534 = vpack.c.b16 %v1342, %v1338
        %1727 = vmatprep.subr.bf16.mxu0 %v1344
        %1728 = vmatpush1.bf16.msra.mxu0 %v1343
        %1729 = vmatprep.subr.bf16.mxu0 %v1348
        %1730 = vmatpush1.bf16.msra.mxu0 %v1347
        %1731 = vmatprep.subr.bf16.mxu0 %v1352
        %1732 = vmatpush1.bf16.msra.mxu0 %v1351
        %1733 = vmatprep.subr.bf16.mxu0 %v1356
        %1734 = vmatpush1.bf16.msra.mxu0 %v1355
        %1735 = vmatprep.subr.bf16.mxu0 %v1360
        %1736 = vmatpush1.bf16.msra.mxu0 %v1359
        %1737 = vmatprep.subr.bf16.mxu0 %v1364
        %1738 = vmatpush1.bf16.msra.mxu0 %v1363
        %1739 = vmatprep.subr.bf16.mxu0 %v1368
        %1740 = vmatpush1.bf16.msra.mxu0 %v1367
        %1741 = vmatprep.subr.bf16.mxu0 %v1372
        %1742 = vmatpush1.bf16.msra.mxu0 %v1371
        %1743 = vmatprep.subr.bf16.mxu0 %v1376
        %1744 = vmatpush1.bf16.msra.mxu0 %v1375
        %1745 = vmatprep.subr.bf16.mxu0 %v1380
        %1746 = vmatpush1.bf16.msra.mxu0 %v1379
        %1747 = vmatprep.subr.bf16.mxu0 %v1384
        %1748 = vmatpush1.bf16.msra.mxu0 %v1383
        %1749 = vmatprep.subr.bf16.mxu0 %v1388
        %1750 = vmatpush1.bf16.msra.mxu0 %v1387
        %1751 = vmatprep.subr.bf16.mxu0 %v1392
        %1752 = vmatpush1.bf16.msra.mxu0 %v1391
        %1753 = vmatprep.subr.bf16.mxu0 %v1396
        %1754 = vmatpush1.bf16.msra.mxu0 %v1395
        %1755 = vmatprep.subr.bf16.mxu0 %v1400
        %1756 = vmatpush1.bf16.msra.mxu0 %v1399
        %1757 = vmatprep.subr.bf16.mxu0 %v1404
        %1758 = vmatpush1.bf16.msra.mxu0 %v1403
        %1759 = vmatprep.mubr.bf16.mxu0 %v732
        %1760 = vmatmul.mubr.bf16.gmra.mrb[0].mxu0 %v725
        %v1761 = vpop.f32.mrb[0].mxu0
        %v1762 = vadd.f32 0.0, %v1761
        %v1763 = vpop.f32.mrb[0].mxu0
        %v1764 = vadd.f32 0.0, %v1763
        %v1765 = vpop.f32.mrb[0].mxu0
        %v1766 = vpop.f32.mrb[0].mxu0
        %1767 = vdwg.mxu0
        %1768 = vmatprep.subr.bf16.mxu0 %v1408
        %1769 = vmatpush1.bf16.msra.mxu0 %v1407
        %1770 = vmatprep.subr.bf16.mxu0 %v1412
        %1771 = vmatpush1.bf16.msra.mxu0 %v1411
        %1772 = vmatprep.subr.bf16.mxu0 %v1416
        %1773 = vmatpush1.bf16.msra.mxu0 %v1415
        %1774 = vmatprep.subr.bf16.mxu0 %v1420
        %1775 = vmatpush1.bf16.msra.mxu0 %v1419
        %1776 = vmatprep.subr.bf16.mxu0 %v1424
        %1777 = vmatpush1.bf16.msra.mxu0 %v1423
        %1778 = vmatprep.subr.bf16.mxu0 %v1428
        %1779 = vmatpush1.bf16.msra.mxu0 %v1427
        %1780 = vmatprep.subr.bf16.mxu0 %v1432
        %1781 = vmatpush1.bf16.msra.mxu0 %v1431
        %1782 = vmatprep.subr.bf16.mxu0 %v1436
        %1783 = vmatpush1.bf16.msra.mxu0 %v1435
        %1784 = vmatprep.subr.bf16.mxu0 %v1440
        %1785 = vmatpush1.bf16.msra.mxu0 %v1439
        %1786 = vmatprep.subr.bf16.mxu0 %v1444
        %1787 = vmatpush1.bf16.msra.mxu0 %v1443
        %1788 = vmatprep.subr.bf16.mxu0 %v1448
        %1789 = vmatpush1.bf16.msra.mxu0 %v1447
        %1790 = vmatprep.subr.bf16.mxu0 %v1452
        %1791 = vmatpush1.bf16.msra.mxu0 %v1451
        %1792 = vmatprep.subr.bf16.mxu0 %v1456
        %1793 = vmatpush1.bf16.msra.mxu0 %v1455
        %1794 = vmatprep.subr.bf16.mxu0 %v1460
        %1795 = vmatpush1.bf16.msra.mxu0 %v1459
        %1796 = vmatprep.subr.bf16.mxu0 %v1464
        %1797 = vmatpush1.bf16.msra.mxu0 %v1463
        %1798 = vmatprep.subr.bf16.mxu0 %v1468
        %1799 = vmatpush1.bf16.msra.mxu0 %v1467
        %1800 = vmatprep.mubr.bf16.mxu0 %v746
        %1801 = vmatmul.mubr.bf16.gmra.mrb[0].mxu0 %v739
        %v1802 = vpop.f32.mrb[0].mxu0
        %v1803 = vadd.f32 %v1762, %v1802
        %v1804 = vpop.f32.mrb[0].mxu0
        %v1805 = vadd.f32 %v1764, %v1804
        %v1806 = vpop.f32.mrb[0].mxu0
        %v1807 = vpop.f32.mrb[0].mxu0
        %1808 = vdwg.mxu0
        %1809 = vmatprep.subr.bf16.mxu0 %v1472
        %1810 = vmatpush1.bf16.msra.mxu0 %v1471
        %1811 = vmatprep.subr.bf16.mxu0 %v1476
        %1812 = vmatpush1.bf16.msra.mxu0 %v1475
        %1813 = vmatprep.subr.bf16.mxu0 %v1480
        %1814 = vmatpush1.bf16.msra.mxu0 %v1479
        %1815 = vmatprep.subr.bf16.mxu0 %v1484
        %1816 = vmatpush1.bf16.msra.mxu0 %v1483
        %1817 = vmatprep.subr.bf16.mxu0 %v1488
        %1818 = vmatpush1.bf16.msra.mxu0 %v1487
        %1819 = vmatprep.subr.bf16.mxu0 %v1492
        %1820 = vmatpush1.bf16.msra.mxu0 %v1491
        %1821 = vmatprep.subr.bf16.mxu0 %v1496
        %1822 = vmatpush1.bf16.msra.mxu0 %v1495
        %1823 = vmatprep.subr.bf16.mxu0 %v1500
        %1824 = vmatpush1.bf16.msra.mxu0 %v1499
        %1825 = vmatprep.subr.bf16.mxu0 %v1504
        %1826 = vmatpush1.bf16.msra.mxu0 %v1503
        %1827 = vmatprep.subr.bf16.mxu0 %v1508
        %1828 = vmatpush1.bf16.msra.mxu0 %v1507
        %1829 = vmatprep.subr.bf16.mxu0 %v1512
        %1830 = vmatpush1.bf16.msra.mxu0 %v1511
        %1831 = vmatprep.subr.bf16.mxu0 %v1516
        %1832 = vmatpush1.bf16.msra.mxu0 %v1515
        %1833 = vmatprep.subr.bf16.mxu0 %v1520
        %1834 = vmatpush1.bf16.msra.mxu0 %v1519
        %1835 = vmatprep.subr.bf16.mxu0 %v1524
        %1836 = vmatpush1.bf16.msra.mxu0 %v1523
        %1837 = vmatprep.subr.bf16.mxu0 %v1528
        %1838 = vmatpush1.bf16.msra.mxu0 %v1527
        %1839 = vmatprep.subr.bf16.mxu0 %v1532
        %1840 = vmatpush1.bf16.msra.mxu0 %v1531
        %1841 = vmatprep.mubr.bf16.mxu0 %v760
        %1842 = vmatmul.mubr.bf16.gmra.mrb[0].mxu0 %v753
        %v1843 = vpop.f32.mrb[0].mxu0
        %v1844 = vadd.f32 %v1803, %v1843
        %v1845 = vpop.f32.mrb[0].mxu0
        %v1846 = vadd.f32 %v1805, %v1845
        %v1847 = vpop.f32.mrb[0].mxu0
        %v1848 = vpop.f32.mrb[0].mxu0
        %1849 = vdwg.mxu0
        %1850 = vmatprep.subr.bf16.mxu0 %v1346
        %1851 = vmatpush1.bf16.msra.mxu0 %v1345
        %1852 = vmatprep.subr.bf16.mxu0 %v1350
        %1853 = vmatpush1.bf16.msra.mxu0 %v1349
        %1854 = vmatprep.subr.bf16.mxu0 %v1354
        %1855 = vmatpush1.bf16.msra.mxu0 %v1353
        %1856 = vmatprep.subr.bf16.mxu0 %v1358
        %1857 = vmatpush1.bf16.msra.mxu0 %v1357
        %1858 = vmatprep.subr.bf16.mxu0 %v1362
        %1859 = vmatpush1.bf16.msra.mxu0 %v1361
        %1860 = vmatprep.subr.bf16.mxu0 %v1366
        %1861 = vmatpush1.bf16.msra.mxu0 %v1365
        %1862 = vmatprep.subr.bf16.mxu0 %v1370
        %1863 = vmatpush1.bf16.msra.mxu0 %v1369
        %1864 = vmatprep.subr.bf16.mxu0 %v1374
        %1865 = vmatpush1.bf16.msra.mxu0 %v1373
        %1866 = vmatprep.subr.bf16.mxu0 %v1378
        %1867 = vmatpush1.bf16.msra.mxu0 %v1377
        %1868 = vmatprep.subr.bf16.mxu0 %v1382
        %1869 = vmatpush1.bf16.msra.mxu0 %v1381
        %1870 = vmatprep.subr.bf16.mxu0 %v1386
        %1871 = vmatpush1.bf16.msra.mxu0 %v1385
        %1872 = vmatprep.subr.bf16.mxu0 %v1390
        %1873 = vmatpush1.bf16.msra.mxu0 %v1389
        %1874 = vmatprep.subr.bf16.mxu0 %v1394
        %1875 = vmatpush1.bf16.msra.mxu0 %v1393
        %1876 = vmatprep.subr.bf16.mxu0 %v1398
        %1877 = vmatpush1.bf16.msra.mxu0 %v1397
        %1878 = vmatprep.subr.bf16.mxu0 %v1402
        %1879 = vmatpush1.bf16.msra.mxu0 %v1401
        %1880 = vmatprep.subr.bf16.mxu0 %v1406
        %1881 = vmatpush1.bf16.msra.mxu0 %v1405
        %1882 = vmatprep.mubr.bf16.mxu0 %v732
        %1883 = vmatmul.mubr.bf16.gmra.mrb[0].mxu0 %v725
        %v1884 = vpop.f32.mrb[0].mxu0
        %v1885 = vadd.f32 0.0, %v1884
        %v1886 = vpop.f32.mrb[0].mxu0
        %v1887 = vadd.f32 0.0, %v1886
        %v1888 = vpop.f32.mrb[0].mxu0
        %v1889 = vpop.f32.mrb[0].mxu0
        %1890 = vdwg.mxu0
        %1891 = vmatprep.subr.bf16.mxu0 %v1410
        %1892 = vmatpush1.bf16.msra.mxu0 %v1409
        %1893 = vmatprep.subr.bf16.mxu0 %v1414
        %1894 = vmatpush1.bf16.msra.mxu0 %v1413
        %1895 = vmatprep.subr.bf16.mxu0 %v1418
        %1896 = vmatpush1.bf16.msra.mxu0 %v1417
        %1897 = vmatprep.subr.bf16.mxu0 %v1422
        %1898 = vmatpush1.bf16.msra.mxu0 %v1421
        %1899 = vmatprep.subr.bf16.mxu0 %v1426
        %1900 = vmatpush1.bf16.msra.mxu0 %v1425
        %1901 = vmatprep.subr.bf16.mxu0 %v1430
        %1902 = vmatpush1.bf16.msra.mxu0 %v1429
        %1903 = vmatprep.subr.bf16.mxu0 %v1434
        %1904 = vmatpush1.bf16.msra.mxu0 %v1433
        %1905 = vmatprep.subr.bf16.mxu0 %v1438
        %1906 = vmatpush1.bf16.msra.mxu0 %v1437
        %1907 = vmatprep.subr.bf16.mxu0 %v1442
        %1908 = vmatpush1.bf16.msra.mxu0 %v1441
        %1909 = vmatprep.subr.bf16.mxu0 %v1446
        %1910 = vmatpush1.bf16.msra.mxu0 %v1445
        %1911 = vmatprep.subr.bf16.mxu0 %v1450
        %1912 = vmatpush1.bf16.msra.mxu0 %v1449
        %1913 = vmatprep.subr.bf16.mxu0 %v1454
        %1914 = vmatpush1.bf16.msra.mxu0 %v1453
        %1915 = vmatprep.subr.bf16.mxu0 %v1458
        %1916 = vmatpush1.bf16.msra.mxu0 %v1457
        %1917 = vmatprep.subr.bf16.mxu0 %v1462
        %1918 = vmatpush1.bf16.msra.mxu0 %v1461
        %1919 = vmatprep.subr.bf16.mxu0 %v1466
        %1920 = vmatpush1.bf16.msra.mxu0 %v1465
        %1921 = vmatprep.subr.bf16.mxu0 %v1470
        %1922 = vmatpush1.bf16.msra.mxu0 %v1469
        %1923 = vmatprep.mubr.bf16.mxu0 %v746
        %1924 = vmatmul.mubr.bf16.gmra.mrb[0].mxu0 %v739
        %v1925 = vpop.f32.mrb[0].mxu0
        %v1926 = vadd.f32 %v1885, %v1925
        %v1927 = vpop.f32.mrb[0].mxu0
        %v1928 = vadd.f32 %v1887, %v1927
        %v1929 = vpop.f32.mrb[0].mxu0
        %v1930 = vpop.f32.mrb[0].mxu0
        %1931 = vdwg.mxu0
        %1932 = vmatprep.subr.bf16.mxu0 %v1474
        %1933 = vmatpush1.bf16.msra.mxu0 %v1473
        %1934 = vmatprep.subr.bf16.mxu0 %v1478
        %1935 = vmatpush1.bf16.msra.mxu0 %v1477
        %1936 = vmatprep.subr.bf16.mxu0 %v1482
        %1937 = vmatpush1.bf16.msra.mxu0 %v1481
        %1938 = vmatprep.subr.bf16.mxu0 %v1486
        %1939 = vmatpush1.bf16.msra.mxu0 %v1485
        %1940 = vmatprep.subr.bf16.mxu0 %v1490
        %1941 = vmatpush1.bf16.msra.mxu0 %v1489
        %1942 = vmatprep.subr.bf16.mxu0 %v1494
        %1943 = vmatpush1.bf16.msra.mxu0 %v1493
        %1944 = vmatprep.subr.bf16.mxu0 %v1498
        %1945 = vmatpush1.bf16.msra.mxu0 %v1497
        %1946 = vmatprep.subr.bf16.mxu0 %v1502
        %1947 = vmatpush1.bf16.msra.mxu0 %v1501
        %1948 = vmatprep.subr.bf16.mxu0 %v1506
        %1949 = vmatpush1.bf16.msra.mxu0 %v1505
        %1950 = vmatprep.subr.bf16.mxu0 %v1510
        %1951 = vmatpush1.bf16.msra.mxu0 %v1509
        %1952 = vmatprep.subr.bf16.mxu0 %v1514
        %1953 = vmatpush1.bf16.msra.mxu0 %v1513
        %1954 = vmatprep.subr.bf16.mxu0 %v1518
        %1955 = vmatpush1.bf16.msra.mxu0 %v1517
        %1956 = vmatprep.subr.bf16.mxu0 %v1522
        %1957 = vmatpush1.bf16.msra.mxu0 %v1521
        %1958 = vmatprep.subr.bf16.mxu0 %v1526
        %1959 = vmatpush1.bf16.msra.mxu0 %v1525
        %1960 = vmatprep.subr.bf16.mxu0 %v1530
        %1961 = vmatpush1.bf16.msra.mxu0 %v1529
        %1962 = vmatprep.subr.bf16.mxu0 %v1534
        %1963 = vmatpush1.bf16.msra.mxu0 %v1533
        %1964 = vmatprep.mubr.bf16.mxu0 %v760
        %1965 = vmatmul.mubr.bf16.gmra.mrb[0].mxu0 %v753
        %v1966 = vpop.f32.mrb[0].mxu0
        %v1967 = vadd.f32 %v1926, %v1966
        %v1968 = vpop.f32.mrb[0].mxu0
        %v1969 = vadd.f32 %v1928, %v1968
        %v1970 = vpop.f32.mrb[0].mxu0
        %v1971 = vpop.f32.mrb[0].mxu0
        %1972 = vdwg.mxu0
        %v1973 = vpack.c.b16 %v701, %v701
        %v1974 = vpack.c.b16 %v702, %v702
        %v1975 = vpack.c.b16 %v703, %v703
        %v1976 = vpack.c.b16 %v704, %v704
        %v1977 = vpack.c.b16 %v705, %v705
        %v1978 = vpack.c.b16 %v706, %v706
        %v2177 = vunpack.c.l.b16 %v307
        %v2178 = vunpack.c.h.b16 %v307
        %v2179 = vunpack.c.l.b16 %v308
        %v2180 = vunpack.c.h.b16 %v308
        %v2181 = vunpack.c.l.b16 %v309
        %v2182 = vunpack.c.h.b16 %v309
        %v2183 = vunpack.c.l.b16 %v310
        %v2184 = vunpack.c.h.b16 %v310
        %v2185 = vunpack.c.l.b16 %v311
        %v2186 = vunpack.c.h.b16 %v311
        %v2187 = vunpack.c.l.b16 %v312
        %v2188 = vunpack.c.h.b16 %v312
        %v2189 = vunpack.c.l.b16 %v313
        %v2190 = vunpack.c.h.b16 %v313
        %v2191 = vunpack.c.l.b16 %v314
        %v2192 = vunpack.c.h.b16 %v314
        %v2193 = vunpack.c.l.b16 %v315
        %v2194 = vunpack.c.h.b16 %v315
        %v2195 = vunpack.c.l.b16 %v316
        %v2196 = vunpack.c.h.b16 %v316
        %v2197 = vunpack.c.l.b16 %v317
        %v2198 = vunpack.c.h.b16 %v317
        %v2199 = vunpack.c.l.b16 %v318
        %v2200 = vunpack.c.h.b16 %v318
        %v2201 = vunpack.c.l.b16 %v319
        %v2202 = vunpack.c.h.b16 %v319
        %v2203 = vunpack.c.l.b16 %v320
        %v2204 = vunpack.c.h.b16 %v320
        %v2205 = vunpack.c.l.b16 %v321
        %v2206 = vunpack.c.h.b16 %v321
        %v2207 = vunpack.c.l.b16 %v322
        %v2208 = vunpack.c.h.b16 %v322
        %v2209 = vunpack.c.l.b16 %v323
        %v2210 = vunpack.c.h.b16 %v323
        %v2211 = vunpack.c.l.b16 %v324
        %v2212 = vunpack.c.h.b16 %v324
        %v2213 = vunpack.c.l.b16 %v325
        %v2214 = vunpack.c.h.b16 %v325
        %v2215 = vunpack.c.l.b16 %v326
        %v2216 = vunpack.c.h.b16 %v326
        %v2217 = vunpack.c.l.b16 %v327
        %v2218 = vunpack.c.h.b16 %v327
        %v2219 = vunpack.c.l.b16 %v328
        %v2220 = vunpack.c.h.b16 %v328
        %v2221 = vunpack.c.l.b16 %v329
        %v2222 = vunpack.c.h.b16 %v329
        %v2223 = vunpack.c.l.b16 %v330
        %v2224 = vunpack.c.h.b16 %v330
        %v2225 = vunpack.c.l.b16 %v331
        %v2226 = vunpack.c.h.b16 %v331
        %v2227 = vunpack.c.l.b16 %v332
        %v2228 = vunpack.c.h.b16 %v332
        %v2229 = vunpack.c.l.b16 %v333
        %v2230 = vunpack.c.h.b16 %v333
        %v2231 = vunpack.c.l.b16 %v334
        %v2232 = vunpack.c.h.b16 %v334
        %v2233 = vunpack.c.l.b16 %v335
        %v2234 = vunpack.c.h.b16 %v335
        %v2235 = vunpack.c.l.b16 %v336
        %v2236 = vunpack.c.h.b16 %v336
        %v2237 = vunpack.c.l.b16 %v337
        %v2238 = vunpack.c.h.b16 %v337
        %v2239 = vunpack.c.l.b16 %v338
        %v2240 = vunpack.c.h.b16 %v338
        %v2241 = vunpack.c.l.b16 %v339
        %v2242 = vunpack.c.h.b16 %v339
        %v2243 = vunpack.c.l.b16 %v340
        %v2244 = vunpack.c.h.b16 %v340
        %v2245 = vunpack.c.l.b16 %v341
        %v2246 = vunpack.c.h.b16 %v341
        %v2247 = vunpack.c.l.b16 %v342
        %v2248 = vunpack.c.h.b16 %v342
        %v2249 = vunpack.c.l.b16 %v343
        %v2250 = vunpack.c.h.b16 %v343
        %v2251 = vunpack.c.l.b16 %v344
        %v2252 = vunpack.c.h.b16 %v344
        %v2253 = vunpack.c.l.b16 %v345
        %v2254 = vunpack.c.h.b16 %v345
        %v2255 = vunpack.c.l.b16 %v346
        %v2256 = vunpack.c.h.b16 %v346
        %v2257 = vunpack.c.l.b16 %v347
        %v2258 = vunpack.c.h.b16 %v347
        %v2259 = vunpack.c.l.b16 %v348
        %v2260 = vunpack.c.h.b16 %v348
        %v2261 = vunpack.c.l.b16 %v349
        %v2262 = vunpack.c.h.b16 %v349
        %v2263 = vunpack.c.l.b16 %v350
        %v2264 = vunpack.c.h.b16 %v350
        %v2265 = vunpack.c.l.b16 %v351
        %v2266 = vunpack.c.h.b16 %v351
        %v2267 = vunpack.c.l.b16 %v352
        %v2268 = vunpack.c.h.b16 %v352
        %v2269 = vunpack.c.l.b16 %v353
        %v2270 = vunpack.c.h.b16 %v353
        %v2271 = vunpack.c.l.b16 %v354
        %v2272 = vunpack.c.h.b16 %v354
        %v2273 = vunpack.c.l.b16 %v355
        %v2274 = vunpack.c.h.b16 %v355
        %v2275 = vunpack.c.l.b16 %v356
        %v2276 = vunpack.c.h.b16 %v356
        %v2277 = vunpack.c.l.b16 %v357
        %v2278 = vunpack.c.h.b16 %v357
        %v2279 = vunpack.c.l.b16 %v358
        %v2280 = vunpack.c.h.b16 %v358
        %v2281 = vunpack.c.l.b16 %v359
        %v2282 = vunpack.c.h.b16 %v359
        %v2283 = vunpack.c.l.b16 %v360
        %v2284 = vunpack.c.h.b16 %v360
        %v2285 = vunpack.c.l.b16 %v361
        %v2286 = vunpack.c.h.b16 %v361
        %v2287 = vunpack.c.l.b16 %v362
        %v2288 = vunpack.c.h.b16 %v362
        %v2289 = vunpack.c.l.b16 %v363
        %v2290 = vunpack.c.h.b16 %v363
        %v2291 = vunpack.c.l.b16 %v364
        %v2292 = vunpack.c.h.b16 %v364
        %v2293 = vunpack.c.l.b16 %v365
        %v2294 = vunpack.c.h.b16 %v365
        %v2295 = vunpack.c.l.b16 %v366
        %v2296 = vunpack.c.h.b16 %v366
        %v2297 = vunpack.c.l.b16 %v367
        %v2298 = vunpack.c.h.b16 %v367
        %v2299 = vunpack.c.l.b16 %v368
        %v2300 = vunpack.c.h.b16 %v368
        %v2301 = vunpack.c.l.b16 %v369
        %v2302 = vunpack.c.h.b16 %v369
        %v2303 = vunpack.c.l.b16 %v370
        %v2304 = vunpack.c.h.b16 %v370
        %v2305 = vunpack.c.l.b16 %v371
        %v2306 = vunpack.c.h.b16 %v371
        %v2307 = vunpack.c.l.b16 %v372
        %v2308 = vunpack.c.h.b16 %v372
        %v2309 = vunpack.c.l.b16 %v373
        %v2310 = vunpack.c.h.b16 %v373
        %v2311 = vunpack.c.l.b16 %v374
        %v2312 = vunpack.c.h.b16 %v374
        %v2313 = vunpack.c.l.b16 %v375
        %v2314 = vunpack.c.h.b16 %v375
        %v2315 = vunpack.c.l.b16 %v376
        %v2316 = vunpack.c.h.b16 %v376
        %v2317 = vunpack.c.l.b16 %v377
        %v2318 = vunpack.c.h.b16 %v377
        %v2319 = vunpack.c.l.b16 %v378
        %v2320 = vunpack.c.h.b16 %v378
        %v2321 = vunpack.c.l.b16 %v379
        %v2322 = vunpack.c.h.b16 %v379
        %v2323 = vunpack.c.l.b16 %v380
        %v2324 = vunpack.c.h.b16 %v380
        %v2325 = vunpack.c.l.b16 %v381
        %v2326 = vunpack.c.h.b16 %v381
        %v2327 = vunpack.c.l.b16 %v382
        %v2328 = vunpack.c.h.b16 %v382
        %v2329 = vunpack.c.l.b16 %v383
        %v2330 = vunpack.c.h.b16 %v383
        %v2331 = vunpack.c.l.b16 %v384
        %v2332 = vunpack.c.h.b16 %v384
        %v2333 = vunpack.c.l.b16 %v385
        %v2334 = vunpack.c.h.b16 %v385
        %v2335 = vunpack.c.l.b16 %v386
        %v2336 = vunpack.c.h.b16 %v386
        %v2337 = vunpack.c.l.b16 %v387
        %v2338 = vunpack.c.h.b16 %v387
        %v2339 = vunpack.c.l.b16 %v388
        %v2340 = vunpack.c.h.b16 %v388
        %v2341 = vunpack.c.l.b16 %v389
        %v2342 = vunpack.c.h.b16 %v389
        %v2343 = vunpack.c.l.b16 %v390
        %v2344 = vunpack.c.h.b16 %v390
        %v2345 = vunpack.c.l.b16 %v391
        %v2346 = vunpack.c.h.b16 %v391
        %v2347 = vunpack.c.l.b16 %v392
        %v2348 = vunpack.c.h.b16 %v392
        %v2349 = vunpack.c.l.b16 %v393
        %v2350 = vunpack.c.h.b16 %v393
        %v2351 = vunpack.c.l.b16 %v394
        %v2352 = vunpack.c.h.b16 %v394
        %v2353 = vunpack.c.l.b16 %v395
        %v2354 = vunpack.c.h.b16 %v395
        %v2355 = vunpack.c.l.b16 %v396
        %v2356 = vunpack.c.h.b16 %v396
        %v2357 = vunpack.c.l.b16 %v397
        %v2358 = vunpack.c.h.b16 %v397
        %v2359 = vunpack.c.l.b16 %v398
        %v2360 = vunpack.c.h.b16 %v398
        %v2361 = vunpack.c.l.b16 %v399
        %v2362 = vunpack.c.h.b16 %v399
        %v2363 = vunpack.c.l.b16 %v400
        %v2364 = vunpack.c.h.b16 %v400
        %v2365 = vunpack.c.l.b16 %v401
        %v2366 = vunpack.c.h.b16 %v401
        %v2367 = vunpack.c.l.b16 %v402
        %v2368 = vunpack.c.h.b16 %v402
        %v2369 = vunpack.c.l.b16 %v403
        %v2370 = vunpack.c.h.b16 %v403
        %v2371 = vunpack.c.l.b16 %v404
        %v2372 = vunpack.c.h.b16 %v404
        %v2373 = vunpack.c.l.b16 %v405
        %v2374 = vunpack.c.h.b16 %v405
        %v2375 = vunpack.c.l.b16 %v406
        %v2376 = vunpack.c.h.b16 %v406
        %v2377 = vunpack.c.l.b16 %v407
        %v2378 = vunpack.c.h.b16 %v407
        %v2379 = vunpack.c.l.b16 %v408
        %v2380 = vunpack.c.h.b16 %v408
        %v2381 = vunpack.c.l.b16 %v409
        %v2382 = vunpack.c.h.b16 %v409
        %v2383 = vunpack.c.l.b16 %v410
        %v2384 = vunpack.c.h.b16 %v410
        %v2385 = vunpack.c.l.b16 %v411
        %v2386 = vunpack.c.h.b16 %v411
        %v2387 = vunpack.c.l.b16 %v412
        %v2388 = vunpack.c.h.b16 %v412
        %v2389 = vunpack.c.l.b16 %v413
        %v2390 = vunpack.c.h.b16 %v413
        %v2391 = vunpack.c.l.b16 %v414
        %v2392 = vunpack.c.h.b16 %v414
        %v2393 = vunpack.c.l.b16 %v415
        %v2394 = vunpack.c.h.b16 %v415
        %v2395 = vunpack.c.l.b16 %v416
        %v2396 = vunpack.c.h.b16 %v416
        %v2397 = vunpack.c.l.b16 %v417
        %v2398 = vunpack.c.h.b16 %v417
        %v2399 = vunpack.c.l.b16 %v418
        %v2400 = vunpack.c.h.b16 %v418
        %v2401 = vunpack.c.l.b16 %v419
        %v2402 = vunpack.c.h.b16 %v419
        %v2403 = vunpack.c.l.b16 %v420
        %v2404 = vunpack.c.h.b16 %v420
        %v2405 = vunpack.c.l.b16 %v421
        %v2406 = vunpack.c.h.b16 %v421
        %v2407 = vunpack.c.l.b16 %v422
        %v2408 = vunpack.c.h.b16 %v422
        %v2409 = vunpack.c.l.b16 %v423
        %v2410 = vunpack.c.h.b16 %v423
        %v2411 = vunpack.c.l.b16 %v424
        %v2412 = vunpack.c.h.b16 %v424
        %v2413 = vunpack.c.l.b16 %v425
        %v2414 = vunpack.c.h.b16 %v425
        %v2415 = vunpack.c.l.b16 %v426
        %v2416 = vunpack.c.h.b16 %v426
        %v2417 = vunpack.c.l.b16 %v427
        %v2418 = vunpack.c.h.b16 %v427
        %v2419 = vunpack.c.l.b16 %v428
        %v2420 = vunpack.c.h.b16 %v428
        %v2421 = vunpack.c.l.b16 %v429
        %v2422 = vunpack.c.h.b16 %v429
        %v2423 = vunpack.c.l.b16 %v430
        %v2424 = vunpack.c.h.b16 %v430
        %v2425 = vunpack.c.l.b16 %v431
        %v2426 = vunpack.c.h.b16 %v431
        %v2427 = vunpack.c.l.b16 %v432
        %v2428 = vunpack.c.h.b16 %v432
        %v2429 = vunpack.c.l.b16 %v433
        %v2430 = vunpack.c.h.b16 %v433
        %v2431 = vunpack.c.l.b16 %v434
        %v2432 = vunpack.c.h.b16 %v434
        %v2433 = vunpack.c.l.b16 %v435
        %v2434 = vunpack.c.h.b16 %v435
        %v2435 = vunpack.c.l.b16 %v436
        %v2436 = vunpack.c.h.b16 %v436
        %v2437 = vunpack.c.l.b16 %v437
        %v2438 = vunpack.c.h.b16 %v437
        %v2439 = vunpack.c.l.b16 %v438
        %v2440 = vunpack.c.h.b16 %v438
        %v2441 = vunpack.c.l.b16 %v439
        %v2442 = vunpack.c.h.b16 %v439
        %v2443 = vunpack.c.l.b16 %v440
        %v2444 = vunpack.c.h.b16 %v440
        %v2445 = vunpack.c.l.b16 %v441
        %v2446 = vunpack.c.h.b16 %v441
        %v2447 = vunpack.c.l.b16 %v442
        %v2448 = vunpack.c.h.b16 %v442
        %v2449 = vunpack.c.l.b16 %v443
        %v2450 = vunpack.c.h.b16 %v443
        %v2451 = vunpack.c.l.b16 %v444
        %v2452 = vunpack.c.h.b16 %v444
        %v2453 = vunpack.c.l.b16 %v445
        %v2454 = vunpack.c.h.b16 %v445
        %v2455 = vunpack.c.l.b16 %v446
        %v2456 = vunpack.c.h.b16 %v446
        %v2457 = vunpack.c.l.b16 %v447
        %v2458 = vunpack.c.h.b16 %v447
        %v2459 = vunpack.c.l.b16 %v448
        %v2460 = vunpack.c.h.b16 %v448
        %v2461 = vunpack.c.l.b16 %v449
        %v2462 = vunpack.c.h.b16 %v449
        %v2463 = vunpack.c.l.b16 %v450
        %v2464 = vunpack.c.h.b16 %v450
        %v2465 = vunpack.c.l.b16 %v451
        %v2466 = vunpack.c.h.b16 %v451
        %v2467 = vunpack.c.l.b16 %v452
        %v2468 = vunpack.c.h.b16 %v452
        %v2469 = vunpack.c.l.b16 %v453
        %v2470 = vunpack.c.h.b16 %v453
        %v2471 = vunpack.c.l.b16 %v454
        %v2472 = vunpack.c.h.b16 %v454
        %v2473 = vunpack.c.l.b16 %v455
        %v2474 = vunpack.c.h.b16 %v455
        %v2475 = vunpack.c.l.b16 %v456
        %v2476 = vunpack.c.h.b16 %v456
        %v2477 = vunpack.c.l.b16 %v457
        %v2478 = vunpack.c.h.b16 %v457
        %v2479 = vunpack.c.l.b16 %v458
        %v2480 = vunpack.c.h.b16 %v458
        %v2481 = vunpack.c.l.b16 %v459
        %v2482 = vunpack.c.h.b16 %v459
        %v2483 = vunpack.c.l.b16 %v460
        %v2484 = vunpack.c.h.b16 %v460
        %v2485 = vunpack.c.l.b16 %v461
        %v2486 = vunpack.c.h.b16 %v461
        %v2487 = vunpack.c.l.b16 %v462
        %v2488 = vunpack.c.h.b16 %v462
        %v2489 = vunpack.c.l.b16 %v463
        %v2490 = vunpack.c.h.b16 %v463
        %v2491 = vunpack.c.l.b16 %v464
        %v2492 = vunpack.c.h.b16 %v464
        %v2493 = vunpack.c.l.b16 %v465
        %v2494 = vunpack.c.h.b16 %v465
        %v2495 = vunpack.c.l.b16 %v466
        %v2496 = vunpack.c.h.b16 %v466
        %v2497 = vunpack.c.l.b16 %v467
        %v2498 = vunpack.c.h.b16 %v467
        %v2499 = vunpack.c.l.b16 %v468
        %v2500 = vunpack.c.h.b16 %v468
        %v2501 = vunpack.c.l.b16 %v469
        %v2502 = vunpack.c.h.b16 %v469
        %v2503 = vunpack.c.l.b16 %v470
        %v2504 = vunpack.c.h.b16 %v470
        %v2505 = vunpack.c.l.b16 %v471
        %v2506 = vunpack.c.h.b16 %v471
        %v2507 = vunpack.c.l.b16 %v472
        %v2508 = vunpack.c.h.b16 %v472
        %v2509 = vunpack.c.l.b16 %v473
        %v2510 = vunpack.c.h.b16 %v473
        %v2511 = vunpack.c.l.b16 %v474
        %v2512 = vunpack.c.h.b16 %v474
        %v2513 = vunpack.c.l.b16 %v475
        %v2514 = vunpack.c.h.b16 %v475
        %v2515 = vunpack.c.l.b16 %v476
        %v2516 = vunpack.c.h.b16 %v476
        %v2517 = vunpack.c.l.b16 %v477
        %v2518 = vunpack.c.h.b16 %v477
        %v2519 = vunpack.c.l.b16 %v478
        %v2520 = vunpack.c.h.b16 %v478
        %v2521 = vunpack.c.l.b16 %v479
        %v2522 = vunpack.c.h.b16 %v479
        %v2523 = vunpack.c.l.b16 %v480
        %v2524 = vunpack.c.h.b16 %v480
        %v2525 = vunpack.c.l.b16 %v481
        %v2526 = vunpack.c.h.b16 %v481
        %v2527 = vunpack.c.l.b16 %v482
        %v2528 = vunpack.c.h.b16 %v482
        %v2529 = vunpack.c.l.b16 %v483
        %v2530 = vunpack.c.h.b16 %v483
        %v2531 = vunpack.c.l.b16 %v484
        %v2532 = vunpack.c.h.b16 %v484
        %v2533 = vunpack.c.l.b16 %v485
        %v2534 = vunpack.c.h.b16 %v485
        %v2535 = vunpack.c.l.b16 %v486
        %v2536 = vunpack.c.h.b16 %v486
        %v2537 = vunpack.c.l.b16 %v487
        %v2538 = vunpack.c.h.b16 %v487
        %v2539 = vunpack.c.l.b16 %v488
        %v2540 = vunpack.c.h.b16 %v488
        %v2541 = vunpack.c.l.b16 %v489
        %v2542 = vunpack.c.h.b16 %v489
        %v2543 = vunpack.c.l.b16 %v490
        %v2544 = vunpack.c.h.b16 %v490
        %v2545 = vunpack.c.l.b16 %v491
        %v2546 = vunpack.c.h.b16 %v491
        %v2547 = vunpack.c.l.b16 %v492
        %v2548 = vunpack.c.h.b16 %v492
        %v2549 = vunpack.c.l.b16 %v493
        %v2550 = vunpack.c.h.b16 %v493
        %v2551 = vunpack.c.l.b16 %v494
        %v2552 = vunpack.c.h.b16 %v494
        %v2553 = vunpack.c.l.b16 %v495
        %v2554 = vunpack.c.h.b16 %v495
        %v2555 = vunpack.c.l.b16 %v496
        %v2556 = vunpack.c.h.b16 %v496
        %v2557 = vunpack.c.l.b16 %v497
        %v2558 = vunpack.c.h.b16 %v497
        %v2559 = vunpack.c.l.b16 %v498
        %v2560 = vunpack.c.h.b16 %v498
        %v2561 = vpack.c.b16 %v2181, %v2177
        %v2562 = vpack.c.b16 %v2182, %v2178
        %v2563 = vpack.c.b16 %v2183, %v2179
        %v2564 = vpack.c.b16 %v2184, %v2180
        %v2565 = vpack.c.b16 %v2189, %v2185
        %v2566 = vpack.c.b16 %v2190, %v2186
        %v2567 = vpack.c.b16 %v2191, %v2187
        %v2568 = vpack.c.b16 %v2192, %v2188
        %v2569 = vpack.c.b16 %v2197, %v2193
        %v2570 = vpack.c.b16 %v2198, %v2194
        %v2571 = vpack.c.b16 %v2199, %v2195
        %v2572 = vpack.c.b16 %v2200, %v2196
        %v2573 = vpack.c.b16 %v2205, %v2201
        %v2574 = vpack.c.b16 %v2206, %v2202
        %v2575 = vpack.c.b16 %v2207, %v2203
        %v2576 = vpack.c.b16 %v2208, %v2204
        %v2577 = vpack.c.b16 %v2213, %v2209
        %v2578 = vpack.c.b16 %v2214, %v2210
        %v2579 = vpack.c.b16 %v2215, %v2211
        %v2580 = vpack.c.b16 %v2216, %v2212
        %v2581 = vpack.c.b16 %v2221, %v2217
        %v2582 = vpack.c.b16 %v2222, %v2218
        %v2583 = vpack.c.b16 %v2223, %v2219
        %v2584 = vpack.c.b16 %v2224, %v2220
        %v2585 = vpack.c.b16 %v2229, %v2225
        %v2586 = vpack.c.b16 %v2230, %v2226
        %v2587 = vpack.c.b16 %v2231, %v2227
        %v2588 = vpack.c.b16 %v2232, %v2228
        %v2589 = vpack.c.b16 %v2237, %v2233
        %v2590 = vpack.c.b16 %v2238, %v2234
        %v2591 = vpack.c.b16 %v2239, %v2235
        %v2592 = vpack.c.b16 %v2240, %v2236
        %v2593 = vpack.c.b16 %v2245, %v2241
        %v2594 = vpack.c.b16 %v2246, %v2242
        %v2595 = vpack.c.b16 %v2247, %v2243
        %v2596 = vpack.c.b16 %v2248, %v2244
        %v2597 = vpack.c.b16 %v2253, %v2249
        %v2598 = vpack.c.b16 %v2254, %v2250
        %v2599 = vpack.c.b16 %v2255, %v2251
        %v2600 = vpack.c.b16 %v2256, %v2252
        %v2601 = vpack.c.b16 %v2261, %v2257
        %v2602 = vpack.c.b16 %v2262, %v2258
        %v2603 = vpack.c.b16 %v2263, %v2259
        %v2604 = vpack.c.b16 %v2264, %v2260
        %v2605 = vpack.c.b16 %v2269, %v2265
        %v2606 = vpack.c.b16 %v2270, %v2266
        %v2607 = vpack.c.b16 %v2271, %v2267
        %v2608 = vpack.c.b16 %v2272, %v2268
        %v2609 = vpack.c.b16 %v2277, %v2273
        %v2610 = vpack.c.b16 %v2278, %v2274
        %v2611 = vpack.c.b16 %v2279, %v2275
        %v2612 = vpack.c.b16 %v2280, %v2276
        %v2613 = vpack.c.b16 %v2285, %v2281
        %v2614 = vpack.c.b16 %v2286, %v2282
        %v2615 = vpack.c.b16 %v2287, %v2283
        %v2616 = vpack.c.b16 %v2288, %v2284
        %v2617 = vpack.c.b16 %v2293, %v2289
        %v2618 = vpack.c.b16 %v2294, %v2290
        %v2619 = vpack.c.b16 %v2295, %v2291
        %v2620 = vpack.c.b16 %v2296, %v2292
        %v2621 = vpack.c.b16 %v2301, %v2297
        %v2622 = vpack.c.b16 %v2302, %v2298
        %v2623 = vpack.c.b16 %v2303, %v2299
        %v2624 = vpack.c.b16 %v2304, %v2300
        %v2625 = vpack.c.b16 %v2309, %v2305
        %v2626 = vpack.c.b16 %v2310, %v2306
        %v2627 = vpack.c.b16 %v2311, %v2307
        %v2628 = vpack.c.b16 %v2312, %v2308
        %v2629 = vpack.c.b16 %v2317, %v2313
        %v2630 = vpack.c.b16 %v2318, %v2314
        %v2631 = vpack.c.b16 %v2319, %v2315
        %v2632 = vpack.c.b16 %v2320, %v2316
        %v2633 = vpack.c.b16 %v2325, %v2321
        %v2634 = vpack.c.b16 %v2326, %v2322
        %v2635 = vpack.c.b16 %v2327, %v2323
        %v2636 = vpack.c.b16 %v2328, %v2324
        %v2637 = vpack.c.b16 %v2333, %v2329
        %v2638 = vpack.c.b16 %v2334, %v2330
        %v2639 = vpack.c.b16 %v2335, %v2331
        %v2640 = vpack.c.b16 %v2336, %v2332
        %v2641 = vpack.c.b16 %v2341, %v2337
        %v2642 = vpack.c.b16 %v2342, %v2338
        %v2643 = vpack.c.b16 %v2343, %v2339
        %v2644 = vpack.c.b16 %v2344, %v2340
        %v2645 = vpack.c.b16 %v2349, %v2345
        %v2646 = vpack.c.b16 %v2350, %v2346
        %v2647 = vpack.c.b16 %v2351, %v2347
        %v2648 = vpack.c.b16 %v2352, %v2348
        %v2649 = vpack.c.b16 %v2357, %v2353
        %v2650 = vpack.c.b16 %v2358, %v2354
        %v2651 = vpack.c.b16 %v2359, %v2355
        %v2652 = vpack.c.b16 %v2360, %v2356
        %v2653 = vpack.c.b16 %v2365, %v2361
        %v2654 = vpack.c.b16 %v2366, %v2362
        %v2655 = vpack.c.b16 %v2367, %v2363
        %v2656 = vpack.c.b16 %v2368, %v2364
        %v2657 = vpack.c.b16 %v2373, %v2369
        %v2658 = vpack.c.b16 %v2374, %v2370
        %v2659 = vpack.c.b16 %v2375, %v2371
        %v2660 = vpack.c.b16 %v2376, %v2372
        %v2661 = vpack.c.b16 %v2381, %v2377
        %v2662 = vpack.c.b16 %v2382, %v2378
        %v2663 = vpack.c.b16 %v2383, %v2379
        %v2664 = vpack.c.b16 %v2384, %v2380
        %v2665 = vpack.c.b16 %v2389, %v2385
        %v2666 = vpack.c.b16 %v2390, %v2386
        %v2667 = vpack.c.b16 %v2391, %v2387
        %v2668 = vpack.c.b16 %v2392, %v2388
        %v2669 = vpack.c.b16 %v2397, %v2393
        %v2670 = vpack.c.b16 %v2398, %v2394
        %v2671 = vpack.c.b16 %v2399, %v2395
        %v2672 = vpack.c.b16 %v2400, %v2396
        %v2673 = vpack.c.b16 %v2405, %v2401
        %v2674 = vpack.c.b16 %v2406, %v2402
        %v2675 = vpack.c.b16 %v2407, %v2403
        %v2676 = vpack.c.b16 %v2408, %v2404
        %v2677 = vpack.c.b16 %v2413, %v2409
        %v2678 = vpack.c.b16 %v2414, %v2410
        %v2679 = vpack.c.b16 %v2415, %v2411
        %v2680 = vpack.c.b16 %v2416, %v2412
        %v2681 = vpack.c.b16 %v2421, %v2417
        %v2682 = vpack.c.b16 %v2422, %v2418
        %v2683 = vpack.c.b16 %v2423, %v2419
        %v2684 = vpack.c.b16 %v2424, %v2420
        %v2685 = vpack.c.b16 %v2429, %v2425
        %v2686 = vpack.c.b16 %v2430, %v2426
        %v2687 = vpack.c.b16 %v2431, %v2427
        %v2688 = vpack.c.b16 %v2432, %v2428
        %v2689 = vpack.c.b16 %v2437, %v2433
        %v2690 = vpack.c.b16 %v2438, %v2434
        %v2691 = vpack.c.b16 %v2439, %v2435
        %v2692 = vpack.c.b16 %v2440, %v2436
        %v2693 = vpack.c.b16 %v2445, %v2441
        %v2694 = vpack.c.b16 %v2446, %v2442
        %v2695 = vpack.c.b16 %v2447, %v2443
        %v2696 = vpack.c.b16 %v2448, %v2444
        %v2697 = vpack.c.b16 %v2453, %v2449
        %v2698 = vpack.c.b16 %v2454, %v2450
        %v2699 = vpack.c.b16 %v2455, %v2451
        %v2700 = vpack.c.b16 %v2456, %v2452
        %v2701 = vpack.c.b16 %v2461, %v2457
        %v2702 = vpack.c.b16 %v2462, %v2458
        %v2703 = vpack.c.b16 %v2463, %v2459
        %v2704 = vpack.c.b16 %v2464, %v2460
        %v2705 = vpack.c.b16 %v2469, %v2465
        %v2706 = vpack.c.b16 %v2470, %v2466
        %v2707 = vpack.c.b16 %v2471, %v2467
        %v2708 = vpack.c.b16 %v2472, %v2468
        %v2709 = vpack.c.b16 %v2477, %v2473
        %v2710 = vpack.c.b16 %v2478, %v2474
        %v2711 = vpack.c.b16 %v2479, %v2475
        %v2712 = vpack.c.b16 %v2480, %v2476
        %v2713 = vpack.c.b16 %v2485, %v2481
        %v2714 = vpack.c.b16 %v2486, %v2482
        %v2715 = vpack.c.b16 %v2487, %v2483
        %v2716 = vpack.c.b16 %v2488, %v2484
        %v2717 = vpack.c.b16 %v2493, %v2489
        %v2718 = vpack.c.b16 %v2494, %v2490
        %v2719 = vpack.c.b16 %v2495, %v2491
        %v2720 = vpack.c.b16 %v2496, %v2492
        %v2721 = vpack.c.b16 %v2501, %v2497
        %v2722 = vpack.c.b16 %v2502, %v2498
        %v2723 = vpack.c.b16 %v2503, %v2499
        %v2724 = vpack.c.b16 %v2504, %v2500
        %v2725 = vpack.c.b16 %v2509, %v2505
        %v2726 = vpack.c.b16 %v2510, %v2506
        %v2727 = vpack.c.b16 %v2511, %v2507
        %v2728 = vpack.c.b16 %v2512, %v2508
        %v2729 = vpack.c.b16 %v2517, %v2513
        %v2730 = vpack.c.b16 %v2518, %v2514
        %v2731 = vpack.c.b16 %v2519, %v2515
        %v2732 = vpack.c.b16 %v2520, %v2516
        %v2733 = vpack.c.b16 %v2525, %v2521
        %v2734 = vpack.c.b16 %v2526, %v2522
        %v2735 = vpack.c.b16 %v2527, %v2523
        %v2736 = vpack.c.b16 %v2528, %v2524
        %v2737 = vpack.c.b16 %v2533, %v2529
        %v2738 = vpack.c.b16 %v2534, %v2530
        %v2739 = vpack.c.b16 %v2535, %v2531
        %v2740 = vpack.c.b16 %v2536, %v2532
        %v2741 = vpack.c.b16 %v2541, %v2537
        %v2742 = vpack.c.b16 %v2542, %v2538
        %v2743 = vpack.c.b16 %v2543, %v2539
        %v2744 = vpack.c.b16 %v2544, %v2540
        %v2745 = vpack.c.b16 %v2549, %v2545
        %v2746 = vpack.c.b16 %v2550, %v2546
        %v2747 = vpack.c.b16 %v2551, %v2547
        %v2748 = vpack.c.b16 %v2552, %v2548
        %v2749 = vpack.c.b16 %v2557, %v2553
        %v2750 = vpack.c.b16 %v2558, %v2554
        %v2751 = vpack.c.b16 %v2559, %v2555
        %v2752 = vpack.c.b16 %v2560, %v2556
        %2945 = vmatprep.subr.bf16.mxu0 %v2562
        %2946 = vmatpush1.bf16.msra.mxu0 %v2561
        %2947 = vmatprep.subr.bf16.mxu0 %v2566
        %2948 = vmatpush1.bf16.msra.mxu0 %v2565
        %2949 = vmatprep.subr.bf16.mxu0 %v2570
        %2950 = vmatpush1.bf16.msra.mxu0 %v2569
        %2951 = vmatprep.subr.bf16.mxu0 %v2574
        %2952 = vmatpush1.bf16.msra.mxu0 %v2573
        %2953 = vmatprep.subr.bf16.mxu0 %v2578
        %2954 = vmatpush1.bf16.msra.mxu0 %v2577
        %2955 = vmatprep.subr.bf16.mxu0 %v2582
        %2956 = vmatpush1.bf16.msra.mxu0 %v2581
        %2957 = vmatprep.subr.bf16.mxu0 %v2586
        %2958 = vmatpush1.bf16.msra.mxu0 %v2585
        %2959 = vmatprep.subr.bf16.mxu0 %v2590
        %2960 = vmatpush1.bf16.msra.mxu0 %v2589
        %2961 = vmatprep.subr.bf16.mxu0 %v2594
        %2962 = vmatpush1.bf16.msra.mxu0 %v2593
        %2963 = vmatprep.subr.bf16.mxu0 %v2598
        %2964 = vmatpush1.bf16.msra.mxu0 %v2597
        %2965 = vmatprep.subr.bf16.mxu0 %v2602
        %2966 = vmatpush1.bf16.msra.mxu0 %v2601
        %2967 = vmatprep.subr.bf16.mxu0 %v2606
        %2968 = vmatpush1.bf16.msra.mxu0 %v2605
        %2969 = vmatprep.subr.bf16.mxu0 %v2610
        %2970 = vmatpush1.bf16.msra.mxu0 %v2609
        %2971 = vmatprep.subr.bf16.mxu0 %v2614
        %2972 = vmatpush1.bf16.msra.mxu0 %v2613
        %2973 = vmatprep.subr.bf16.mxu0 %v2618
        %2974 = vmatpush1.bf16.msra.mxu0 %v2617
        %2975 = vmatprep.subr.bf16.mxu0 %v2622
        %2976 = vmatpush1.bf16.msra.mxu0 %v2621
        %2977 = vmatprep.mubr.bf16.mxu0 %v1974
        %2978 = vmatmul.mubr.bf16.gmra.mrb[0].mxu0 %v1973
        %v2979 = vpop.f32.mrb[0].mxu0
        %v2980 = vadd.f32 %v1844, %v2979
        %v2981 = vpop.f32.mrb[0].mxu0
        %v2982 = vadd.f32 %v1846, %v2981
        %v2983 = vpop.f32.mrb[0].mxu0
        %v2984 = vpop.f32.mrb[0].mxu0
        %2985 = vdwg.mxu0
        %2986 = vmatprep.subr.bf16.mxu0 %v2626
        %2987 = vmatpush1.bf16.msra.mxu0 %v2625
        %2988 = vmatprep.subr.bf16.mxu0 %v2630
        %2989 = vmatpush1.bf16.msra.mxu0 %v2629
        %2990 = vmatprep.subr.bf16.mxu0 %v2634
        %2991 = vmatpush1.bf16.msra.mxu0 %v2633
        %2992 = vmatprep.subr.bf16.mxu0 %v2638
        %2993 = vmatpush1.bf16.msra.mxu0 %v2637
        %2994 = vmatprep.subr.bf16.mxu0 %v2642
        %2995 = vmatpush1.bf16.msra.mxu0 %v2641
        %2996 = vmatprep.subr.bf16.mxu0 %v2646
        %2997 = vmatpush1.bf16.msra.mxu0 %v2645
        %2998 = vmatprep.subr.bf16.mxu0 %v2650
        %2999 = vmatpush1.bf16.msra.mxu0 %v2649
        %3000 = vmatprep.subr.bf16.mxu0 %v2654
        %3001 = vmatpush1.bf16.msra.mxu0 %v2653
        %3002 = vmatprep.subr.bf16.mxu0 %v2658
        %3003 = vmatpush1.bf16.msra.mxu0 %v2657
        %3004 = vmatprep.subr.bf16.mxu0 %v2662
        %3005 = vmatpush1.bf16.msra.mxu0 %v2661
        %3006 = vmatprep.subr.bf16.mxu0 %v2666
        %3007 = vmatpush1.bf16.msra.mxu0 %v2665
        %3008 = vmatprep.subr.bf16.mxu0 %v2670
        %3009 = vmatpush1.bf16.msra.mxu0 %v2669
        %3010 = vmatprep.subr.bf16.mxu0 %v2674
        %3011 = vmatpush1.bf16.msra.mxu0 %v2673
        %3012 = vmatprep.subr.bf16.mxu0 %v2678
        %3013 = vmatpush1.bf16.msra.mxu0 %v2677
        %3014 = vmatprep.subr.bf16.mxu0 %v2682
        %3015 = vmatpush1.bf16.msra.mxu0 %v2681
        %3016 = vmatprep.subr.bf16.mxu0 %v2686
        %3017 = vmatpush1.bf16.msra.mxu0 %v2685
        %3018 = vmatprep.mubr.bf16.mxu0 %v1976
        %3019 = vmatmul.mubr.bf16.gmra.mrb[0].mxu0 %v1975
        %v3020 = vpop.f32.mrb[0].mxu0
        %v3021 = vadd.f32 %v2980, %v3020
        %v3022 = vpop.f32.mrb[0].mxu0
        %v3023 = vadd.f32 %v2982, %v3022
        %v3024 = vpop.f32.mrb[0].mxu0
        %v3025 = vpop.f32.mrb[0].mxu0
        %3026 = vdwg.mxu0
        %3027 = vmatprep.subr.bf16.mxu0 %v2690
        %3028 = vmatpush1.bf16.msra.mxu0 %v2689
        %3029 = vmatprep.subr.bf16.mxu0 %v2694
        %3030 = vmatpush1.bf16.msra.mxu0 %v2693
        %3031 = vmatprep.subr.bf16.mxu0 %v2698
        %3032 = vmatpush1.bf16.msra.mxu0 %v2697
        %3033 = vmatprep.subr.bf16.mxu0 %v2702
        %3034 = vmatpush1.bf16.msra.mxu0 %v2701
        %3035 = vmatprep.subr.bf16.mxu0 %v2706
        %3036 = vmatpush1.bf16.msra.mxu0 %v2705
        %3037 = vmatprep.subr.bf16.mxu0 %v2710
        %3038 = vmatpush1.bf16.msra.mxu0 %v2709
        %3039 = vmatprep.subr.bf16.mxu0 %v2714
        %3040 = vmatpush1.bf16.msra.mxu0 %v2713
        %3041 = vmatprep.subr.bf16.mxu0 %v2718
        %3042 = vmatpush1.bf16.msra.mxu0 %v2717
        %3043 = vmatprep.subr.bf16.mxu0 %v2722
        %3044 = vmatpush1.bf16.msra.mxu0 %v2721
        %3045 = vmatprep.subr.bf16.mxu0 %v2726
        %3046 = vmatpush1.bf16.msra.mxu0 %v2725
        %3047 = vmatprep.subr.bf16.mxu0 %v2730
        %3048 = vmatpush1.bf16.msra.mxu0 %v2729
        %3049 = vmatprep.subr.bf16.mxu0 %v2734
        %3050 = vmatpush1.bf16.msra.mxu0 %v2733
        %3051 = vmatprep.subr.bf16.mxu0 %v2738
        %3052 = vmatpush1.bf16.msra.mxu0 %v2737
        %3053 = vmatprep.subr.bf16.mxu0 %v2742
        %3054 = vmatpush1.bf16.msra.mxu0 %v2741
        %3055 = vmatprep.subr.bf16.mxu0 %v2746
        %3056 = vmatpush1.bf16.msra.mxu0 %v2745
        %3057 = vmatprep.subr.bf16.mxu0 %v2750
        %3058 = vmatpush1.bf16.msra.mxu0 %v2749
        %3059 = vmatprep.mubr.bf16.mxu0 %v1978
        %3060 = vmatmul.mubr.bf16.gmra.mrb[0].mxu0 %v1977
        %v3061 = vpop.f32.mrb[0].mxu0
        %v3062 = vadd.f32 %v3021, %v3061
        %v3063 = vpop.f32.mrb[0].mxu0
        %v3064 = vadd.f32 %v3023, %v3063
        %v3065 = vpop.f32.mrb[0].mxu0
        %v3066 = vpop.f32.mrb[0].mxu0
        %3067 = vdwg.mxu0
        %3068 = vmatprep.subr.bf16.mxu0 %v2564
        %3069 = vmatpush1.bf16.msra.mxu0 %v2563
        %3070 = vmatprep.subr.bf16.mxu0 %v2568
        %3071 = vmatpush1.bf16.msra.mxu0 %v2567
        %3072 = vmatprep.subr.bf16.mxu0 %v2572
        %3073 = vmatpush1.bf16.msra.mxu0 %v2571
        %3074 = vmatprep.subr.bf16.mxu0 %v2576
        %3075 = vmatpush1.bf16.msra.mxu0 %v2575
        %3076 = vmatprep.subr.bf16.mxu0 %v2580
        %3077 = vmatpush1.bf16.msra.mxu0 %v2579
        %3078 = vmatprep.subr.bf16.mxu0 %v2584
        %3079 = vmatpush1.bf16.msra.mxu0 %v2583
        %3080 = vmatprep.subr.bf16.mxu0 %v2588
        %3081 = vmatpush1.bf16.msra.mxu0 %v2587
        %3082 = vmatprep.subr.bf16.mxu0 %v2592
        %3083 = vmatpush1.bf16.msra.mxu0 %v2591
        %3084 = vmatprep.subr.bf16.mxu0 %v2596
        %3085 = vmatpush1.bf16.msra.mxu0 %v2595
        %3086 = vmatprep.subr.bf16.mxu0 %v2600
        %3087 = vmatpush1.bf16.msra.mxu0 %v2599
        %3088 = vmatprep.subr.bf16.mxu0 %v2604
        %3089 = vmatpush1.bf16.msra.mxu0 %v2603
        %3090 = vmatprep.subr.bf16.mxu0 %v2608
        %3091 = vmatpush1.bf16.msra.mxu0 %v2607
        %3092 = vmatprep.subr.bf16.mxu0 %v2612
        %3093 = vmatpush1.bf16.msra.mxu0 %v2611
        %3094 = vmatprep.subr.bf16.mxu0 %v2616
        %3095 = vmatpush1.bf16.msra.mxu0 %v2615
        %3096 = vmatprep.subr.bf16.mxu0 %v2620
        %3097 = vmatpush1.bf16.msra.mxu0 %v2619
        %3098 = vmatprep.subr.bf16.mxu0 %v2624
        %3099 = vmatpush1.bf16.msra.mxu0 %v2623
        %3100 = vmatprep.mubr.bf16.mxu0 %v1974
        %3101 = vmatmul.mubr.bf16.gmra.mrb[0].mxu0 %v1973
        %v3102 = vpop.f32.mrb[0].mxu0
        %v3103 = vadd.f32 %v1967, %v3102
        %v3104 = vpop.f32.mrb[0].mxu0
        %v3105 = vadd.f32 %v1969, %v3104
        %v3106 = vpop.f32.mrb[0].mxu0
        %v3107 = vpop.f32.mrb[0].mxu0
        %3108 = vdwg.mxu0
        %3109 = vmatprep.subr.bf16.mxu0 %v2628
        %3110 = vmatpush1.bf16.msra.mxu0 %v2627
        %3111 = vmatprep.subr.bf16.mxu0 %v2632
        %3112 = vmatpush1.bf16.msra.mxu0 %v2631
        %3113 = vmatprep.subr.bf16.mxu0 %v2636
        %3114 = vmatpush1.bf16.msra.mxu0 %v2635
        %3115 = vmatprep.subr.bf16.mxu0 %v2640
        %3116 = vmatpush1.bf16.msra.mxu0 %v2639
        %3117 = vmatprep.subr.bf16.mxu0 %v2644
        %3118 = vmatpush1.bf16.msra.mxu0 %v2643
        %3119 = vmatprep.subr.bf16.mxu0 %v2648
        %3120 = vmatpush1.bf16.msra.mxu0 %v2647
        %3121 = vmatprep.subr.bf16.mxu0 %v2652
        %3122 = vmatpush1.bf16.msra.mxu0 %v2651
        %3123 = vmatprep.subr.bf16.mxu0 %v2656
        %3124 = vmatpush1.bf16.msra.mxu0 %v2655
        %3125 = vmatprep.subr.bf16.mxu0 %v2660
        %3126 = vmatpush1.bf16.msra.mxu0 %v2659
        %3127 = vmatprep.subr.bf16.mxu0 %v2664
        %3128 = vmatpush1.bf16.msra.mxu0 %v2663
        %3129 = vmatprep.subr.bf16.mxu0 %v2668
        %3130 = vmatpush1.bf16.msra.mxu0 %v2667
        %3131 = vmatprep.subr.bf16.mxu0 %v2672
        %3132 = vmatpush1.bf16.msra.mxu0 %v2671
        %3133 = vmatprep.subr.bf16.mxu0 %v2676
        %3134 = vmatpush1.bf16.msra.mxu0 %v2675
        %3135 = vmatprep.subr.bf16.mxu0 %v2680
        %3136 = vmatpush1.bf16.msra.mxu0 %v2679
        %3137 = vmatprep.subr.bf16.mxu0 %v2684
        %3138 = vmatpush1.bf16.msra.mxu0 %v2683
        %3139 = vmatprep.subr.bf16.mxu0 %v2688
        %3140 = vmatpush1.bf16.msra.mxu0 %v2687
        %3141 = vmatprep.mubr.bf16.mxu0 %v1976
        %3142 = vmatmul.mubr.bf16.gmra.mrb[0].mxu0 %v1975
        %v3143 = vpop.f32.mrb[0].mxu0
        %v3144 = vadd.f32 %v3103, %v3143
        %v3145 = vpop.f32.mrb[0].mxu0
        %v3146 = vadd.f32 %v3105, %v3145
        %v3147 = vpop.f32.mrb[0].mxu0
        %v3148 = vpop.f32.mrb[0].mxu0
        %3149 = vdwg.mxu0
        %3150 = vmatprep.subr.bf16.mxu0 %v2692
        %3151 = vmatpush1.bf16.msra.mxu0 %v2691
        %3152 = vmatprep.subr.bf16.mxu0 %v2696
        %3153 = vmatpush1.bf16.msra.mxu0 %v2695
        %3154 = vmatprep.subr.bf16.mxu0 %v2700
        %3155 = vmatpush1.bf16.msra.mxu0 %v2699
        %3156 = vmatprep.subr.bf16.mxu0 %v2704
        %3157 = vmatpush1.bf16.msra.mxu0 %v2703
        %3158 = vmatprep.subr.bf16.mxu0 %v2708
        %3159 = vmatpush1.bf16.msra.mxu0 %v2707
        %3160 = vmatprep.subr.bf16.mxu0 %v2712
        %3161 = vmatpush1.bf16.msra.mxu0 %v2711
        %3162 = vmatprep.subr.bf16.mxu0 %v2716
        %3163 = vmatpush1.bf16.msra.mxu0 %v2715
        %3164 = vmatprep.subr.bf16.mxu0 %v2720
        %3165 = vmatpush1.bf16.msra.mxu0 %v2719
        %3166 = vmatprep.subr.bf16.mxu0 %v2724
        %3167 = vmatpush1.bf16.msra.mxu0 %v2723
        %3168 = vmatprep.subr.bf16.mxu0 %v2728
        %3169 = vmatpush1.bf16.msra.mxu0 %v2727
        %3170 = vmatprep.subr.bf16.mxu0 %v2732
        %3171 = vmatpush1.bf16.msra.mxu0 %v2731
        %3172 = vmatprep.subr.bf16.mxu0 %v2736
        %3173 = vmatpush1.bf16.msra.mxu0 %v2735
        %3174 = vmatprep.subr.bf16.mxu0 %v2740
        %3175 = vmatpush1.bf16.msra.mxu0 %v2739
        %3176 = vmatprep.subr.bf16.mxu0 %v2744
        %3177 = vmatpush1.bf16.msra.mxu0 %v2743
        %3178 = vmatprep.subr.bf16.mxu0 %v2748
        %3179 = vmatpush1.bf16.msra.mxu0 %v2747
        %3180 = vmatprep.subr.bf16.mxu0 %v2752
        %3181 = vmatpush1.bf16.msra.mxu0 %v2751
        %3182 = vmatprep.mubr.bf16.mxu0 %v1978
        %3183 = vmatmul.mubr.bf16.gmra.mrb[0].mxu0 %v1977
        %v3184 = vpop.f32.mrb[0].mxu0
        %v3185 = vadd.f32 %v3144, %v3184
        %v3186 = vpop.f32.mrb[0].mxu0
        %v3187 = vadd.f32 %v3146, %v3186
        %v3188 = vpop.f32.mrb[0].mxu0
        %v3189 = vpop.f32.mrb[0].mxu0
        %3190 = vdwg.mxu0
        %v3191 = vld [vmem:[#allocation2] sm:$0xee]
        %v3192 = vld [vmem:[#allocation2 + $0x8] sm:$0xee]
        %v3193 = vld [vmem:[#allocation2 + $0x10] sm:$0xee]
        %s3194 = scalar_lea.vmem [#allocation6], 3072
        %v3195 = vld [vmem:[%s3194] sm:$0xff]
        %v3196 = vld [vmem:[%s3194 + $0x8] sm:$0xff]
        %v3197 = vld [vmem:[%s3194 + $0x10] sm:$0xff]
        %v3198 = vld [vmem:[%s3194 + $0x18] sm:$0xff]
        %v3199 = vld [vmem:[%s3194 + $0x20] sm:$0xff]
        %v3200 = vld [vmem:[%s3194 + $0x28] sm:$0xff]
        %v3201 = vld [vmem:[%s3194 + $0x30] sm:$0xff]
        %v3202 = vld [vmem:[%s3194 + $0x38] sm:$0xff]
        %v3203 = vld [vmem:[%s3194 + $0x40] sm:$0xff]
        %v3204 = vld [vmem:[%s3194 + $0x48] sm:$0xff]
        %v3205 = vld [vmem:[%s3194 + $0x50] sm:$0xff]
        %v3206 = vld [vmem:[%s3194 + $0x58] sm:$0xff]
        %v3207 = vld [vmem:[%s3194 + $0x60] sm:$0xff]
        %v3208 = vld [vmem:[%s3194 + $0x68] sm:$0xff]
        %v3209 = vld [vmem:[%s3194 + $0x70] sm:$0xff]
        %v3210 = vld [vmem:[%s3194 + $0x78] sm:$0xff]
        %v3211 = vld [vmem:[%s3194 + $0x80] sm:$0xff]
        %v3212 = vld [vmem:[%s3194 + $0x88] sm:$0xff]
        %v3213 = vld [vmem:[%s3194 + $0x90] sm:$0xff]
        %v3214 = vld [vmem:[%s3194 + $0x98] sm:$0xff]
        %v3215 = vld [vmem:[%s3194 + $0xa0] sm:$0xff]
        %v3216 = vld [vmem:[%s3194 + $0xa8] sm:$0xff]
        %v3217 = vld [vmem:[%s3194 + $0xb0] sm:$0xff]
        %v3218 = vld [vmem:[%s3194 + $0xb8] sm:$0xff]
        %v3219 = vld [vmem:[%s3194 + $0xc0] sm:$0xff]
        %v3220 = vld [vmem:[%s3194 + $0xc8] sm:$0xff]
        %v3221 = vld [vmem:[%s3194 + $0xd0] sm:$0xff]
        %v3222 = vld [vmem:[%s3194 + $0xd8] sm:$0xff]
        %v3223 = vld [vmem:[%s3194 + $0xe0] sm:$0xff]
        %v3224 = vld [vmem:[%s3194 + $0xe8] sm:$0xff]
        %v3225 = vld [vmem:[%s3194 + $0xf0] sm:$0xff]
        %v3226 = vld [vmem:[%s3194 + $0xf8] sm:$0xff]
        %v3227 = vld [vmem:[%s3194 + $0x100] sm:$0xff]
        %v3228 = vld [vmem:[%s3194 + $0x108] sm:$0xff]
        %v3229 = vld [vmem:[%s3194 + $0x110] sm:$0xff]
        %v3230 = vld [vmem:[%s3194 + $0x118] sm:$0xff]
        %v3231 = vld [vmem:[%s3194 + $0x120] sm:$0xff]
        %v3232 = vld [vmem:[%s3194 + $0x128] sm:$0xff]
        %v3233 = vld [vmem:[%s3194 + $0x130] sm:$0xff]
        %v3234 = vld [vmem:[%s3194 + $0x138] sm:$0xff]
        %v3235 = vld [vmem:[%s3194 + $0x140] sm:$0xff]
        %v3236 = vld [vmem:[%s3194 + $0x148] sm:$0xff]
        %v3237 = vld [vmem:[%s3194 + $0x150] sm:$0xff]
        %v3238 = vld [vmem:[%s3194 + $0x158] sm:$0xff]
        %v3239 = vld [vmem:[%s3194 + $0x160] sm:$0xff]
        %v3240 = vld [vmem:[%s3194 + $0x168] sm:$0xff]
        %v3241 = vld [vmem:[%s3194 + $0x170] sm:$0xff]
        %v3242 = vld [vmem:[%s3194 + $0x178] sm:$0xff]
        %v3243 = vld [vmem:[%s3194 + $0x180] sm:$0xff]
        %v3244 = vld [vmem:[%s3194 + $0x188] sm:$0xff]
        %v3245 = vld [vmem:[%s3194 + $0x190] sm:$0xff]
        %v3246 = vld [vmem:[%s3194 + $0x198] sm:$0xff]
        %v3247 = vld [vmem:[%s3194 + $0x1a0] sm:$0xff]
        %v3248 = vld [vmem:[%s3194 + $0x1a8] sm:$0xff]
        %v3249 = vld [vmem:[%s3194 + $0x1b0] sm:$0xff]
        %v3250 = vld [vmem:[%s3194 + $0x1b8] sm:$0xff]
        %v3251 = vld [vmem:[%s3194 + $0x1c0] sm:$0xff]
        %v3252 = vld [vmem:[%s3194 + $0x1c8] sm:$0xff]
        %v3253 = vld [vmem:[%s3194 + $0x1d0] sm:$0xff]
        %v3254 = vld [vmem:[%s3194 + $0x1d8] sm:$0xff]
        %v3255 = vld [vmem:[%s3194 + $0x1e0] sm:$0xff]
        %v3256 = vld [vmem:[%s3194 + $0x1e8] sm:$0xff]
        %v3257 = vld [vmem:[%s3194 + $0x1f0] sm:$0xff]
        %v3258 = vld [vmem:[%s3194 + $0x1f8] sm:$0xff]
        %v3259 = vld [vmem:[%s3194 + $0x200] sm:$0xff]
        %v3260 = vld [vmem:[%s3194 + $0x208] sm:$0xff]
        %v3261 = vld [vmem:[%s3194 + $0x210] sm:$0xff]
        %v3262 = vld [vmem:[%s3194 + $0x218] sm:$0xff]
        %v3263 = vld [vmem:[%s3194 + $0x220] sm:$0xff]
        %v3264 = vld [vmem:[%s3194 + $0x228] sm:$0xff]
        %v3265 = vld [vmem:[%s3194 + $0x230] sm:$0xff]
        %v3266 = vld [vmem:[%s3194 + $0x238] sm:$0xff]
        %v3267 = vld [vmem:[%s3194 + $0x240] sm:$0xff]
        %v3268 = vld [vmem:[%s3194 + $0x248] sm:$0xff]
        %v3269 = vld [vmem:[%s3194 + $0x250] sm:$0xff]
        %v3270 = vld [vmem:[%s3194 + $0x258] sm:$0xff]
        %v3271 = vld [vmem:[%s3194 + $0x260] sm:$0xff]
        %v3272 = vld [vmem:[%s3194 + $0x268] sm:$0xff]
        %v3273 = vld [vmem:[%s3194 + $0x270] sm:$0xff]
        %v3274 = vld [vmem:[%s3194 + $0x278] sm:$0xff]
        %v3275 = vld [vmem:[%s3194 + $0x280] sm:$0xff]
        %v3276 = vld [vmem:[%s3194 + $0x288] sm:$0xff]
        %v3277 = vld [vmem:[%s3194 + $0x290] sm:$0xff]
        %v3278 = vld [vmem:[%s3194 + $0x298] sm:$0xff]
        %v3279 = vld [vmem:[%s3194 + $0x2a0] sm:$0xff]
        %v3280 = vld [vmem:[%s3194 + $0x2a8] sm:$0xff]
        %v3281 = vld [vmem:[%s3194 + $0x2b0] sm:$0xff]
        %v3282 = vld [vmem:[%s3194 + $0x2b8] sm:$0xff]
        %v3283 = vld [vmem:[%s3194 + $0x2c0] sm:$0xff]
        %v3284 = vld [vmem:[%s3194 + $0x2c8] sm:$0xff]
        %v3285 = vld [vmem:[%s3194 + $0x2d0] sm:$0xff]
        %v3286 = vld [vmem:[%s3194 + $0x2d8] sm:$0xff]
        %v3287 = vld [vmem:[%s3194 + $0x2e0] sm:$0xff]
        %v3288 = vld [vmem:[%s3194 + $0x2e8] sm:$0xff]
        %v3289 = vld [vmem:[%s3194 + $0x2f0] sm:$0xff]
        %v3290 = vld [vmem:[%s3194 + $0x2f8] sm:$0xff]
        %v3291 = vld [vmem:[%s3194 + $0x300] sm:$0xff]
        %v3292 = vld [vmem:[%s3194 + $0x308] sm:$0xff]
        %v3293 = vld [vmem:[%s3194 + $0x310] sm:$0xff]
        %v3294 = vld [vmem:[%s3194 + $0x318] sm:$0xff]
        %v3295 = vld [vmem:[%s3194 + $0x320] sm:$0xff]
        %v3296 = vld [vmem:[%s3194 + $0x328] sm:$0xff]
        %v3297 = vld [vmem:[%s3194 + $0x330] sm:$0xff]
        %v3298 = vld [vmem:[%s3194 + $0x338] sm:$0xff]
        %v3299 = vld [vmem:[%s3194 + $0x340] sm:$0xff]
        %v3300 = vld [vmem:[%s3194 + $0x348] sm:$0xff]
        %v3301 = vld [vmem:[%s3194 + $0x350] sm:$0xff]
        %v3302 = vld [vmem:[%s3194 + $0x358] sm:$0xff]
        %v3303 = vld [vmem:[%s3194 + $0x360] sm:$0xff]
        %v3304 = vld [vmem:[%s3194 + $0x368] sm:$0xff]
        %v3305 = vld [vmem:[%s3194 + $0x370] sm:$0xff]
        %v3306 = vld [vmem:[%s3194 + $0x378] sm:$0xff]
        %v3307 = vld [vmem:[%s3194 + $0x380] sm:$0xff]
        %v3308 = vld [vmem:[%s3194 + $0x388] sm:$0xff]
        %v3309 = vld [vmem:[%s3194 + $0x390] sm:$0xff]
        %v3310 = vld [vmem:[%s3194 + $0x398] sm:$0xff]
        %v3311 = vld [vmem:[%s3194 + $0x3a0] sm:$0xff]
        %v3312 = vld [vmem:[%s3194 + $0x3a8] sm:$0xff]
        %v3313 = vld [vmem:[%s3194 + $0x3b0] sm:$0xff]
        %v3314 = vld [vmem:[%s3194 + $0x3b8] sm:$0xff]
        %v3315 = vld [vmem:[%s3194 + $0x3c0] sm:$0xff]
        %v3316 = vld [vmem:[%s3194 + $0x3c8] sm:$0xff]
        %v3317 = vld [vmem:[%s3194 + $0x3d0] sm:$0xff]
        %v3318 = vld [vmem:[%s3194 + $0x3d8] sm:$0xff]
        %v3319 = vld [vmem:[%s3194 + $0x3e0] sm:$0xff]
        %v3320 = vld [vmem:[%s3194 + $0x3e8] sm:$0xff]
        %v3321 = vld [vmem:[%s3194 + $0x3f0] sm:$0xff]
        %v3322 = vld [vmem:[%s3194 + $0x3f8] sm:$0xff]
        %v3323 = vld [vmem:[%s3194 + $0x400] sm:$0xff]
        %v3324 = vld [vmem:[%s3194 + $0x408] sm:$0xff]
        %v3325 = vld [vmem:[%s3194 + $0x410] sm:$0xff]
        %v3326 = vld [vmem:[%s3194 + $0x418] sm:$0xff]
        %v3327 = vld [vmem:[%s3194 + $0x420] sm:$0xff]
        %v3328 = vld [vmem:[%s3194 + $0x428] sm:$0xff]
        %v3329 = vld [vmem:[%s3194 + $0x430] sm:$0xff]
        %v3330 = vld [vmem:[%s3194 + $0x438] sm:$0xff]
        %v3331 = vld [vmem:[%s3194 + $0x440] sm:$0xff]
        %v3332 = vld [vmem:[%s3194 + $0x448] sm:$0xff]
        %v3333 = vld [vmem:[%s3194 + $0x450] sm:$0xff]
        %v3334 = vld [vmem:[%s3194 + $0x458] sm:$0xff]
        %v3335 = vld [vmem:[%s3194 + $0x460] sm:$0xff]
        %v3336 = vld [vmem:[%s3194 + $0x468] sm:$0xff]
        %v3337 = vld [vmem:[%s3194 + $0x470] sm:$0xff]
        %v3338 = vld [vmem:[%s3194 + $0x478] sm:$0xff]
        %v3339 = vld [vmem:[%s3194 + $0x480] sm:$0xff]
        %v3340 = vld [vmem:[%s3194 + $0x488] sm:$0xff]
        %v3341 = vld [vmem:[%s3194 + $0x490] sm:$0xff]
        %v3342 = vld [vmem:[%s3194 + $0x498] sm:$0xff]
        %v3343 = vld [vmem:[%s3194 + $0x4a0] sm:$0xff]
        %v3344 = vld [vmem:[%s3194 + $0x4a8] sm:$0xff]
        %v3345 = vld [vmem:[%s3194 + $0x4b0] sm:$0xff]
        %v3346 = vld [vmem:[%s3194 + $0x4b8] sm:$0xff]
        %v3347 = vld [vmem:[%s3194 + $0x4c0] sm:$0xff]
        %v3348 = vld [vmem:[%s3194 + $0x4c8] sm:$0xff]
        %v3349 = vld [vmem:[%s3194 + $0x4d0] sm:$0xff]
        %v3350 = vld [vmem:[%s3194 + $0x4d8] sm:$0xff]
        %v3351 = vld [vmem:[%s3194 + $0x4e0] sm:$0xff]
        %v3352 = vld [vmem:[%s3194 + $0x4e8] sm:$0xff]
        %v3353 = vld [vmem:[%s3194 + $0x4f0] sm:$0xff]
        %v3354 = vld [vmem:[%s3194 + $0x4f8] sm:$0xff]
        %v3355 = vld [vmem:[%s3194 + $0x500] sm:$0xff]
        %v3356 = vld [vmem:[%s3194 + $0x508] sm:$0xff]
        %v3357 = vld [vmem:[%s3194 + $0x510] sm:$0xff]
        %v3358 = vld [vmem:[%s3194 + $0x518] sm:$0xff]
        %v3359 = vld [vmem:[%s3194 + $0x520] sm:$0xff]
        %v3360 = vld [vmem:[%s3194 + $0x528] sm:$0xff]
        %v3361 = vld [vmem:[%s3194 + $0x530] sm:$0xff]
        %v3362 = vld [vmem:[%s3194 + $0x538] sm:$0xff]
        %v3363 = vld [vmem:[%s3194 + $0x540] sm:$0xff]
        %v3364 = vld [vmem:[%s3194 + $0x548] sm:$0xff]
        %v3365 = vld [vmem:[%s3194 + $0x550] sm:$0xff]
        %v3366 = vld [vmem:[%s3194 + $0x558] sm:$0xff]
        %v3367 = vld [vmem:[%s3194 + $0x560] sm:$0xff]
        %v3368 = vld [vmem:[%s3194 + $0x568] sm:$0xff]
        %v3369 = vld [vmem:[%s3194 + $0x570] sm:$0xff]
        %v3370 = vld [vmem:[%s3194 + $0x578] sm:$0xff]
        %v3371 = vld [vmem:[%s3194 + $0x580] sm:$0xff]
        %v3372 = vld [vmem:[%s3194 + $0x588] sm:$0xff]
        %v3373 = vld [vmem:[%s3194 + $0x590] sm:$0xff]
        %v3374 = vld [vmem:[%s3194 + $0x598] sm:$0xff]
        %v3375 = vld [vmem:[%s3194 + $0x5a0] sm:$0xff]
        %v3376 = vld [vmem:[%s3194 + $0x5a8] sm:$0xff]
        %v3377 = vld [vmem:[%s3194 + $0x5b0] sm:$0xff]
        %v3378 = vld [vmem:[%s3194 + $0x5b8] sm:$0xff]
        %v3379 = vld [vmem:[%s3194 + $0x5c0] sm:$0xff]
        %v3380 = vld [vmem:[%s3194 + $0x5c8] sm:$0xff]
        %v3381 = vld [vmem:[%s3194 + $0x5d0] sm:$0xff]
        %v3382 = vld [vmem:[%s3194 + $0x5d8] sm:$0xff]
        %v3383 = vld [vmem:[%s3194 + $0x5e0] sm:$0xff]
        %v3384 = vld [vmem:[%s3194 + $0x5e8] sm:$0xff]
        %v3385 = vld [vmem:[%s3194 + $0x5f0] sm:$0xff]
        %v3386 = vld [vmem:[%s3194 + $0x5f8] sm:$0xff]
        %v3390 = vunpack.c.l.b16 %v3191
        %v3391 = vunpack.c.h.b16 %v3191
        %v3392 = vunpack.c.l.b16 %v3192
        %v3393 = vunpack.c.h.b16 %v3192
        %v3394 = vunpack.c.l.b16 %v3193
        %v3395 = vunpack.c.h.b16 %v3193
        %v3396 = vpack.c.b16 %v707, %v3390
        %v3397 = vpack.c.b16 %v708, %v3391
        %v3398 = vpack.c.b16 %v709, %v3392
        %v3399 = vpack.c.b16 %v710, %v3393
        %v3400 = vpack.c.b16 %v711, %v3394
        %v3401 = vpack.c.b16 %v712, %v3395
        %v3402 = vrot.slane %v3396, 1
        %v3403 = vrot.slane %v3397, 1
        %v3404 = vrot.slane %v3398, 1
        %v3405 = vrot.slane %v3399, 1
        %v3406 = vrot.slane %v3400, 1
        %v3407 = vrot.slane %v3401, 1
        %v3606 = vunpack.c.l.b16 %v3195
        %v3607 = vunpack.c.h.b16 %v3195
        %v3608 = vunpack.c.l.b16 %v3196
        %v3609 = vunpack.c.h.b16 %v3196
        %v3610 = vunpack.c.l.b16 %v3197
        %v3611 = vunpack.c.h.b16 %v3197
        %v3612 = vunpack.c.l.b16 %v3198
        %v3613 = vunpack.c.h.b16 %v3198
        %v3614 = vunpack.c.l.b16 %v3199
        %v3615 = vunpack.c.h.b16 %v3199
        %v3616 = vunpack.c.l.b16 %v3200
        %v3617 = vunpack.c.h.b16 %v3200
        %v3618 = vunpack.c.l.b16 %v3201
        %v3619 = vunpack.c.h.b16 %v3201
        %v3620 = vunpack.c.l.b16 %v3202
        %v3621 = vunpack.c.h.b16 %v3202
        %v3622 = vunpack.c.l.b16 %v3203
        %v3623 = vunpack.c.h.b16 %v3203
        %v3624 = vunpack.c.l.b16 %v3204
        %v3625 = vunpack.c.h.b16 %v3204
        %v3626 = vunpack.c.l.b16 %v3205
        %v3627 = vunpack.c.h.b16 %v3205
        %v3628 = vunpack.c.l.b16 %v3206
        %v3629 = vunpack.c.h.b16 %v3206
        %v3630 = vunpack.c.l.b16 %v3207
        %v3631 = vunpack.c.h.b16 %v3207
        %v3632 = vunpack.c.l.b16 %v3208
        %v3633 = vunpack.c.h.b16 %v3208
        %v3634 = vunpack.c.l.b16 %v3209
        %v3635 = vunpack.c.h.b16 %v3209
        %v3636 = vunpack.c.l.b16 %v3210
        %v3637 = vunpack.c.h.b16 %v3210
        %v3638 = vunpack.c.l.b16 %v3211
        %v3639 = vunpack.c.h.b16 %v3211
        %v3640 = vunpack.c.l.b16 %v3212
        %v3641 = vunpack.c.h.b16 %v3212
        %v3642 = vunpack.c.l.b16 %v3213
        %v3643 = vunpack.c.h.b16 %v3213
        %v3644 = vunpack.c.l.b16 %v3214
        %v3645 = vunpack.c.h.b16 %v3214
        %v3646 = vunpack.c.l.b16 %v3215
        %v3647 = vunpack.c.h.b16 %v3215
        %v3648 = vunpack.c.l.b16 %v3216
        %v3649 = vunpack.c.h.b16 %v3216
        %v3650 = vunpack.c.l.b16 %v3217
        %v3651 = vunpack.c.h.b16 %v3217
        %v3652 = vunpack.c.l.b16 %v3218
        %v3653 = vunpack.c.h.b16 %v3218
        %v3654 = vunpack.c.l.b16 %v3219
        %v3655 = vunpack.c.h.b16 %v3219
        %v3656 = vunpack.c.l.b16 %v3220
        %v3657 = vunpack.c.h.b16 %v3220
        %v3658 = vunpack.c.l.b16 %v3221
        %v3659 = vunpack.c.h.b16 %v3221
        %v3660 = vunpack.c.l.b16 %v3222
        %v3661 = vunpack.c.h.b16 %v3222
        %v3662 = vunpack.c.l.b16 %v3223
        %v3663 = vunpack.c.h.b16 %v3223
        %v3664 = vunpack.c.l.b16 %v3224
        %v3665 = vunpack.c.h.b16 %v3224
        %v3666 = vunpack.c.l.b16 %v3225
        %v3667 = vunpack.c.h.b16 %v3225
        %v3668 = vunpack.c.l.b16 %v3226
        %v3669 = vunpack.c.h.b16 %v3226
        %v3670 = vunpack.c.l.b16 %v3227
        %v3671 = vunpack.c.h.b16 %v3227
        %v3672 = vunpack.c.l.b16 %v3228
        %v3673 = vunpack.c.h.b16 %v3228
        %v3674 = vunpack.c.l.b16 %v3229
        %v3675 = vunpack.c.h.b16 %v3229
        %v3676 = vunpack.c.l.b16 %v3230
        %v3677 = vunpack.c.h.b16 %v3230
        %v3678 = vunpack.c.l.b16 %v3231
        %v3679 = vunpack.c.h.b16 %v3231
        %v3680 = vunpack.c.l.b16 %v3232
        %v3681 = vunpack.c.h.b16 %v3232
        %v3682 = vunpack.c.l.b16 %v3233
        %v3683 = vunpack.c.h.b16 %v3233
        %v3684 = vunpack.c.l.b16 %v3234
        %v3685 = vunpack.c.h.b16 %v3234
        %v3686 = vunpack.c.l.b16 %v3235
        %v3687 = vunpack.c.h.b16 %v3235
        %v3688 = vunpack.c.l.b16 %v3236
        %v3689 = vunpack.c.h.b16 %v3236
        %v3690 = vunpack.c.l.b16 %v3237
        %v3691 = vunpack.c.h.b16 %v3237
        %v3692 = vunpack.c.l.b16 %v3238
        %v3693 = vunpack.c.h.b16 %v3238
        %v3694 = vunpack.c.l.b16 %v3239
        %v3695 = vunpack.c.h.b16 %v3239
        %v3696 = vunpack.c.l.b16 %v3240
        %v3697 = vunpack.c.h.b16 %v3240
        %v3698 = vunpack.c.l.b16 %v3241
        %v3699 = vunpack.c.h.b16 %v3241
        %v3700 = vunpack.c.l.b16 %v3242
        %v3701 = vunpack.c.h.b16 %v3242
        %v3702 = vunpack.c.l.b16 %v3243
        %v3703 = vunpack.c.h.b16 %v3243
        %v3704 = vunpack.c.l.b16 %v3244
        %v3705 = vunpack.c.h.b16 %v3244
        %v3706 = vunpack.c.l.b16 %v3245
        %v3707 = vunpack.c.h.b16 %v3245
        %v3708 = vunpack.c.l.b16 %v3246
        %v3709 = vunpack.c.h.b16 %v3246
        %v3710 = vunpack.c.l.b16 %v3247
        %v3711 = vunpack.c.h.b16 %v3247
        %v3712 = vunpack.c.l.b16 %v3248
        %v3713 = vunpack.c.h.b16 %v3248
        %v3714 = vunpack.c.l.b16 %v3249
        %v3715 = vunpack.c.h.b16 %v3249
        %v3716 = vunpack.c.l.b16 %v3250
        %v3717 = vunpack.c.h.b16 %v3250
        %v3718 = vunpack.c.l.b16 %v3251
        %v3719 = vunpack.c.h.b16 %v3251
        %v3720 = vunpack.c.l.b16 %v3252
        %v3721 = vunpack.c.h.b16 %v3252
        %v3722 = vunpack.c.l.b16 %v3253
        %v3723 = vunpack.c.h.b16 %v3253
        %v3724 = vunpack.c.l.b16 %v3254
        %v3725 = vunpack.c.h.b16 %v3254
        %v3726 = vunpack.c.l.b16 %v3255
        %v3727 = vunpack.c.h.b16 %v3255
        %v3728 = vunpack.c.l.b16 %v3256
        %v3729 = vunpack.c.h.b16 %v3256
        %v3730 = vunpack.c.l.b16 %v3257
        %v3731 = vunpack.c.h.b16 %v3257
        %v3732 = vunpack.c.l.b16 %v3258
        %v3733 = vunpack.c.h.b16 %v3258
        %v3734 = vunpack.c.l.b16 %v3259
        %v3735 = vunpack.c.h.b16 %v3259
        %v3736 = vunpack.c.l.b16 %v3260
        %v3737 = vunpack.c.h.b16 %v3260
        %v3738 = vunpack.c.l.b16 %v3261
        %v3739 = vunpack.c.h.b16 %v3261
        %v3740 = vunpack.c.l.b16 %v3262
        %v3741 = vunpack.c.h.b16 %v3262
        %v3742 = vunpack.c.l.b16 %v3263
        %v3743 = vunpack.c.h.b16 %v3263
        %v3744 = vunpack.c.l.b16 %v3264
        %v3745 = vunpack.c.h.b16 %v3264
        %v3746 = vunpack.c.l.b16 %v3265
        %v3747 = vunpack.c.h.b16 %v3265
        %v3748 = vunpack.c.l.b16 %v3266
        %v3749 = vunpack.c.h.b16 %v3266
        %v3750 = vunpack.c.l.b16 %v3267
        %v3751 = vunpack.c.h.b16 %v3267
        %v3752 = vunpack.c.l.b16 %v3268
        %v3753 = vunpack.c.h.b16 %v3268
        %v3754 = vunpack.c.l.b16 %v3269
        %v3755 = vunpack.c.h.b16 %v3269
        %v3756 = vunpack.c.l.b16 %v3270
        %v3757 = vunpack.c.h.b16 %v3270
        %v3758 = vunpack.c.l.b16 %v3271
        %v3759 = vunpack.c.h.b16 %v3271
        %v3760 = vunpack.c.l.b16 %v3272
        %v3761 = vunpack.c.h.b16 %v3272
        %v3762 = vunpack.c.l.b16 %v3273
        %v3763 = vunpack.c.h.b16 %v3273
        %v3764 = vunpack.c.l.b16 %v3274
        %v3765 = vunpack.c.h.b16 %v3274
        %v3766 = vunpack.c.l.b16 %v3275
        %v3767 = vunpack.c.h.b16 %v3275
        %v3768 = vunpack.c.l.b16 %v3276
        %v3769 = vunpack.c.h.b16 %v3276
        %v3770 = vunpack.c.l.b16 %v3277
        %v3771 = vunpack.c.h.b16 %v3277
        %v3772 = vunpack.c.l.b16 %v3278
        %v3773 = vunpack.c.h.b16 %v3278
        %v3774 = vunpack.c.l.b16 %v3279
        %v3775 = vunpack.c.h.b16 %v3279
        %v3776 = vunpack.c.l.b16 %v3280
        %v3777 = vunpack.c.h.b16 %v3280
        %v3778 = vunpack.c.l.b16 %v3281
        %v3779 = vunpack.c.h.b16 %v3281
        %v3780 = vunpack.c.l.b16 %v3282
        %v3781 = vunpack.c.h.b16 %v3282
        %v3782 = vunpack.c.l.b16 %v3283
        %v3783 = vunpack.c.h.b16 %v3283
        %v3784 = vunpack.c.l.b16 %v3284
        %v3785 = vunpack.c.h.b16 %v3284
        %v3786 = vunpack.c.l.b16 %v3285
        %v3787 = vunpack.c.h.b16 %v3285
        %v3788 = vunpack.c.l.b16 %v3286
        %v3789 = vunpack.c.h.b16 %v3286
        %v3790 = vunpack.c.l.b16 %v3287
        %v3791 = vunpack.c.h.b16 %v3287
        %v3792 = vunpack.c.l.b16 %v3288
        %v3793 = vunpack.c.h.b16 %v3288
        %v3794 = vunpack.c.l.b16 %v3289
        %v3795 = vunpack.c.h.b16 %v3289
        %v3796 = vunpack.c.l.b16 %v3290
        %v3797 = vunpack.c.h.b16 %v3290
        %v3798 = vunpack.c.l.b16 %v3291
        %v3799 = vunpack.c.h.b16 %v3291
        %v3800 = vunpack.c.l.b16 %v3292
        %v3801 = vunpack.c.h.b16 %v3292
        %v3802 = vunpack.c.l.b16 %v3293
        %v3803 = vunpack.c.h.b16 %v3293
        %v3804 = vunpack.c.l.b16 %v3294
        %v3805 = vunpack.c.h.b16 %v3294
        %v3806 = vunpack.c.l.b16 %v3295
        %v3807 = vunpack.c.h.b16 %v3295
        %v3808 = vunpack.c.l.b16 %v3296
        %v3809 = vunpack.c.h.b16 %v3296
        %v3810 = vunpack.c.l.b16 %v3297
        %v3811 = vunpack.c.h.b16 %v3297
        %v3812 = vunpack.c.l.b16 %v3298
        %v3813 = vunpack.c.h.b16 %v3298
        %v3814 = vunpack.c.l.b16 %v3299
        %v3815 = vunpack.c.h.b16 %v3299
        %v3816 = vunpack.c.l.b16 %v3300
        %v3817 = vunpack.c.h.b16 %v3300
        %v3818 = vunpack.c.l.b16 %v3301
        %v3819 = vunpack.c.h.b16 %v3301
        %v3820 = vunpack.c.l.b16 %v3302
        %v3821 = vunpack.c.h.b16 %v3302
        %v3822 = vunpack.c.l.b16 %v3303
        %v3823 = vunpack.c.h.b16 %v3303
        %v3824 = vunpack.c.l.b16 %v3304
        %v3825 = vunpack.c.h.b16 %v3304
        %v3826 = vunpack.c.l.b16 %v3305
        %v3827 = vunpack.c.h.b16 %v3305
        %v3828 = vunpack.c.l.b16 %v3306
        %v3829 = vunpack.c.h.b16 %v3306
        %v3830 = vunpack.c.l.b16 %v3307
        %v3831 = vunpack.c.h.b16 %v3307
        %v3832 = vunpack.c.l.b16 %v3308
        %v3833 = vunpack.c.h.b16 %v3308
        %v3834 = vunpack.c.l.b16 %v3309
        %v3835 = vunpack.c.h.b16 %v3309
        %v3836 = vunpack.c.l.b16 %v3310
        %v3837 = vunpack.c.h.b16 %v3310
        %v3838 = vunpack.c.l.b16 %v3311
        %v3839 = vunpack.c.h.b16 %v3311
        %v3840 = vunpack.c.l.b16 %v3312
        %v3841 = vunpack.c.h.b16 %v3312
        %v3842 = vunpack.c.l.b16 %v3313
        %v3843 = vunpack.c.h.b16 %v3313
        %v3844 = vunpack.c.l.b16 %v3314
        %v3845 = vunpack.c.h.b16 %v3314
        %v3846 = vunpack.c.l.b16 %v3315
        %v3847 = vunpack.c.h.b16 %v3315
        %v3848 = vunpack.c.l.b16 %v3316
        %v3849 = vunpack.c.h.b16 %v3316
        %v3850 = vunpack.c.l.b16 %v3317
        %v3851 = vunpack.c.h.b16 %v3317
        %v3852 = vunpack.c.l.b16 %v3318
        %v3853 = vunpack.c.h.b16 %v3318
        %v3854 = vunpack.c.l.b16 %v3319
        %v3855 = vunpack.c.h.b16 %v3319
        %v3856 = vunpack.c.l.b16 %v3320
        %v3857 = vunpack.c.h.b16 %v3320
        %v3858 = vunpack.c.l.b16 %v3321
        %v3859 = vunpack.c.h.b16 %v3321
        %v3860 = vunpack.c.l.b16 %v3322
        %v3861 = vunpack.c.h.b16 %v3322
        %v3862 = vunpack.c.l.b16 %v3323
        %v3863 = vunpack.c.h.b16 %v3323
        %v3864 = vunpack.c.l.b16 %v3324
        %v3865 = vunpack.c.h.b16 %v3324
        %v3866 = vunpack.c.l.b16 %v3325
        %v3867 = vunpack.c.h.b16 %v3325
        %v3868 = vunpack.c.l.b16 %v3326
        %v3869 = vunpack.c.h.b16 %v3326
        %v3870 = vunpack.c.l.b16 %v3327
        %v3871 = vunpack.c.h.b16 %v3327
        %v3872 = vunpack.c.l.b16 %v3328
        %v3873 = vunpack.c.h.b16 %v3328
        %v3874 = vunpack.c.l.b16 %v3329
        %v3875 = vunpack.c.h.b16 %v3329
        %v3876 = vunpack.c.l.b16 %v3330
        %v3877 = vunpack.c.h.b16 %v3330
        %v3878 = vunpack.c.l.b16 %v3331
        %v3879 = vunpack.c.h.b16 %v3331
        %v3880 = vunpack.c.l.b16 %v3332
        %v3881 = vunpack.c.h.b16 %v3332
        %v3882 = vunpack.c.l.b16 %v3333
        %v3883 = vunpack.c.h.b16 %v3333
        %v3884 = vunpack.c.l.b16 %v3334
        %v3885 = vunpack.c.h.b16 %v3334
        %v3886 = vunpack.c.l.b16 %v3335
        %v3887 = vunpack.c.h.b16 %v3335
        %v3888 = vunpack.c.l.b16 %v3336
        %v3889 = vunpack.c.h.b16 %v3336
        %v3890 = vunpack.c.l.b16 %v3337
        %v3891 = vunpack.c.h.b16 %v3337
        %v3892 = vunpack.c.l.b16 %v3338
        %v3893 = vunpack.c.h.b16 %v3338
        %v3894 = vunpack.c.l.b16 %v3339
        %v3895 = vunpack.c.h.b16 %v3339
        %v3896 = vunpack.c.l.b16 %v3340
        %v3897 = vunpack.c.h.b16 %v3340
        %v3898 = vunpack.c.l.b16 %v3341
        %v3899 = vunpack.c.h.b16 %v3341
        %v3900 = vunpack.c.l.b16 %v3342
        %v3901 = vunpack.c.h.b16 %v3342
        %v3902 = vunpack.c.l.b16 %v3343
        %v3903 = vunpack.c.h.b16 %v3343
        %v3904 = vunpack.c.l.b16 %v3344
        %v3905 = vunpack.c.h.b16 %v3344
        %v3906 = vunpack.c.l.b16 %v3345
        %v3907 = vunpack.c.h.b16 %v3345
        %v3908 = vunpack.c.l.b16 %v3346
        %v3909 = vunpack.c.h.b16 %v3346
        %v3910 = vunpack.c.l.b16 %v3347
        %v3911 = vunpack.c.h.b16 %v3347
        %v3912 = vunpack.c.l.b16 %v3348
        %v3913 = vunpack.c.h.b16 %v3348
        %v3914 = vunpack.c.l.b16 %v3349
        %v3915 = vunpack.c.h.b16 %v3349
        %v3916 = vunpack.c.l.b16 %v3350
        %v3917 = vunpack.c.h.b16 %v3350
        %v3918 = vunpack.c.l.b16 %v3351
        %v3919 = vunpack.c.h.b16 %v3351
        %v3920 = vunpack.c.l.b16 %v3352
        %v3921 = vunpack.c.h.b16 %v3352
        %v3922 = vunpack.c.l.b16 %v3353
        %v3923 = vunpack.c.h.b16 %v3353
        %v3924 = vunpack.c.l.b16 %v3354
        %v3925 = vunpack.c.h.b16 %v3354
        %v3926 = vunpack.c.l.b16 %v3355
        %v3927 = vunpack.c.h.b16 %v3355
        %v3928 = vunpack.c.l.b16 %v3356
        %v3929 = vunpack.c.h.b16 %v3356
        %v3930 = vunpack.c.l.b16 %v3357
        %v3931 = vunpack.c.h.b16 %v3357
        %v3932 = vunpack.c.l.b16 %v3358
        %v3933 = vunpack.c.h.b16 %v3358
        %v3934 = vunpack.c.l.b16 %v3359
        %v3935 = vunpack.c.h.b16 %v3359
        %v3936 = vunpack.c.l.b16 %v3360
        %v3937 = vunpack.c.h.b16 %v3360
        %v3938 = vunpack.c.l.b16 %v3361
        %v3939 = vunpack.c.h.b16 %v3361
        %v3940 = vunpack.c.l.b16 %v3362
        %v3941 = vunpack.c.h.b16 %v3362
        %v3942 = vunpack.c.l.b16 %v3363
        %v3943 = vunpack.c.h.b16 %v3363
        %v3944 = vunpack.c.l.b16 %v3364
        %v3945 = vunpack.c.h.b16 %v3364
        %v3946 = vunpack.c.l.b16 %v3365
        %v3947 = vunpack.c.h.b16 %v3365
        %v3948 = vunpack.c.l.b16 %v3366
        %v3949 = vunpack.c.h.b16 %v3366
        %v3950 = vunpack.c.l.b16 %v3367
        %v3951 = vunpack.c.h.b16 %v3367
        %v3952 = vunpack.c.l.b16 %v3368
        %v3953 = vunpack.c.h.b16 %v3368
        %v3954 = vunpack.c.l.b16 %v3369
        %v3955 = vunpack.c.h.b16 %v3369
        %v3956 = vunpack.c.l.b16 %v3370
        %v3957 = vunpack.c.h.b16 %v3370
        %v3958 = vunpack.c.l.b16 %v3371
        %v3959 = vunpack.c.h.b16 %v3371
        %v3960 = vunpack.c.l.b16 %v3372
        %v3961 = vunpack.c.h.b16 %v3372
        %v3962 = vunpack.c.l.b16 %v3373
        %v3963 = vunpack.c.h.b16 %v3373
        %v3964 = vunpack.c.l.b16 %v3374
        %v3965 = vunpack.c.h.b16 %v3374
        %v3966 = vunpack.c.l.b16 %v3375
        %v3967 = vunpack.c.h.b16 %v3375
        %v3968 = vunpack.c.l.b16 %v3376
        %v3969 = vunpack.c.h.b16 %v3376
        %v3970 = vunpack.c.l.b16 %v3377
        %v3971 = vunpack.c.h.b16 %v3377
        %v3972 = vunpack.c.l.b16 %v3378
        %v3973 = vunpack.c.h.b16 %v3378
        %v3974 = vunpack.c.l.b16 %v3379
        %v3975 = vunpack.c.h.b16 %v3379
        %v3976 = vunpack.c.l.b16 %v3380
        %v3977 = vunpack.c.h.b16 %v3380
        %v3978 = vunpack.c.l.b16 %v3381
        %v3979 = vunpack.c.h.b16 %v3381
        %v3980 = vunpack.c.l.b16 %v3382
        %v3981 = vunpack.c.h.b16 %v3382
        %v3982 = vunpack.c.l.b16 %v3383
        %v3983 = vunpack.c.h.b16 %v3383
        %v3984 = vunpack.c.l.b16 %v3384
        %v3985 = vunpack.c.h.b16 %v3384
        %v3986 = vunpack.c.l.b16 %v3385
        %v3987 = vunpack.c.h.b16 %v3385
        %v3988 = vunpack.c.l.b16 %v3386
        %v3989 = vunpack.c.h.b16 %v3386
        %v3990 = vpack.c.b16 %v3610, %v3606
        %v3991 = vpack.c.b16 %v3611, %v3607
        %v3992 = vpack.c.b16 %v3612, %v3608
        %v3993 = vpack.c.b16 %v3613, %v3609
        %v3994 = vpack.c.b16 %v3618, %v3614
        %v3995 = vpack.c.b16 %v3619, %v3615
        %v3996 = vpack.c.b16 %v3620, %v3616
        %v3997 = vpack.c.b16 %v3621, %v3617
        %v3998 = vpack.c.b16 %v3626, %v3622
        %v3999 = vpack.c.b16 %v3627, %v3623
        %v4000 = vpack.c.b16 %v3628, %v3624
        %v4001 = vpack.c.b16 %v3629, %v3625
        %v4002 = vpack.c.b16 %v3634, %v3630
        %v4003 = vpack.c.b16 %v3635, %v3631
        %v4004 = vpack.c.b16 %v3636, %v3632
        %v4005 = vpack.c.b16 %v3637, %v3633
        %v4006 = vpack.c.b16 %v3642, %v3638
        %v4007 = vpack.c.b16 %v3643, %v3639
        %v4008 = vpack.c.b16 %v3644, %v3640
        %v4009 = vpack.c.b16 %v3645, %v3641
        %v4010 = vpack.c.b16 %v3650, %v3646
        %v4011 = vpack.c.b16 %v3651, %v3647
        %v4012 = vpack.c.b16 %v3652, %v3648
        %v4013 = vpack.c.b16 %v3653, %v3649
        %v4014 = vpack.c.b16 %v3658, %v3654
        %v4015 = vpack.c.b16 %v3659, %v3655
        %v4016 = vpack.c.b16 %v3660, %v3656
        %v4017 = vpack.c.b16 %v3661, %v3657
        %v4018 = vpack.c.b16 %v3666, %v3662
        %v4019 = vpack.c.b16 %v3667, %v3663
        %v4020 = vpack.c.b16 %v3668, %v3664
        %v4021 = vpack.c.b16 %v3669, %v3665
        %v4022 = vpack.c.b16 %v3674, %v3670
        %v4023 = vpack.c.b16 %v3675, %v3671
        %v4024 = vpack.c.b16 %v3676, %v3672
        %v4025 = vpack.c.b16 %v3677, %v3673
        %v4026 = vpack.c.b16 %v3682, %v3678
        %v4027 = vpack.c.b16 %v3683, %v3679
        %v4028 = vpack.c.b16 %v3684, %v3680
        %v4029 = vpack.c.b16 %v3685, %v3681
        %v4030 = vpack.c.b16 %v3690, %v3686
        %v4031 = vpack.c.b16 %v3691, %v3687
        %v4032 = vpack.c.b16 %v3692, %v3688
        %v4033 = vpack.c.b16 %v3693, %v3689
        %v4034 = vpack.c.b16 %v3698, %v3694
        %v4035 = vpack.c.b16 %v3699, %v3695
        %v4036 = vpack.c.b16 %v3700, %v3696
        %v4037 = vpack.c.b16 %v3701, %v3697
        %v4038 = vpack.c.b16 %v3706, %v3702
        %v4039 = vpack.c.b16 %v3707, %v3703
        %v4040 = vpack.c.b16 %v3708, %v3704
        %v4041 = vpack.c.b16 %v3709, %v3705
        %v4042 = vpack.c.b16 %v3714, %v3710
        %v4043 = vpack.c.b16 %v3715, %v3711
        %v4044 = vpack.c.b16 %v3716, %v3712
        %v4045 = vpack.c.b16 %v3717, %v3713
        %v4046 = vpack.c.b16 %v3722, %v3718
        %v4047 = vpack.c.b16 %v3723, %v3719
        %v4048 = vpack.c.b16 %v3724, %v3720
        %v4049 = vpack.c.b16 %v3725, %v3721
        %v4050 = vpack.c.b16 %v3730, %v3726
        %v4051 = vpack.c.b16 %v3731, %v3727
        %v4052 = vpack.c.b16 %v3732, %v3728
        %v4053 = vpack.c.b16 %v3733, %v3729
        %v4054 = vpack.c.b16 %v3738, %v3734
        %v4055 = vpack.c.b16 %v3739, %v3735
        %v4056 = vpack.c.b16 %v3740, %v3736
        %v4057 = vpack.c.b16 %v3741, %v3737
        %v4058 = vpack.c.b16 %v3746, %v3742
        %v4059 = vpack.c.b16 %v3747, %v3743
        %v4060 = vpack.c.b16 %v3748, %v3744
        %v4061 = vpack.c.b16 %v3749, %v3745
        %v4062 = vpack.c.b16 %v3754, %v3750
        %v4063 = vpack.c.b16 %v3755, %v3751
        %v4064 = vpack.c.b16 %v3756, %v3752
        %v4065 = vpack.c.b16 %v3757, %v3753
        %v4066 = vpack.c.b16 %v3762, %v3758
        %v4067 = vpack.c.b16 %v3763, %v3759
        %v4068 = vpack.c.b16 %v3764, %v3760
        %v4069 = vpack.c.b16 %v3765, %v3761
        %v4070 = vpack.c.b16 %v3770, %v3766
        %v4071 = vpack.c.b16 %v3771, %v3767
        %v4072 = vpack.c.b16 %v3772, %v3768
        %v4073 = vpack.c.b16 %v3773, %v3769
        %v4074 = vpack.c.b16 %v3778, %v3774
        %v4075 = vpack.c.b16 %v3779, %v3775
        %v4076 = vpack.c.b16 %v3780, %v3776
        %v4077 = vpack.c.b16 %v3781, %v3777
        %v4078 = vpack.c.b16 %v3786, %v3782
        %v4079 = vpack.c.b16 %v3787, %v3783
        %v4080 = vpack.c.b16 %v3788, %v3784
        %v4081 = vpack.c.b16 %v3789, %v3785
        %v4082 = vpack.c.b16 %v3794, %v3790
        %v4083 = vpack.c.b16 %v3795, %v3791
        %v4084 = vpack.c.b16 %v3796, %v3792
        %v4085 = vpack.c.b16 %v3797, %v3793
        %v4086 = vpack.c.b16 %v3802, %v3798
        %v4087 = vpack.c.b16 %v3803, %v3799
        %v4088 = vpack.c.b16 %v3804, %v3800
        %v4089 = vpack.c.b16 %v3805, %v3801
        %v4090 = vpack.c.b16 %v3810, %v3806
        %v4091 = vpack.c.b16 %v3811, %v3807
        %v4092 = vpack.c.b16 %v3812, %v3808
        %v4093 = vpack.c.b16 %v3813, %v3809
        %v4094 = vpack.c.b16 %v3818, %v3814
        %v4095 = vpack.c.b16 %v3819, %v3815
        %v4096 = vpack.c.b16 %v3820, %v3816
        %v4097 = vpack.c.b16 %v3821, %v3817
        %v4098 = vpack.c.b16 %v3826, %v3822
        %v4099 = vpack.c.b16 %v3827, %v3823
        %v4100 = vpack.c.b16 %v3828, %v3824
        %v4101 = vpack.c.b16 %v3829, %v3825
        %v4102 = vpack.c.b16 %v3834, %v3830
        %v4103 = vpack.c.b16 %v3835, %v3831
        %v4104 = vpack.c.b16 %v3836, %v3832
        %v4105 = vpack.c.b16 %v3837, %v3833
        %v4106 = vpack.c.b16 %v3842, %v3838
        %v4107 = vpack.c.b16 %v3843, %v3839
        %v4108 = vpack.c.b16 %v3844, %v3840
        %v4109 = vpack.c.b16 %v3845, %v3841
        %v4110 = vpack.c.b16 %v3850, %v3846
        %v4111 = vpack.c.b16 %v3851, %v3847
        %v4112 = vpack.c.b16 %v3852, %v3848
        %v4113 = vpack.c.b16 %v3853, %v3849
        %v4114 = vpack.c.b16 %v3858, %v3854
        %v4115 = vpack.c.b16 %v3859, %v3855
        %v4116 = vpack.c.b16 %v3860, %v3856
        %v4117 = vpack.c.b16 %v3861, %v3857
        %v4118 = vpack.c.b16 %v3866, %v3862
        %v4119 = vpack.c.b16 %v3867, %v3863
        %v4120 = vpack.c.b16 %v3868, %v3864
        %v4121 = vpack.c.b16 %v3869, %v3865
        %v4122 = vpack.c.b16 %v3874, %v3870
        %v4123 = vpack.c.b16 %v3875, %v3871
        %v4124 = vpack.c.b16 %v3876, %v3872
        %v4125 = vpack.c.b16 %v3877, %v3873
        %v4126 = vpack.c.b16 %v3882, %v3878
        %v4127 = vpack.c.b16 %v3883, %v3879
        %v4128 = vpack.c.b16 %v3884, %v3880
        %v4129 = vpack.c.b16 %v3885, %v3881
        %v4130 = vpack.c.b16 %v3890, %v3886
        %v4131 = vpack.c.b16 %v3891, %v3887
        %v4132 = vpack.c.b16 %v3892, %v3888
        %v4133 = vpack.c.b16 %v3893, %v3889
        %v4134 = vpack.c.b16 %v3898, %v3894
        %v4135 = vpack.c.b16 %v3899, %v3895
        %v4136 = vpack.c.b16 %v3900, %v3896
        %v4137 = vpack.c.b16 %v3901, %v3897
        %v4138 = vpack.c.b16 %v3906, %v3902
        %v4139 = vpack.c.b16 %v3907, %v3903
        %v4140 = vpack.c.b16 %v3908, %v3904
        %v4141 = vpack.c.b16 %v3909, %v3905
        %v4142 = vpack.c.b16 %v3914, %v3910
        %v4143 = vpack.c.b16 %v3915, %v3911
        %v4144 = vpack.c.b16 %v3916, %v3912
        %v4145 = vpack.c.b16 %v3917, %v3913
        %v4146 = vpack.c.b16 %v3922, %v3918
        %v4147 = vpack.c.b16 %v3923, %v3919
        %v4148 = vpack.c.b16 %v3924, %v3920
        %v4149 = vpack.c.b16 %v3925, %v3921
        %v4150 = vpack.c.b16 %v3930, %v3926
        %v4151 = vpack.c.b16 %v3931, %v3927
        %v4152 = vpack.c.b16 %v3932, %v3928
        %v4153 = vpack.c.b16 %v3933, %v3929
        %v4154 = vpack.c.b16 %v3938, %v3934
        %v4155 = vpack.c.b16 %v3939, %v3935
        %v4156 = vpack.c.b16 %v3940, %v3936
        %v4157 = vpack.c.b16 %v3941, %v3937
        %v4158 = vpack.c.b16 %v3946, %v3942
        %v4159 = vpack.c.b16 %v3947, %v3943
        %v4160 = vpack.c.b16 %v3948, %v3944
        %v4161 = vpack.c.b16 %v3949, %v3945
        %v4162 = vpack.c.b16 %v3954, %v3950
        %v4163 = vpack.c.b16 %v3955, %v3951
        %v4164 = vpack.c.b16 %v3956, %v3952
        %v4165 = vpack.c.b16 %v3957, %v3953
        %v4166 = vpack.c.b16 %v3962, %v3958
        %v4167 = vpack.c.b16 %v3963, %v3959
        %v4168 = vpack.c.b16 %v3964, %v3960
        %v4169 = vpack.c.b16 %v3965, %v3961
        %v4170 = vpack.c.b16 %v3970, %v3966
        %v4171 = vpack.c.b16 %v3971, %v3967
        %v4172 = vpack.c.b16 %v3972, %v3968
        %v4173 = vpack.c.b16 %v3973, %v3969
        %v4174 = vpack.c.b16 %v3978, %v3974
        %v4175 = vpack.c.b16 %v3979, %v3975
        %v4176 = vpack.c.b16 %v3980, %v3976
        %v4177 = vpack.c.b16 %v3981, %v3977
        %v4178 = vpack.c.b16 %v3986, %v3982
        %v4179 = vpack.c.b16 %v3987, %v3983
        %v4180 = vpack.c.b16 %v3988, %v3984
        %v4181 = vpack.c.b16 %v3989, %v3985
        %4374 = vmatprep.subr.bf16.mxu0 %v3991
        %4375 = vmatpush1.bf16.msra.mxu0 %v3990
        %4376 = vmatprep.subr.bf16.mxu0 %v3995
        %4377 = vmatpush1.bf16.msra.mxu0 %v3994
        %4378 = vmatprep.subr.bf16.mxu0 %v3999
        %4379 = vmatpush1.bf16.msra.mxu0 %v3998
        %4380 = vmatprep.subr.bf16.mxu0 %v4003
        %4381 = vmatpush1.bf16.msra.mxu0 %v4002
        %4382 = vmatprep.subr.bf16.mxu0 %v4007
        %4383 = vmatpush1.bf16.msra.mxu0 %v4006
        %4384 = vmatprep.subr.bf16.mxu0 %v4011
        %4385 = vmatpush1.bf16.msra.mxu0 %v4010
        %4386 = vmatprep.subr.bf16.mxu0 %v4015
        %4387 = vmatpush1.bf16.msra.mxu0 %v4014
        %4388 = vmatprep.subr.bf16.mxu0 %v4019
        %4389 = vmatpush1.bf16.msra.mxu0 %v4018
        %4390 = vmatprep.subr.bf16.mxu0 %v4023
        %4391 = vmatpush1.bf16.msra.mxu0 %v4022
        %4392 = vmatprep.subr.bf16.mxu0 %v4027
        %4393 = vmatpush1.bf16.msra.mxu0 %v4026
        %4394 = vmatprep.subr.bf16.mxu0 %v4031
        %4395 = vmatpush1.bf16.msra.mxu0 %v4030
        %4396 = vmatprep.subr.bf16.mxu0 %v4035
        %4397 = vmatpush1.bf16.msra.mxu0 %v4034
        %4398 = vmatprep.subr.bf16.mxu0 %v4039
        %4399 = vmatpush1.bf16.msra.mxu0 %v4038
        %4400 = vmatprep.subr.bf16.mxu0 %v4043
        %4401 = vmatpush1.bf16.msra.mxu0 %v4042
        %4402 = vmatprep.subr.bf16.mxu0 %v4047
        %4403 = vmatpush1.bf16.msra.mxu0 %v4046
        %4404 = vmatprep.subr.bf16.mxu0 %v4051
        %4405 = vmatpush1.bf16.msra.mxu0 %v4050
        %4406 = vmatprep.mubr.bf16.mxu0 %v3403
        %4407 = vmatmul.mubr.bf16.gmra.mrb[0].mxu0 %v3402
        %v4408 = vpop.f32.mrb[0].mxu0
        %v4409 = vadd.f32 0.0, %v4408
        %v4410 = vpop.f32.mrb[0].mxu0
        %v4411 = vadd.f32 0.0, %v4410
        %v4412 = vpop.f32.mrb[0].mxu0
        %v4413 = vpop.f32.mrb[0].mxu0
        %4414 = vdwg.mxu0
        %4415 = vmatprep.subr.bf16.mxu0 %v4055
        %4416 = vmatpush1.bf16.msra.mxu0 %v4054
        %4417 = vmatprep.subr.bf16.mxu0 %v4059
        %4418 = vmatpush1.bf16.msra.mxu0 %v4058
        %4419 = vmatprep.subr.bf16.mxu0 %v4063
        %4420 = vmatpush1.bf16.msra.mxu0 %v4062
        %4421 = vmatprep.subr.bf16.mxu0 %v4067
        %4422 = vmatpush1.bf16.msra.mxu0 %v4066
        %4423 = vmatprep.subr.bf16.mxu0 %v4071
        %4424 = vmatpush1.bf16.msra.mxu0 %v4070
        %4425 = vmatprep.subr.bf16.mxu0 %v4075
        %4426 = vmatpush1.bf16.msra.mxu0 %v4074
        %4427 = vmatprep.subr.bf16.mxu0 %v4079
        %4428 = vmatpush1.bf16.msra.mxu0 %v4078
        %4429 = vmatprep.subr.bf16.mxu0 %v4083
        %4430 = vmatpush1.bf16.msra.mxu0 %v4082
        %4431 = vmatprep.subr.bf16.mxu0 %v4087
        %4432 = vmatpush1.bf16.msra.mxu0 %v4086
        %4433 = vmatprep.subr.bf16.mxu0 %v4091
        %4434 = vmatpush1.bf16.msra.mxu0 %v4090
        %4435 = vmatprep.subr.bf16.mxu0 %v4095
        %4436 = vmatpush1.bf16.msra.mxu0 %v4094
        %4437 = vmatprep.subr.bf16.mxu0 %v4099
        %4438 = vmatpush1.bf16.msra.mxu0 %v4098
        %4439 = vmatprep.subr.bf16.mxu0 %v4103
        %4440 = vmatpush1.bf16.msra.mxu0 %v4102
        %4441 = vmatprep.subr.bf16.mxu0 %v4107
        %4442 = vmatpush1.bf16.msra.mxu0 %v4106
        %4443 = vmatprep.subr.bf16.mxu0 %v4111
        %4444 = vmatpush1.bf16.msra.mxu0 %v4110
        %4445 = vmatprep.subr.bf16.mxu0 %v4115
        %4446 = vmatpush1.bf16.msra.mxu0 %v4114
        %4447 = vmatprep.mubr.bf16.mxu0 %v3405
        %4448 = vmatmul.mubr.bf16.gmra.mrb[0].mxu0 %v3404
        %v4449 = vpop.f32.mrb[0].mxu0
        %v4450 = vadd.f32 %v4409, %v4449
        %v4451 = vpop.f32.mrb[0].mxu0
        %v4452 = vadd.f32 %v4411, %v4451
        %v4453 = vpop.f32.mrb[0].mxu0
        %v4454 = vpop.f32.mrb[0].mxu0
        %4455 = vdwg.mxu0
        %4456 = vmatprep.subr.bf16.mxu0 %v4119
        %4457 = vmatpush1.bf16.msra.mxu0 %v4118
        %4458 = vmatprep.subr.bf16.mxu0 %v4123
        %4459 = vmatpush1.bf16.msra.mxu0 %v4122
        %4460 = vmatprep.subr.bf16.mxu0 %v4127
        %4461 = vmatpush1.bf16.msra.mxu0 %v4126
        %4462 = vmatprep.subr.bf16.mxu0 %v4131
        %4463 = vmatpush1.bf16.msra.mxu0 %v4130
        %4464 = vmatprep.subr.bf16.mxu0 %v4135
        %4465 = vmatpush1.bf16.msra.mxu0 %v4134
        %4466 = vmatprep.subr.bf16.mxu0 %v4139
        %4467 = vmatpush1.bf16.msra.mxu0 %v4138
        %4468 = vmatprep.subr.bf16.mxu0 %v4143
        %4469 = vmatpush1.bf16.msra.mxu0 %v4142
        %4470 = vmatprep.subr.bf16.mxu0 %v4147
        %4471 = vmatpush1.bf16.msra.mxu0 %v4146
        %4472 = vmatprep.subr.bf16.mxu0 %v4151
        %4473 = vmatpush1.bf16.msra.mxu0 %v4150
        %4474 = vmatprep.subr.bf16.mxu0 %v4155
        %4475 = vmatpush1.bf16.msra.mxu0 %v4154
        %4476 = vmatprep.subr.bf16.mxu0 %v4159
        %4477 = vmatpush1.bf16.msra.mxu0 %v4158
        %4478 = vmatprep.subr.bf16.mxu0 %v4163
        %4479 = vmatpush1.bf16.msra.mxu0 %v4162
        %4480 = vmatprep.subr.bf16.mxu0 %v4167
        %4481 = vmatpush1.bf16.msra.mxu0 %v4166
        %4482 = vmatprep.subr.bf16.mxu0 %v4171
        %4483 = vmatpush1.bf16.msra.mxu0 %v4170
        %4484 = vmatprep.subr.bf16.mxu0 %v4175
        %4485 = vmatpush1.bf16.msra.mxu0 %v4174
        %4486 = vmatprep.subr.bf16.mxu0 %v4179
        %4487 = vmatpush1.bf16.msra.mxu0 %v4178
        %4488 = vmatprep.mubr.bf16.mxu0 %v3407
        %4489 = vmatmul.mubr.bf16.gmra.mrb[0].mxu0 %v3406
        %v4490 = vpop.f32.mrb[0].mxu0
        %v4491 = vadd.f32 %v4450, %v4490
        %v4492 = vpop.f32.mrb[0].mxu0
        %v4493 = vadd.f32 %v4452, %v4492
        %v4494 = vpop.f32.mrb[0].mxu0
        %v4495 = vpop.f32.mrb[0].mxu0
        %4496 = vdwg.mxu0
        %4497 = vmatprep.subr.bf16.mxu0 %v3993
        %4498 = vmatpush1.bf16.msra.mxu0 %v3992
        %4499 = vmatprep.subr.bf16.mxu0 %v3997
        %4500 = vmatpush1.bf16.msra.mxu0 %v3996
        %4501 = vmatprep.subr.bf16.mxu0 %v4001
        %4502 = vmatpush1.bf16.msra.mxu0 %v4000
        %4503 = vmatprep.subr.bf16.mxu0 %v4005
        %4504 = vmatpush1.bf16.msra.mxu0 %v4004
        %4505 = vmatprep.subr.bf16.mxu0 %v4009
        %4506 = vmatpush1.bf16.msra.mxu0 %v4008
        %4507 = vmatprep.subr.bf16.mxu0 %v4013
        %4508 = vmatpush1.bf16.msra.mxu0 %v4012
        %4509 = vmatprep.subr.bf16.mxu0 %v4017
        %4510 = vmatpush1.bf16.msra.mxu0 %v4016
        %4511 = vmatprep.subr.bf16.mxu0 %v4021
        %4512 = vmatpush1.bf16.msra.mxu0 %v4020
        %4513 = vmatprep.subr.bf16.mxu0 %v4025
        %4514 = vmatpush1.bf16.msra.mxu0 %v4024
        %4515 = vmatprep.subr.bf16.mxu0 %v4029
        %4516 = vmatpush1.bf16.msra.mxu0 %v4028
        %4517 = vmatprep.subr.bf16.mxu0 %v4033
        %4518 = vmatpush1.bf16.msra.mxu0 %v4032
        %4519 = vmatprep.subr.bf16.mxu0 %v4037
        %4520 = vmatpush1.bf16.msra.mxu0 %v4036
        %4521 = vmatprep.subr.bf16.mxu0 %v4041
        %4522 = vmatpush1.bf16.msra.mxu0 %v4040
        %4523 = vmatprep.subr.bf16.mxu0 %v4045
        %4524 = vmatpush1.bf16.msra.mxu0 %v4044
        %4525 = vmatprep.subr.bf16.mxu0 %v4049
        %4526 = vmatpush1.bf16.msra.mxu0 %v4048
        %4527 = vmatprep.subr.bf16.mxu0 %v4053
        %4528 = vmatpush1.bf16.msra.mxu0 %v4052
        %4529 = vmatprep.mubr.bf16.mxu0 %v3403
        %4530 = vmatmul.mubr.bf16.gmra.mrb[0].mxu0 %v3402
        %v4531 = vpop.f32.mrb[0].mxu0
        %v4532 = vadd.f32 0.0, %v4531
        %v4533 = vpop.f32.mrb[0].mxu0
        %v4534 = vadd.f32 0.0, %v4533
        %v4535 = vpop.f32.mrb[0].mxu0
        %v4536 = vpop.f32.mrb[0].mxu0
        %4537 = vdwg.mxu0
        %4538 = vmatprep.subr.bf16.mxu0 %v4057
        %4539 = vmatpush1.bf16.msra.mxu0 %v4056
        %4540 = vmatprep.subr.bf16.mxu0 %v4061
        %4541 = vmatpush1.bf16.msra.mxu0 %v4060
        %4542 = vmatprep.subr.bf16.mxu0 %v4065
        %4543 = vmatpush1.bf16.msra.mxu0 %v4064
        %4544 = vmatprep.subr.bf16.mxu0 %v4069
        %4545 = vmatpush1.bf16.msra.mxu0 %v4068
        %4546 = vmatprep.subr.bf16.mxu0 %v4073
        %4547 = vmatpush1.bf16.msra.mxu0 %v4072
        %4548 = vmatprep.subr.bf16.mxu0 %v4077
        %4549 = vmatpush1.bf16.msra.mxu0 %v4076
        %4550 = vmatprep.subr.bf16.mxu0 %v4081
        %4551 = vmatpush1.bf16.msra.mxu0 %v4080
        %4552 = vmatprep.subr.bf16.mxu0 %v4085
        %4553 = vmatpush1.bf16.msra.mxu0 %v4084
        %4554 = vmatprep.subr.bf16.mxu0 %v4089
        %4555 = vmatpush1.bf16.msra.mxu0 %v4088
        %4556 = vmatprep.subr.bf16.mxu0 %v4093
        %4557 = vmatpush1.bf16.msra.mxu0 %v4092
        %4558 = vmatprep.subr.bf16.mxu0 %v4097
        %4559 = vmatpush1.bf16.msra.mxu0 %v4096
        %4560 = vmatprep.subr.bf16.mxu0 %v4101
        %4561 = vmatpush1.bf16.msra.mxu0 %v4100
        %4562 = vmatprep.subr.bf16.mxu0 %v4105
        %4563 = vmatpush1.bf16.msra.mxu0 %v4104
        %4564 = vmatprep.subr.bf16.mxu0 %v4109
        %4565 = vmatpush1.bf16.msra.mxu0 %v4108
        %4566 = vmatprep.subr.bf16.mxu0 %v4113
        %4567 = vmatpush1.bf16.msra.mxu0 %v4112
        %4568 = vmatprep.subr.bf16.mxu0 %v4117
        %4569 = vmatpush1.bf16.msra.mxu0 %v4116
        %4570 = vmatprep.mubr.bf16.mxu0 %v3405
        %4571 = vmatmul.mubr.bf16.gmra.mrb[0].mxu0 %v3404
        %v4572 = vpop.f32.mrb[0].mxu0
        %v4573 = vadd.f32 %v4532, %v4572
        %v4574 = vpop.f32.mrb[0].mxu0
        %v4575 = vadd.f32 %v4534, %v4574
        %v4576 = vpop.f32.mrb[0].mxu0
        %v4577 = vpop.f32.mrb[0].mxu0
        %4578 = vdwg.mxu0
        %4579 = vmatprep.subr.bf16.mxu0 %v4121
        %4580 = vmatpush1.bf16.msra.mxu0 %v4120
        %4581 = vmatprep.subr.bf16.mxu0 %v4125
        %4582 = vmatpush1.bf16.msra.mxu0 %v4124
        %4583 = vmatprep.subr.bf16.mxu0 %v4129
        %4584 = vmatpush1.bf16.msra.mxu0 %v4128
        %4585 = vmatprep.subr.bf16.mxu0 %v4133
        %4586 = vmatpush1.bf16.msra.mxu0 %v4132
        %4587 = vmatprep.subr.bf16.mxu0 %v4137
        %4588 = vmatpush1.bf16.msra.mxu0 %v4136
        %4589 = vmatprep.subr.bf16.mxu0 %v4141
        %4590 = vmatpush1.bf16.msra.mxu0 %v4140
        %4591 = vmatprep.subr.bf16.mxu0 %v4145
        %4592 = vmatpush1.bf16.msra.mxu0 %v4144
        %4593 = vmatprep.subr.bf16.mxu0 %v4149
        %4594 = vmatpush1.bf16.msra.mxu0 %v4148
        %4595 = vmatprep.subr.bf16.mxu0 %v4153
        %4596 = vmatpush1.bf16.msra.mxu0 %v4152
        %4597 = vmatprep.subr.bf16.mxu0 %v4157
        %4598 = vmatpush1.bf16.msra.mxu0 %v4156
        %4599 = vmatprep.subr.bf16.mxu0 %v4161
        %4600 = vmatpush1.bf16.msra.mxu0 %v4160
        %4601 = vmatprep.subr.bf16.mxu0 %v4165
        %4602 = vmatpush1.bf16.msra.mxu0 %v4164
        %4603 = vmatprep.subr.bf16.mxu0 %v4169
        %4604 = vmatpush1.bf16.msra.mxu0 %v4168
        %4605 = vmatprep.subr.bf16.mxu0 %v4173
        %4606 = vmatpush1.bf16.msra.mxu0 %v4172
        %4607 = vmatprep.subr.bf16.mxu0 %v4177
        %4608 = vmatpush1.bf16.msra.mxu0 %v4176
        %4609 = vmatprep.subr.bf16.mxu0 %v4181
        %4610 = vmatpush1.bf16.msra.mxu0 %v4180
        %4611 = vmatprep.mubr.bf16.mxu0 %v3407
        %4612 = vmatmul.mubr.bf16.gmra.mrb[0].mxu0 %v3406
        %v4613 = vpop.f32.mrb[0].mxu0
        %v4614 = vadd.f32 %v4573, %v4613
        %v4615 = vpop.f32.mrb[0].mxu0
        %v4616 = vadd.f32 %v4575, %v4615
        %v4617 = vpop.f32.mrb[0].mxu0
        %v4618 = vpop.f32.mrb[0].mxu0
        %4619 = vdwg.mxu0
        %v4620 = vadd.f32 %v3062, %v4491
        %v4621 = vadd.f32 %v3064, %v4493
        %v4622 = vadd.f32 %v3185, %v4614
        %v4623 = vadd.f32 %v3187, %v4616
        %v4624 = vld [vmem:[#allocation8] sm:$0xff]
        %v4625 = vld [vmem:[#allocation8 + $0x8] sm:$0xff]
        %v4626 = vld [vmem:[#allocation8 + $0x10] sm:$0xff]
        %v4627 = vld [vmem:[#allocation8 + $0x18] sm:$0xff]
        %v4628 = vadd.f32 %v4620, %v4624
        %v4629 = vadd.f32 %v4621, %v4625
        %v4630 = vadd.f32 %v4622, %v4626
        %v4631 = vadd.f32 %v4623, %v4627
        %v4632 = vadd.f32 %v4628, %v215
        %v4633 = vadd.f32 %v4629, %v216
        %v4634 = vadd.f32 %v4630, %v217
        %v4635 = vadd.f32 %v4631, %v218
        %v4636 = vmax.f32 %v4632, 0.0
        %v4637 = vmax.f32 %v4633, 0.0
        %v4638 = vmax.f32 %v4634, 0.0
        %v4639 = vmax.f32 %v4635, 0.0
        %4640 = vst [vmem:[%s213] sm:$0xff] %v4636
        %4641 = vst [vmem:[%s213 + $0x8] sm:$0xff] %v4637
        %4642 = vst [vmem:[%s213 + $0x10] sm:$0xff] %v4638
        %4643 = vst [vmem:[%s213 + $0x18] sm:$0xff] %v4639
        %s4644 = sand.u32 %s97, 1
        %s4645 = scalar_lea.sflag [#allocation5], %s4644
        %s4646 = sand.u32 %s97, 1
        %s4647 = smul.addr %s4646, 32
        %s4648 = scalar_lea.vmem [#allocation9], %s4647
        // Predicated region
        $region45: #{tpu_custom_call.1} parent=31 // pred_check
          %p4649 = pneg %p107
        $region46: #{tpu_custom_call.1} parent=31 // pred_check_branch
          %4651 = sbr.rel (%p4649) target = $region48
        $region47: #{tpu_custom_call.1} parent=31 // pred_region
          %s4653 = ssub.s32 512, 512
          %4654 = vsyncadd %s4645, %s4653
          %s4655 = smul.addr %s21, 4
          %s4656 = smul.addr %s4655, 128
          %s4657 = scalar_lea.hbm %s3, %s4656
          %s4659 = sshll.u32 %s4648, 4
          %s4660 = int_to_ptr.vmem [resolvable:$true] %s4659
          %4662 = dma.vmem_to_hbm [thread:$0]  %s4660, 512, %s4657, %s4645
        $region48: #{tpu_custom_call.1} parent=31 // pred_fallthru
          _
      $region32: #{tpu_custom_call.1} parent=5 // pred_fallthru
        _
      %p4663 = scmp.le.s32.totalorder 2, %s16
      // Predicated region
      $region49: #{tpu_custom_call.1} parent=5 // pred_check
        %p4664 = pneg %p4663
      $region50: #{tpu_custom_call.1} parent=5 // pred_check_branch
        %4666 = sbr.rel (%p4664) target = $region52
      $region51: #{tpu_custom_call.1} parent=5 // pred_region
        %s4667 = ssub.s32 %s16, 2
        // Predicated region
        $region53: #{tpu_custom_call.1} parent=51 // pred_check
          %p4668 = pneg %p113
        $region54: #{tpu_custom_call.1} parent=51 // pred_check_branch
          %4670 = sbr.rel (%p4668) target = $region56
        $region55: #{tpu_custom_call.1} parent=51 // pred_region
          %s4671 = sand.u32 %s98, 1
          %s4672 = scalar_lea.sflag [#allocation5], %s4671
          %s4673 = sand.u32 %s98, 1
          %s4674 = smul.addr %s4673, 32
          %s4675 = scalar_lea.vmem [#allocation9], %s4674
          %4676 = dma.done %s4672, 512
        $region56: #{tpu_custom_call.1} parent=51 // pred_fallthru
          _
      $region52: #{tpu_custom_call.1} parent=5 // pred_fallthru
        _
    $region6: #{tpu_custom_call.1} parent=1 // loop_footer
      %s20 = sadd.s32 1, %s16
    $region7: #{tpu_custom_call.1} parent=1 // loop_footer_branch
      %15 = sbr.rel target = $region3
    $region8: #{tpu_custom_call.1} parent=1 // loop_exit
      _
    %4677 = vsyncpa [#allocation4], 1
    %s4678 = scalar_lea.sflag [#allocation4], 1
    %4679 = vsyncpa %s4678, 1
    %4680 = vsyncpa [#allocation7], 1
    %4681 = vsyncpa [#allocation5], 1
    %s4682 = scalar_lea.sflag [#allocation5], 1
    %4683 = vsyncpa %s4682, 1

</llo_original>
